<compile_context>
chip_gen: v7x
topology: tpu7x:2x2x1
jax: 0.10.0
libtpu: 0.0.40
codegen_flags: <defaults>
</compile_context>

<pallas_src>
import jax
import jax.numpy as jnp
from jax import lax
from jax.experimental import pallas as pl
from jax.experimental.pallas import tpu as pltpu

LATENT_DIM = 2
HEAD_DIM = 2 * LATENT_DIM      # fused [mu | log_sigma] head columns
IN_DIM = 784                   # 28*28, kept true-sized (784 = 98*8 sublanes)
HID_DIM = 400
HID_PAD = 512                  # hidden padded to 4*128 lanes (aligned matmuls)
BN_EPS = 1e-5


def _pad_to(a, shape):
    return jnp.pad(a, [(0, t - s) for s, t in zip(a.shape, shape)])


def _bn_relu_train(h, gamma, beta):
    """PyTorch BatchNorm1d training mode (biased batch variance) fused with ReLU.

    Two-pass centered variance (numerical parity with PyTorch); the affine
    transform is folded into one h*scale + shift VALU pass.
    """
    mean = jnp.mean(h, axis=0, keepdims=True)
    var = jnp.mean(jnp.square(h - mean), axis=0, keepdims=True)
    scale = gamma * lax.rsqrt(var + BN_EPS)
    shift = beta - mean * scale
    return jnp.maximum(h * scale + shift, 0.0)


def vae_kernel(
    x_ref, eps_ref,
    w1_ref, b1_ref, g1_ref, be1_ref,
    wh_ref, bh_ref,
    wd1_ref, bd1_ref, g2_ref, be2_ref,
    wd2_ref, bd2_ref,
    out_ref, heads_ref,
):
    x = x_ref[...]                                      # (MB, 784) f32

    # ----- encoder: Linear(784,400) -> BatchNorm1d -> ReLU -----
    w1 = w1_ref[...].astype(jnp.float32)                # bf16 in HBM, f32 compute
    h = jnp.dot(x, w1, preferred_element_type=jnp.float32) + b1_ref[...]
    h1 = _bn_relu_train(h, g1_ref[...], be1_ref[...])   # (MB, 512), cols >=400 are 0

    # ----- fused latent heads: one (512, 4) matmul -> [mu | log_sigma] -----
    head = (jnp.dot(h1, wh_ref[...], preferred_element_type=jnp.float32)
            + bh_ref[...])                              # (MB, 4)
    heads_ref[...] = head
    mu = head[:, 0:LATENT_DIM]
    logvar = head[:, LATENT_DIM:HEAD_DIM]

    # ----- reparameterization: z = eps * exp(0.5 * log_sigma) + mu -----
    z = eps_ref[...] * jnp.exp(0.5 * logvar) + mu       # (MB, 2)

    # ----- decoder Linear(2, 400): K=2 degenerate -> VPU outer product -----
    d = bd1_ref[...]                                    # (1, 512) broadcasts
    for i in range(LATENT_DIM):                         # static unroll
        d = d + z[:, i:i + 1] * wd1_ref[i:i + 1, :]

    # ----- BatchNorm1d -> ReLU -> Linear(400, 784) -> Sigmoid -----
    d1 = _bn_relu_train(d, g2_ref[...], be2_ref[...])
    wd2 = wd2_ref[...].astype(jnp.float32)              # bf16 in HBM, f32 compute
    logits = (jnp.dot(d1, wd2, preferred_element_type=jnp.float32)
              + bd2_ref[...])
    out_ref[...] = jax.nn.sigmoid(logits)


@jax.jit
def vae_forward(x, eps, params):
    """VAE forward.

    x:   (MB, 784) or (S, MB, 784) float32. A leading S axis is S independent
         microbatches; each gets its own BatchNorm batch statistics, i.e. it is
         equivalent to one PyTorch forward() call per microbatch. Weights stay
         resident in VMEM across the S grid steps (fetched from HBM once per call).
    eps: matching (MB, 2) / (S, MB, 2) reparameterization noise.
    Returns (reconstruction, mu, logvar) with the same leading layout as x.
    """
    single = x.ndim == 2
    if single:
        x, eps = x[None], eps[None]
    S, MB, _ = x.shape
    x = x.astype(jnp.float32)
    eps = eps.astype(jnp.float32)

    x_spec = pl.BlockSpec((None, MB, IN_DIM), lambda s: (s, 0, 0))
    eps_spec = pl.BlockSpec((None, MB, LATENT_DIM), lambda s: (s, 0, 0))
    # Constant block index -> weight tiles stay resident across grid steps.
    weight_specs = [pl.BlockSpec(p.shape, lambda s: (0, 0)) for p in params]

    weight_bytes = sum(int(p.size) * p.dtype.itemsize for p in params)
    io_bytes = 4 * (x.size + eps.size + S * MB * (IN_DIM + HEAD_DIM))
    flops = 2 * S * MB * (IN_DIM * HID_PAD + HID_PAD * HEAD_DIM
                          + LATENT_DIM * HID_PAD + HID_PAD * IN_DIM)
    transcendentals = S * (MB * (IN_DIM + LATENT_DIM) + 2 * HID_PAD)

    recon, heads = pl.pallas_call(
        vae_kernel,
        grid=(S,),
        in_specs=[x_spec, eps_spec, *weight_specs],
        out_specs=(
            pl.BlockSpec((None, MB, IN_DIM), lambda s: (s, 0, 0)),
            pl.BlockSpec((None, MB, HEAD_DIM), lambda s: (s, 0, 0)),
        ),
        out_shape=(
            jax.ShapeDtypeStruct((S, MB, IN_DIM), jnp.float32),
            jax.ShapeDtypeStruct((S, MB, HEAD_DIM), jnp.float32),
        ),
        compiler_params=pltpu.CompilerParams(
            dimension_semantics=("parallel",)),       # v7x: 2 TCs split microbatches
        cost_estimate=pl.CostEstimate(
            flops=flops, transcendentals=transcendentals,
            bytes_accessed=weight_bytes + io_bytes),
        # Total VMEM footprint (~2 MiB weights + tiny activations) fits the
        # default scoped VMEM on v5e/v6e/v7x; no vmem_limit override needed.
    )(x, eps, *params)

    mu = heads[..., :LATENT_DIM]
    logvar = heads[..., LATENT_DIM:]
    if single:
        return recon[0], mu[0], logvar[0]
    return recon, mu, logvar


def _linear_init(key, fan_in, fan_out):
    # Deterministic init mimicking PyTorch Linear default (uniform +-1/sqrt(fan_in)).
    kw, kb = jax.random.split(key)
    bound = 1.0 / jnp.sqrt(jnp.float32(fan_in))
    w = jax.random.uniform(kw, (fan_in, fan_out), jnp.float32, -bound, bound)
    b = jax.random.uniform(kb, (1, fan_out), jnp.float32, -bound, bound)
    return w, b


def make_params(key):
    """Kernel parameter tuple, padded only where alignment buys something.

    Zero padding of the hidden dim (400 -> 512) keeps padded columns exactly 0
    through Linear, BN (gamma padded with 0 -> output 0) and ReLU, and the
    padded weight rows of the consumers are 0, so the real 400/784-wide slices
    equal the unpadded computation. The two large weights are bf16 (HBM-traffic
    reduction); everything else stays f32.
    """
    keys = jax.random.split(key, 5)
    w1, b1 = _linear_init(keys[0], IN_DIM, HID_DIM)
    wmu, bmu = _linear_init(keys[1], HID_DIM, LATENT_DIM)
    wls, bls = _linear_init(keys[2], HID_DIM, LATENT_DIM)
    wd1, bd1 = _linear_init(keys[3], LATENT_DIM, HID_DIM)
    wd2, bd2 = _linear_init(keys[4], HID_DIM, IN_DIM)

    # Encoder Linear(784,400): K kept at true 784 (Mosaic masks the last K tile).
    w1_p = _pad_to(w1, (IN_DIM, HID_PAD)).astype(jnp.bfloat16)
    b1_p = _pad_to(b1, (1, HID_PAD))
    g1_p = _pad_to(jnp.ones((1, HID_DIM), jnp.float32), (1, HID_PAD))
    be1_p = jnp.zeros((1, HID_PAD), jnp.float32)

    # Fused latent heads: only the 4 real columns [mu | log_sigma].
    wh_p = _pad_to(jnp.concatenate([wmu, wls], axis=1), (HID_PAD, HEAD_DIM))
    bh_p = jnp.concatenate([bmu, bls], axis=1)                  # (1, 4)

    # Decoder Linear(2, 400).
    wd1_p = _pad_to(wd1, (LATENT_DIM, HID_PAD))
    bd1_p = _pad_to(bd1, (1, HID_PAD))
    g2_p = _pad_to(jnp.ones((1, HID_DIM), jnp.float32), (1, HID_PAD))
    be2_p = jnp.zeros((1, HID_PAD), jnp.float32)

    # Decoder Linear(400, 784): N kept at true 784 (masked final store is only MB rows).
    wd2_p = _pad_to(wd2, (HID_PAD, IN_DIM)).astype(jnp.bfloat16)
    bd2_p = b2 = _pad_to(bd2, (1, IN_DIM))

    return (w1_p, b1_p, g1_p, be1_p,
            wh_p, bh_p,
            wd1_p, bd1_p, g2_p, be2_p,
            wd2_p, bd2_p)


if __name__ == "__main__":
    key = jax.random.PRNGKey(0)
    kx, keps, kp = jax.random.split(key, 3)

    S, MB = 2, 8                 # 2 microbatches of 8 flattened MNIST-like inputs
    x = jax.random.uniform(kx, (S, MB, IN_DIM), jnp.float32)
    eps = jax.random.normal(keps, (S, MB, LATENT_DIM), jnp.float32)
    params = make_params(kp)

    recon, mu, logvar = vae_forward(x, eps, params)
    jax.block_until_ready((recon, mu, logvar))

    assert recon.shape == (S, MB, IN_DIM)
    assert mu.shape == (S, MB, LATENT_DIM)
    assert logvar.shape == (S, MB, LATENT_DIM)
    assert bool(jnp.all(jnp.isfinite(recon)))
    assert bool(jnp.all((recon >= 0.0) & (recon <= 1.0)))

    # Single-batch (2-D) entry point, matching one PyTorch forward() call.
    r2, m2, l2 = vae_forward(x[0], eps[0], params)
    jax.block_until_ready((r2, m2, l2))
    assert r2.shape == (MB, IN_DIM) and m2.shape == (MB, LATENT_DIM)

    print("KERNEL_OK")
</pallas_src>

<mosaic_0001>
module attributes {stable_mosaic.version = 11 : i64} {
  func.func @vae_kernel(%arg0: i32, %arg1: memref<1x8x784xf32, #tpu.memory_space<vmem>>, %arg2: memref<1x8x2xf32, #tpu.memory_space<vmem>>, %arg3: memref<784x512xbf16, #tpu.memory_space<vmem>>, %arg4: memref<1x512xf32, #tpu.memory_space<vmem>>, %arg5: memref<1x512xf32, #tpu.memory_space<vmem>>, %arg6: memref<1x512xf32, #tpu.memory_space<vmem>>, %arg7: memref<512x4xf32, #tpu.memory_space<vmem>>, %arg8: memref<1x4xf32, #tpu.memory_space<vmem>>, %arg9: memref<2x512xf32, #tpu.memory_space<vmem>>, %arg10: memref<1x512xf32, #tpu.memory_space<vmem>>, %arg11: memref<1x512xf32, #tpu.memory_space<vmem>>, %arg12: memref<1x512xf32, #tpu.memory_space<vmem>>, %arg13: memref<512x784xbf16, #tpu.memory_space<vmem>>, %arg14: memref<1x784xf32, #tpu.memory_space<vmem>>, %arg15: memref<1x8x784xf32, #tpu.memory_space<vmem>>, %arg16: memref<1x8x4xf32, #tpu.memory_space<vmem>>) attributes {dimension_semantics = [#tpu.dimension_semantics<parallel>], iteration_bounds = array<i64: 2>, scalar_prefetch = 0 : i64, scratch_operands = 0 : i64, tpu.core_type = #tpu.core_type<tc>, window_params = [{transform_indices = @transform_0, window_bounds = array<i64: 1, 8, 784>}, {transform_indices = @transform_1, window_bounds = array<i64: 1, 8, 2>}, {pipeline_mode = #tpu.pipeline_mode<synchronous>, transform_indices = @transform_2, window_bounds = array<i64: 784, 512>}, {pipeline_mode = #tpu.pipeline_mode<synchronous>, transform_indices = @transform_3, window_bounds = array<i64: 1, 512>}, {pipeline_mode = #tpu.pipeline_mode<synchronous>, transform_indices = @transform_4, window_bounds = array<i64: 1, 512>}, {pipeline_mode = #tpu.pipeline_mode<synchronous>, transform_indices = @transform_5, window_bounds = array<i64: 1, 512>}, {pipeline_mode = #tpu.pipeline_mode<synchronous>, transform_indices = @transform_6, window_bounds = array<i64: 512, 4>}, {pipeline_mode = #tpu.pipeline_mode<synchronous>, transform_indices = @transform_7, window_bounds = array<i64: 1, 4>}, {pipeline_mode = #tpu.pipeline_mode<synchronous>, transform_indices = @transform_8, window_bounds = array<i64: 2, 512>}, {pipeline_mode = #tpu.pipeline_mode<synchronous>, transform_indices = @transform_9, window_bounds = array<i64: 1, 512>}, {pipeline_mode = #tpu.pipeline_mode<synchronous>, transform_indices = @transform_10, window_bounds = array<i64: 1, 512>}, {pipeline_mode = #tpu.pipeline_mode<synchronous>, transform_indices = @transform_11, window_bounds = array<i64: 1, 512>}, {pipeline_mode = #tpu.pipeline_mode<synchronous>, transform_indices = @transform_12, window_bounds = array<i64: 512, 784>}, {pipeline_mode = #tpu.pipeline_mode<synchronous>, transform_indices = @transform_13, window_bounds = array<i64: 1, 784>}, {transform_indices = @transform_14, window_bounds = array<i64: 1, 8, 784>}, {transform_indices = @transform_15, window_bounds = array<i64: 1, 8, 4>}]} {
    %c0 = arith.constant 0 : index
    %c0_0 = arith.constant 0 : index
    %c0_1 = arith.constant 0 : index
    %0 = vector.load %arg1[%c0, %c0_0, %c0_1] : memref<1x8x784xf32, #tpu.memory_space<vmem>>, vector<1x8x784xf32>
    %1 = vector.shape_cast %0 : vector<1x8x784xf32> to vector<8x784xf32>
    %c0_2 = arith.constant 0 : index
    %c0_3 = arith.constant 0 : index
    %2 = vector.load %arg3[%c0_2, %c0_3] : memref<784x512xbf16, #tpu.memory_space<vmem>>, vector<784x512xbf16>
    %3 = arith.extf %2 : vector<784x512xbf16> to vector<784x512xf32>
    %cst = arith.constant dense<0.000000e+00> : vector<8x512xf32>
    %4 = tpu.matmul %1, %3, %cst {dimension_numbers = #tpu.dot_dimension_numbers<[1], [0], [0], [1], [0, 0, 1, 1], [], []>} : vector<8x784xf32>, vector<784x512xf32>, vector<8x512xf32> -> vector<8x512xf32>
    %c0_4 = arith.constant 0 : index
    %c0_5 = arith.constant 0 : index
    %5 = vector.load %arg4[%c0_4, %c0_5] : memref<1x512xf32, #tpu.memory_space<vmem>>, vector<1x512xf32>
    %6 = vector.broadcast %5 : vector<1x512xf32> to vector<8x512xf32>
    %7 = arith.addf %4, %6 : vector<8x512xf32>
    %c0_6 = arith.constant 0 : index
    %c0_7 = arith.constant 0 : index
    %8 = vector.load %arg5[%c0_6, %c0_7] : memref<1x512xf32, #tpu.memory_space<vmem>>, vector<1x512xf32>
    %c0_8 = arith.constant 0 : index
    %c0_9 = arith.constant 0 : index
    %9 = vector.load %arg6[%c0_8, %c0_9] : memref<1x512xf32, #tpu.memory_space<vmem>>, vector<1x512xf32>
    %cst_10 = arith.constant dense<0.000000e+00> : vector<512xf32>
    %10 = vector.multi_reduction <add>, %7, %cst_10 [0] : vector<8x512xf32> to vector<512xf32>
    %11 = vector.shape_cast %10 : vector<512xf32> to vector<1x512xf32>
    %cst_11 = arith.constant 8.000000e+00 : f32
    %12 = vector.broadcast %cst_11 : f32 to vector<1x512xf32>
    %13 = arith.divf %11, %12 : vector<1x512xf32>
    %14 = vector.broadcast %13 : vector<1x512xf32> to vector<8x512xf32>
    %15 = arith.subf %7, %14 : vector<8x512xf32>
    %16 = arith.mulf %15, %15 : vector<8x512xf32>
    %cst_12 = arith.constant dense<0.000000e+00> : vector<512xf32>
    %17 = vector.multi_reduction <add>, %16, %cst_12 [0] : vector<8x512xf32> to vector<512xf32>
    %18 = vector.shape_cast %17 : vector<512xf32> to vector<1x512xf32>
    %cst_13 = arith.constant 8.000000e+00 : f32
    %19 = vector.broadcast %cst_13 : f32 to vector<1x512xf32>
    %20 = arith.divf %18, %19 : vector<1x512xf32>
    %cst_14 = arith.constant 9.99999974E-6 : f32
    %21 = vector.broadcast %cst_14 : f32 to vector<1x512xf32>
    %22 = arith.addf %20, %21 : vector<1x512xf32>
    %23 = math.rsqrt %22 : vector<1x512xf32>
    %24 = arith.mulf %8, %23 : vector<1x512xf32>
    %25 = arith.mulf %13, %24 : vector<1x512xf32>
    %26 = arith.subf %9, %25 : vector<1x512xf32>
    %27 = vector.broadcast %24 : vector<1x512xf32> to vector<8x512xf32>
    %28 = arith.mulf %7, %27 : vector<8x512xf32>
    %29 = vector.broadcast %26 : vector<1x512xf32> to vector<8x512xf32>
    %30 = arith.addf %28, %29 : vector<8x512xf32>
    %cst_15 = arith.constant 0.000000e+00 : f32
    %31 = vector.broadcast %cst_15 : f32 to vector<8x512xf32>
    %32 = arith.maximumf %30, %31 : vector<8x512xf32>
    %c0_16 = arith.constant 0 : index
    %c0_17 = arith.constant 0 : index
    %33 = vector.load %arg7[%c0_16, %c0_17] : memref<512x4xf32, #tpu.memory_space<vmem>>, vector<512x4xf32>
    %cst_18 = arith.constant dense<0.000000e+00> : vector<8x4xf32>
    %34 = tpu.matmul %32, %33, %cst_18 {dimension_numbers = #tpu.dot_dimension_numbers<[1], [0], [0], [1], [0, 0, 1, 1], [], []>} : vector<8x512xf32>, vector<512x4xf32>, vector<8x4xf32> -> vector<8x4xf32>
    %c0_19 = arith.constant 0 : index
    %c0_20 = arith.constant 0 : index
    %35 = vector.load %arg8[%c0_19, %c0_20] : memref<1x4xf32, #tpu.memory_space<vmem>>, vector<1x4xf32>
    %36 = vector.broadcast %35 : vector<1x4xf32> to vector<8x4xf32>
    %37 = arith.addf %34, %36 : vector<8x4xf32>
    %c0_21 = arith.constant 0 : index
    %c0_22 = arith.constant 0 : index
    %c0_23 = arith.constant 0 : index
    %38 = vector.load %arg16[%c0_21, %c0_22, %c0_23] : memref<1x8x4xf32, #tpu.memory_space<vmem>>, vector<1x8x4xf32>
    %39 = vector.shape_cast %38 : vector<1x8x4xf32> to vector<8x4xf32>
    %40 = vector.shape_cast %37 : vector<8x4xf32> to vector<1x8x4xf32>
    tpu.vector_store %arg16[%c0_21, %c0_22, %c0_23], %40 {strides = array<i32>} : memref<1x8x4xf32, #tpu.memory_space<vmem>>, vector<1x8x4xf32>,
    %41 = vector.extract_strided_slice %37 {offsets = [0, 0], sizes = [8, 2], strides = [1, 1]} : vector<8x4xf32> to vector<8x2xf32>
    %42 = vector.extract_strided_slice %37 {offsets = [0, 2], sizes = [8, 2], strides = [1, 1]} : vector<8x4xf32> to vector<8x2xf32>
    %c0_24 = arith.constant 0 : index
    %c0_25 = arith.constant 0 : index
    %c0_26 = arith.constant 0 : index
    %43 = vector.load %arg2[%c0_24, %c0_25, %c0_26] : memref<1x8x2xf32, #tpu.memory_space<vmem>>, vector<1x8x2xf32>
    %44 = vector.shape_cast %43 : vector<1x8x2xf32> to vector<8x2xf32>
    %cst_27 = arith.constant 5.000000e-01 : f32
    %45 = vector.broadcast %cst_27 : f32 to vector<8x2xf32>
    %46 = arith.mulf %45, %42 : vector<8x2xf32>
    %47 = math.exp %46 : vector<8x2xf32>
    %48 = arith.mulf %44, %47 : vector<8x2xf32>
    %49 = arith.addf %48, %41 : vector<8x2xf32>
    %c0_28 = arith.constant 0 : index
    %c0_29 = arith.constant 0 : index
    %50 = vector.load %arg10[%c0_28, %c0_29] : memref<1x512xf32, #tpu.memory_space<vmem>>, vector<1x512xf32>
    %51 = vector.extract_strided_slice %49 {offsets = [0, 0], sizes = [8, 1], strides = [1, 1]} : vector<8x2xf32> to vector<8x1xf32>
    %c0_30 = arith.constant 0 : index
    %c0_31 = arith.constant 0 : index
    %52 = vector.load %arg9[%c0_30, %c0_31] : memref<2x512xf32, #tpu.memory_space<vmem>>, vector<1x512xf32>
    %53 = vector.broadcast %51 : vector<8x1xf32> to vector<8x512xf32>
    %54 = vector.broadcast %52 : vector<1x512xf32> to vector<8x512xf32>
    %55 = arith.mulf %53, %54 : vector<8x512xf32>
    %56 = vector.broadcast %50 : vector<1x512xf32> to vector<8x512xf32>
    %57 = arith.addf %56, %55 : vector<8x512xf32>
    %58 = vector.extract_strided_slice %49 {offsets = [0, 1], sizes = [8, 1], strides = [1, 1]} : vector<8x2xf32> to vector<8x1xf32>
    %c1 = arith.constant 1 : index
    %c0_32 = arith.constant 0 : index
    %59 = vector.load %arg9[%c1, %c0_32] : memref<2x512xf32, #tpu.memory_space<vmem>>, vector<1x512xf32>
    %60 = vector.broadcast %58 : vector<8x1xf32> to vector<8x512xf32>
    %61 = vector.broadcast %59 : vector<1x512xf32> to vector<8x512xf32>
    %62 = arith.mulf %60, %61 : vector<8x512xf32>
    %63 = arith.addf %57, %62 : vector<8x512xf32>
    %c0_33 = arith.constant 0 : index
    %c0_34 = arith.constant 0 : index
    %64 = vector.load %arg11[%c0_33, %c0_34] : memref<1x512xf32, #tpu.memory_space<vmem>>, vector<1x512xf32>
    %c0_35 = arith.constant 0 : index
    %c0_36 = arith.constant 0 : index
    %65 = vector.load %arg12[%c0_35, %c0_36] : memref<1x512xf32, #tpu.memory_space<vmem>>, vector<1x512xf32>
    %cst_37 = arith.constant dense<0.000000e+00> : vector<512xf32>
    %66 = vector.multi_reduction <add>, %63, %cst_37 [0] : vector<8x512xf32> to vector<512xf32>
    %67 = vector.shape_cast %66 : vector<512xf32> to vector<1x512xf32>
    %cst_38 = arith.constant 8.000000e+00 : f32
    %68 = vector.broadcast %cst_38 : f32 to vector<1x512xf32>
    %69 = arith.divf %67, %68 : vector<1x512xf32>
    %70 = vector.broadcast %69 : vector<1x512xf32> to vector<8x512xf32>
    %71 = arith.subf %63, %70 : vector<8x512xf32>
    %72 = arith.mulf %71, %71 : vector<8x512xf32>
    %cst_39 = arith.constant dense<0.000000e+00> : vector<512xf32>
    %73 = vector.multi_reduction <add>, %72, %cst_39 [0] : vector<8x512xf32> to vector<512xf32>
    %74 = vector.shape_cast %73 : vector<512xf32> to vector<1x512xf32>
    %cst_40 = arith.constant 8.000000e+00 : f32
    %75 = vector.broadcast %cst_40 : f32 to vector<1x512xf32>
    %76 = arith.divf %74, %75 : vector<1x512xf32>
    %cst_41 = arith.constant 9.99999974E-6 : f32
    %77 = vector.broadcast %cst_41 : f32 to vector<1x512xf32>
    %78 = arith.addf %76, %77 : vector<1x512xf32>
    %79 = math.rsqrt %78 : vector<1x512xf32>
    %80 = arith.mulf %64, %79 : vector<1x512xf32>
    %81 = arith.mulf %69, %80 : vector<1x512xf32>
    %82 = arith.subf %65, %81 : vector<1x512xf32>
    %83 = vector.broadcast %80 : vector<1x512xf32> to vector<8x512xf32>
    %84 = arith.mulf %63, %83 : vector<8x512xf32>
    %85 = vector.broadcast %82 : vector<1x512xf32> to vector<8x512xf32>
    %86 = arith.addf %84, %85 : vector<8x512xf32>
    %cst_42 = arith.constant 0.000000e+00 : f32
    %87 = vector.broadcast %cst_42 : f32 to vector<8x512xf32>
    %88 = arith.maximumf %86, %87 : vector<8x512xf32>
    %c0_43 = arith.constant 0 : index
    %c0_44 = arith.constant 0 : index
    %89 = vector.load %arg13[%c0_43, %c0_44] : memref<512x784xbf16, #tpu.memory_space<vmem>>, vector<512x784xbf16>
    %90 = arith.extf %89 : vector<512x784xbf16> to vector<512x784xf32>
    %cst_45 = arith.constant dense<0.000000e+00> : vector<8x784xf32>
    %91 = tpu.matmul %88, %90, %cst_45 {dimension_numbers = #tpu.dot_dimension_numbers<[1], [0], [0], [1], [0, 0, 1, 1], [], []>} : vector<8x512xf32>, vector<512x784xf32>, vector<8x784xf32> -> vector<8x784xf32>
    %c0_46 = arith.constant 0 : index
    %c0_47 = arith.constant 0 : index
    %92 = vector.load %arg14[%c0_46, %c0_47] : memref<1x784xf32, #tpu.memory_space<vmem>>, vector<1x784xf32>
    %93 = vector.broadcast %92 : vector<1x784xf32> to vector<8x784xf32>
    %94 = arith.addf %91, %93 : vector<8x784xf32>
    %95 = arith.negf %94 : vector<8x784xf32>
    %96 = math.exp %95 : vector<8x784xf32>
    %cst_48 = arith.constant 1.000000e+00 : f32
    %97 = vector.broadcast %cst_48 : f32 to vector<8x784xf32>
    %98 = arith.addf %97, %96 : vector<8x784xf32>
    %99 = arith.divf %97, %98 : vector<8x784xf32>
    %c0_49 = arith.constant 0 : index
    %c0_50 = arith.constant 0 : index
    %c0_51 = arith.constant 0 : index
    %100 = vector.load %arg15[%c0_49, %c0_50, %c0_51] : memref<1x8x784xf32, #tpu.memory_space<vmem>>, vector<1x8x784xf32>
    %101 = vector.shape_cast %100 : vector<1x8x784xf32> to vector<8x784xf32>
    %102 = vector.shape_cast %99 : vector<8x784xf32> to vector<1x8x784xf32>
    tpu.vector_store %arg15[%c0_49, %c0_50, %c0_51], %102 {strides = array<i32>} : memref<1x8x784xf32, #tpu.memory_space<vmem>>, vector<1x8x784xf32>,
    return
  }
  func.func @transform_0(%arg0: i32) -> (i32, i32, i32) {
    %c0_i32 = arith.constant 0 : i32
    %c0_i32_0 = arith.constant 0 : i32
    %c0_i32_1 = arith.constant 0 : i32
    return %arg0, %c0_i32, %c0_i32_0 : i32, i32, i32
  }
  func.func @transform_1(%arg0: i32) -> (i32, i32, i32) {
    %c0_i32 = arith.constant 0 : i32
    %c0_i32_0 = arith.constant 0 : i32
    %c0_i32_1 = arith.constant 0 : i32
    return %arg0, %c0_i32, %c0_i32_0 : i32, i32, i32
  }
  func.func @transform_2(%arg0: i32) -> (i32, i32) {
    %c0_i32 = arith.constant 0 : i32
    %c0_i32_0 = arith.constant 0 : i32
    %c0_i32_1 = arith.constant 0 : i32
    return %c0_i32, %c0_i32_0 : i32, i32
  }
  func.func @transform_3(%arg0: i32) -> (i32, i32) {
    %c0_i32 = arith.constant 0 : i32
    %c0_i32_0 = arith.constant 0 : i32
    %c0_i32_1 = arith.constant 0 : i32
    return %c0_i32, %c0_i32_0 : i32, i32
  }
  func.func @transform_4(%arg0: i32) -> (i32, i32) {
    %c0_i32 = arith.constant 0 : i32
    %c0_i32_0 = arith.constant 0 : i32
    %c0_i32_1 = arith.constant 0 : i32
    return %c0_i32, %c0_i32_0 : i32, i32
  }
  func.func @transform_5(%arg0: i32) -> (i32, i32) {
    %c0_i32 = arith.constant 0 : i32
    %c0_i32_0 = arith.constant 0 : i32
    %c0_i32_1 = arith.constant 0 : i32
    return %c0_i32, %c0_i32_0 : i32, i32
  }
  func.func @transform_6(%arg0: i32) -> (i32, i32) {
    %c0_i32 = arith.constant 0 : i32
    %c0_i32_0 = arith.constant 0 : i32
    %c0_i32_1 = arith.constant 0 : i32
    return %c0_i32, %c0_i32_0 : i32, i32
  }
  func.func @transform_7(%arg0: i32) -> (i32, i32) {
    %c0_i32 = arith.constant 0 : i32
    %c0_i32_0 = arith.constant 0 : i32
    %c0_i32_1 = arith.constant 0 : i32
    return %c0_i32, %c0_i32_0 : i32, i32
  }
  func.func @transform_8(%arg0: i32) -> (i32, i32) {
    %c0_i32 = arith.constant 0 : i32
    %c0_i32_0 = arith.constant 0 : i32
    %c0_i32_1 = arith.constant 0 : i32
    return %c0_i32, %c0_i32_0 : i32, i32
  }
  func.func @transform_9(%arg0: i32) -> (i32, i32) {
    %c0_i32 = arith.constant 0 : i32
    %c0_i32_0 = arith.constant 0 : i32
    %c0_i32_1 = arith.constant 0 : i32
    return %c0_i32, %c0_i32_0 : i32, i32
  }
  func.func @transform_10(%arg0: i32) -> (i32, i32) {
    %c0_i32 = arith.constant 0 : i32
    %c0_i32_0 = arith.constant 0 : i32
    %c0_i32_1 = arith.constant 0 : i32
    return %c0_i32, %c0_i32_0 : i32, i32
  }
  func.func @transform_11(%arg0: i32) -> (i32, i32) {
    %c0_i32 = arith.constant 0 : i32
    %c0_i32_0 = arith.constant 0 : i32
    %c0_i32_1 = arith.constant 0 : i32
    return %c0_i32, %c0_i32_0 : i32, i32
  }
  func.func @transform_12(%arg0: i32) -> (i32, i32) {
    %c0_i32 = arith.constant 0 : i32
    %c0_i32_0 = arith.constant 0 : i32
    %c0_i32_1 = arith.constant 0 : i32
    return %c0_i32, %c0_i32_0 : i32, i32
  }
  func.func @transform_13(%arg0: i32) -> (i32, i32) {
    %c0_i32 = arith.constant 0 : i32
    %c0_i32_0 = arith.constant 0 : i32
    %c0_i32_1 = arith.constant 0 : i32
    return %c0_i32, %c0_i32_0 : i32, i32
  }
  func.func @transform_14(%arg0: i32) -> (i32, i32, i32) {
    %c0_i32 = arith.constant 0 : i32
    %c0_i32_0 = arith.constant 0 : i32
    %c0_i32_1 = arith.constant 0 : i32
    return %arg0, %c0_i32, %c0_i32_0 : i32, i32, i32
  }
  func.func @transform_15(%arg0: i32) -> (i32, i32, i32) {
    %c0_i32 = arith.constant 0 : i32
    %c0_i32_0 = arith.constant 0 : i32
    %c0_i32_1 = arith.constant 0 : i32
    return %arg0, %c0_i32, %c0_i32_0 : i32, i32, i32
  }
}

</mosaic_0001>

<llo_original>
// kernel: vae_forward.1
$region0: #{vae_forward.1}
  #allocation0 [shape = 'u32[]', space=smem, size = 0x4, offset = 0x4, fixed_abs, tag = 'smem constant byte address 0x4 - core index']
  #allocation1 [shape = 'u32[144,128]{1,0:T(1,128)}', space=vmem, size = 0x12000, scoped, tag = 'internal scratch']
  %s0 = inlined_call_operand.vmem [shape: f32[2,8,784], index: 0, kind: input, shape index: {}]
  %s1 = inlined_call_operand.vmem [shape: f32[2,8,2], index: 1, kind: input, shape index: {}]
  %s2 = inlined_call_operand.vmem [shape: bf16[784,512], index: 2, kind: input, shape index: {}]
  %s3 = inlined_call_operand.vmem [shape: f32[1,512], index: 3, kind: input, shape index: {}]
  %s4 = inlined_call_operand.vmem [shape: f32[1,512], index: 4, kind: input, shape index: {}]
  %s5 = inlined_call_operand.vmem [shape: f32[1,512], index: 5, kind: input, shape index: {}]
  %s6 = inlined_call_operand.vmem [shape: f32[512,4], index: 6, kind: input, shape index: {}]
  %s7 = inlined_call_operand.vmem [shape: f32[1,4], index: 7, kind: input, shape index: {}]
  %s8 = inlined_call_operand.vmem [shape: f32[2,512], index: 8, kind: input, shape index: {}]
  %s9 = inlined_call_operand.vmem [shape: f32[1,512], index: 9, kind: input, shape index: {}]
  %s10 = inlined_call_operand.vmem [shape: f32[1,512], index: 10, kind: input, shape index: {}]
  %s11 = inlined_call_operand.vmem [shape: f32[1,512], index: 11, kind: input, shape index: {}]
  %s12 = inlined_call_operand.vmem [shape: bf16[512,784], index: 12, kind: input, shape index: {}]
  %s13 = inlined_call_operand.vmem [shape: f32[1,784], index: 13, kind: input, shape index: {}]
  %s14 = inlined_call_operand.hbm [shape: f32[2,8,784], index: 14, kind: output, shape index: {0}]
  %s15 = inlined_call_operand.vmem [shape: f32[2,8,4], index: 15, kind: output, shape index: {1}]
  %16 = xla_tuple %s14, %s15
  %s17 = sld [smem:[#allocation0]]
  $region97: #{vae_forward.1} parent=0
    _
  %s19 = ssub.s32 1, %s17
  %s20 = scalar_select 0, %s19, %s17
  $region1: #{vae_forward.1} parent=0
    #allocation2 [shape = 'u8[57344]{0}', space=vmem, size = 0xe000, scoped, tag = 'output window, operand 0']
    #allocation3 [shape = 's32[2]{0}', space=sflag, size = 0x8, scoped, tag = 'scoped memory for vae_forward.1']
    %21 = vsyncpa [#allocation3], 0
    %s22 = scalar_lea.sflag [#allocation3], 1
    %23 = vsyncpa %s22, 0
    loop: start=0, step=1, limit=4
    $region2: #{vae_forward.1} parent=1 // loop_pre_header
      _
    $region3: #{vae_forward.1} parent=1 // loop_header
      %s25 = sphi 0, %s29
      %p26 = scmp.ge.s32.totalorder %s25, 4
      %s35 = sphi 0, %s37
      %s38 = sphi 0, %s35
      %s39 = sphi 0, %s38
      %s55 = sphi 0, %s39
      %s61 = sphi 0, %s63
      %s64 = sphi 0, %s61
      %s65 = sphi 0, %s64
      %s81 = sphi 0, %s65
      %s85 = sphi 0, %s85
      %s87 = sphi 0, %s85
      %s88 = sphi 0, %s87
      %s102 = sphi 0, %s88
      %s106 = sphi 0, %s106
      %s108 = sphi 0, %s106
      %s109 = sphi 0, %s108
      %s123 = sphi 0, %s109
      %s127 = sphi 0, %s127
      %s129 = sphi 0, %s127
      %s130 = sphi 0, %s129
      %s144 = sphi 0, %s130
      %s148 = sphi 0, %s148
      %s150 = sphi 0, %s148
      %s151 = sphi 0, %s150
      %s165 = sphi 0, %s151
      %s169 = sphi 0, %s169
      %s171 = sphi 0, %s169
      %s172 = sphi 0, %s171
      %s186 = sphi 0, %s172
      %s190 = sphi 0, %s190
      %s192 = sphi 0, %s190
      %s193 = sphi 0, %s192
      %s207 = sphi 0, %s193
      %s211 = sphi 0, %s211
      %s213 = sphi 0, %s211
      %s214 = sphi 0, %s213
      %s228 = sphi 0, %s214
      %s232 = sphi 0, %s232
      %s234 = sphi 0, %s232
      %s235 = sphi 0, %s234
      %s249 = sphi 0, %s235
      %s253 = sphi 0, %s253
      %s255 = sphi 0, %s253
      %s256 = sphi 0, %s255
      %s270 = sphi 0, %s256
      %s274 = sphi 0, %s274
      %s276 = sphi 0, %s274
      %s277 = sphi 0, %s276
      %s291 = sphi 0, %s277
      %s295 = sphi 0, %s295
      %s297 = sphi 0, %s295
      %s298 = sphi 0, %s297
      %s312 = sphi 0, %s298
      %s316 = sphi 0, %s316
      %s318 = sphi 0, %s316
      %s319 = sphi 0, %s318
      %s333 = sphi 0, %s319
      %s339 = sphi 0, %s341
      %s342 = sphi 0, %s339
      %s343 = sphi 0, %s342
      %s359 = sphi 0, %s343
      %s365 = sphi 0, %s367
      %s368 = sphi 0, %s365
      %s369 = sphi 0, %s368
      %s385 = sphi 0, %s369
    $region4: #{vae_forward.1} parent=1 // loop_header_branch
      %28 = sbr.rel (%p26) target = $region8
    $region5: #{vae_forward.1} parent=1 // loop_body
      %s30 = ssub.s32 %s25, 1
      %s31 = ssub.s32 %s25, 2
      %s32 = sadd.s32 %s25, 1
      %s33 = ssub.s32 %s25, %s32
      %p34 = scmp.eq.s32.totalorder %s33, 0
      %s36 = sadd.s32 %s35, 1
      %s37 = scalar_select %p34, %s35, %s36
      %p40 = pneg %p34
      %p41 = scmp.eq.s32.totalorder %s25, 1
      %p42 = por %p40, %p41
      %p43 = scmp.ne.s32.totalorder %s35, %s38
      %p44 = scmp.eq.s32.totalorder %s25, 0
      %p45 = por %p43, %p44
      %p46 = scmp.ne.s32.totalorder %s35, %s38
      %p47 = scmp.eq.s32.totalorder %s30, 1
      %p48 = por %p46, %p47
      %p49 = scmp.ne.s32.totalorder %s38, %s39
      %p50 = scmp.eq.s32.totalorder %s30, 0
      %p51 = por %p49, %p50
      %p52 = scmp.ne.s32.totalorder %s38, %s39
      %p53 = scmp.eq.s32.totalorder %s31, 1
      %p54 = por %p52, %p53
      %p56 = scmp.ne.s32.totalorder %s39, %s55
      %p57 = scmp.eq.s32.totalorder %s31, 0
      %p58 = por %p56, %p57
      %s59 = ssub.s32 %s25, %s32
      %p60 = scmp.eq.s32.totalorder %s59, 0
      %s62 = sadd.s32 %s61, 1
      %s63 = scalar_select %p60, %s61, %s62
      %p66 = pneg %p60
      %p67 = scmp.eq.s32.totalorder %s25, 1
      %p68 = por %p66, %p67
      %p69 = scmp.ne.s32.totalorder %s61, %s64
      %p70 = scmp.eq.s32.totalorder %s25, 0
      %p71 = por %p69, %p70
      %p72 = scmp.ne.s32.totalorder %s61, %s64
      %p73 = scmp.eq.s32.totalorder %s30, 1
      %p74 = por %p72, %p73
      %p75 = scmp.ne.s32.totalorder %s64, %s65
      %p76 = scmp.eq.s32.totalorder %s30, 0
      %p77 = por %p75, %p76
      %p78 = scmp.ne.s32.totalorder %s64, %s65
      %p79 = scmp.eq.s32.totalorder %s31, 1
      %p80 = por %p78, %p79
      %p82 = scmp.ne.s32.totalorder %s65, %s81
      %p83 = scmp.eq.s32.totalorder %s31, 0
      %p84 = por %p82, %p83
      %s86 = sadd.s32 %s85, 1
      %p89 = scmp.eq.s32.totalorder %s25, 1
      %p90 = scmp.ne.s32.totalorder %s85, %s87
      %p91 = scmp.eq.s32.totalorder %s25, 0
      %p92 = por %p90, %p91
      %p93 = scmp.ne.s32.totalorder %s85, %s87
      %p94 = scmp.eq.s32.totalorder %s30, 1
      %p95 = por %p93, %p94
      %p96 = scmp.ne.s32.totalorder %s87, %s88
      %p97 = scmp.eq.s32.totalorder %s30, 0
      %p98 = por %p96, %p97
      %p99 = scmp.ne.s32.totalorder %s87, %s88
      %p100 = scmp.eq.s32.totalorder %s31, 1
      %p101 = por %p99, %p100
      %p103 = scmp.ne.s32.totalorder %s88, %s102
      %p104 = scmp.eq.s32.totalorder %s31, 0
      %p105 = por %p103, %p104
      %s107 = sadd.s32 %s106, 1
      %p110 = scmp.eq.s32.totalorder %s25, 1
      %p111 = scmp.ne.s32.totalorder %s106, %s108
      %p112 = scmp.eq.s32.totalorder %s25, 0
      %p113 = por %p111, %p112
      %p114 = scmp.ne.s32.totalorder %s106, %s108
      %p115 = scmp.eq.s32.totalorder %s30, 1
      %p116 = por %p114, %p115
      %p117 = scmp.ne.s32.totalorder %s108, %s109
      %p118 = scmp.eq.s32.totalorder %s30, 0
      %p119 = por %p117, %p118
      %p120 = scmp.ne.s32.totalorder %s108, %s109
      %p121 = scmp.eq.s32.totalorder %s31, 1
      %p122 = por %p120, %p121
      %p124 = scmp.ne.s32.totalorder %s109, %s123
      %p125 = scmp.eq.s32.totalorder %s31, 0
      %p126 = por %p124, %p125
      %s128 = sadd.s32 %s127, 1
      %p131 = scmp.eq.s32.totalorder %s25, 1
      %p132 = scmp.ne.s32.totalorder %s127, %s129
      %p133 = scmp.eq.s32.totalorder %s25, 0
      %p134 = por %p132, %p133
      %p135 = scmp.ne.s32.totalorder %s127, %s129
      %p136 = scmp.eq.s32.totalorder %s30, 1
      %p137 = por %p135, %p136
      %p138 = scmp.ne.s32.totalorder %s129, %s130
      %p139 = scmp.eq.s32.totalorder %s30, 0
      %p140 = por %p138, %p139
      %p141 = scmp.ne.s32.totalorder %s129, %s130
      %p142 = scmp.eq.s32.totalorder %s31, 1
      %p143 = por %p141, %p142
      %p145 = scmp.ne.s32.totalorder %s130, %s144
      %p146 = scmp.eq.s32.totalorder %s31, 0
      %p147 = por %p145, %p146
      %s149 = sadd.s32 %s148, 1
      %p152 = scmp.eq.s32.totalorder %s25, 1
      %p153 = scmp.ne.s32.totalorder %s148, %s150
      %p154 = scmp.eq.s32.totalorder %s25, 0
      %p155 = por %p153, %p154
      %p156 = scmp.ne.s32.totalorder %s148, %s150
      %p157 = scmp.eq.s32.totalorder %s30, 1
      %p158 = por %p156, %p157
      %p159 = scmp.ne.s32.totalorder %s150, %s151
      %p160 = scmp.eq.s32.totalorder %s30, 0
      %p161 = por %p159, %p160
      %p162 = scmp.ne.s32.totalorder %s150, %s151
      %p163 = scmp.eq.s32.totalorder %s31, 1
      %p164 = por %p162, %p163
      %p166 = scmp.ne.s32.totalorder %s151, %s165
      %p167 = scmp.eq.s32.totalorder %s31, 0
      %p168 = por %p166, %p167
      %s170 = sadd.s32 %s169, 1
      %p173 = scmp.eq.s32.totalorder %s25, 1
      %p174 = scmp.ne.s32.totalorder %s169, %s171
      %p175 = scmp.eq.s32.totalorder %s25, 0
      %p176 = por %p174, %p175
      %p177 = scmp.ne.s32.totalorder %s169, %s171
      %p178 = scmp.eq.s32.totalorder %s30, 1
      %p179 = por %p177, %p178
      %p180 = scmp.ne.s32.totalorder %s171, %s172
      %p181 = scmp.eq.s32.totalorder %s30, 0
      %p182 = por %p180, %p181
      %p183 = scmp.ne.s32.totalorder %s171, %s172
      %p184 = scmp.eq.s32.totalorder %s31, 1
      %p185 = por %p183, %p184
      %p187 = scmp.ne.s32.totalorder %s172, %s186
      %p188 = scmp.eq.s32.totalorder %s31, 0
      %p189 = por %p187, %p188
      %s191 = sadd.s32 %s190, 1
      %p194 = scmp.eq.s32.totalorder %s25, 1
      %p195 = scmp.ne.s32.totalorder %s190, %s192
      %p196 = scmp.eq.s32.totalorder %s25, 0
      %p197 = por %p195, %p196
      %p198 = scmp.ne.s32.totalorder %s190, %s192
      %p199 = scmp.eq.s32.totalorder %s30, 1
      %p200 = por %p198, %p199
      %p201 = scmp.ne.s32.totalorder %s192, %s193
      %p202 = scmp.eq.s32.totalorder %s30, 0
      %p203 = por %p201, %p202
      %p204 = scmp.ne.s32.totalorder %s192, %s193
      %p205 = scmp.eq.s32.totalorder %s31, 1
      %p206 = por %p204, %p205
      %p208 = scmp.ne.s32.totalorder %s193, %s207
      %p209 = scmp.eq.s32.totalorder %s31, 0
      %p210 = por %p208, %p209
      %s212 = sadd.s32 %s211, 1
      %p215 = scmp.eq.s32.totalorder %s25, 1
      %p216 = scmp.ne.s32.totalorder %s211, %s213
      %p217 = scmp.eq.s32.totalorder %s25, 0
      %p218 = por %p216, %p217
      %p219 = scmp.ne.s32.totalorder %s211, %s213
      %p220 = scmp.eq.s32.totalorder %s30, 1
      %p221 = por %p219, %p220
      %p222 = scmp.ne.s32.totalorder %s213, %s214
      %p223 = scmp.eq.s32.totalorder %s30, 0
      %p224 = por %p222, %p223
      %p225 = scmp.ne.s32.totalorder %s213, %s214
      %p226 = scmp.eq.s32.totalorder %s31, 1
      %p227 = por %p225, %p226
      %p229 = scmp.ne.s32.totalorder %s214, %s228
      %p230 = scmp.eq.s32.totalorder %s31, 0
      %p231 = por %p229, %p230
      %s233 = sadd.s32 %s232, 1
      %p236 = scmp.eq.s32.totalorder %s25, 1
      %p237 = scmp.ne.s32.totalorder %s232, %s234
      %p238 = scmp.eq.s32.totalorder %s25, 0
      %p239 = por %p237, %p238
      %p240 = scmp.ne.s32.totalorder %s232, %s234
      %p241 = scmp.eq.s32.totalorder %s30, 1
      %p242 = por %p240, %p241
      %p243 = scmp.ne.s32.totalorder %s234, %s235
      %p244 = scmp.eq.s32.totalorder %s30, 0
      %p245 = por %p243, %p244
      %p246 = scmp.ne.s32.totalorder %s234, %s235
      %p247 = scmp.eq.s32.totalorder %s31, 1
      %p248 = por %p246, %p247
      %p250 = scmp.ne.s32.totalorder %s235, %s249
      %p251 = scmp.eq.s32.totalorder %s31, 0
      %p252 = por %p250, %p251
      %s254 = sadd.s32 %s253, 1
      %p257 = scmp.eq.s32.totalorder %s25, 1
      %p258 = scmp.ne.s32.totalorder %s253, %s255
      %p259 = scmp.eq.s32.totalorder %s25, 0
      %p260 = por %p258, %p259
      %p261 = scmp.ne.s32.totalorder %s253, %s255
      %p262 = scmp.eq.s32.totalorder %s30, 1
      %p263 = por %p261, %p262
      %p264 = scmp.ne.s32.totalorder %s255, %s256
      %p265 = scmp.eq.s32.totalorder %s30, 0
      %p266 = por %p264, %p265
      %p267 = scmp.ne.s32.totalorder %s255, %s256
      %p268 = scmp.eq.s32.totalorder %s31, 1
      %p269 = por %p267, %p268
      %p271 = scmp.ne.s32.totalorder %s256, %s270
      %p272 = scmp.eq.s32.totalorder %s31, 0
      %p273 = por %p271, %p272
      %s275 = sadd.s32 %s274, 1
      %p278 = scmp.eq.s32.totalorder %s25, 1
      %p279 = scmp.ne.s32.totalorder %s274, %s276
      %p280 = scmp.eq.s32.totalorder %s25, 0
      %p281 = por %p279, %p280
      %p282 = scmp.ne.s32.totalorder %s274, %s276
      %p283 = scmp.eq.s32.totalorder %s30, 1
      %p284 = por %p282, %p283
      %p285 = scmp.ne.s32.totalorder %s276, %s277
      %p286 = scmp.eq.s32.totalorder %s30, 0
      %p287 = por %p285, %p286
      %p288 = scmp.ne.s32.totalorder %s276, %s277
      %p289 = scmp.eq.s32.totalorder %s31, 1
      %p290 = por %p288, %p289
      %p292 = scmp.ne.s32.totalorder %s277, %s291
      %p293 = scmp.eq.s32.totalorder %s31, 0
      %p294 = por %p292, %p293
      %s296 = sadd.s32 %s295, 1
      %p299 = scmp.eq.s32.totalorder %s25, 1
      %p300 = scmp.ne.s32.totalorder %s295, %s297
      %p301 = scmp.eq.s32.totalorder %s25, 0
      %p302 = por %p300, %p301
      %p303 = scmp.ne.s32.totalorder %s295, %s297
      %p304 = scmp.eq.s32.totalorder %s30, 1
      %p305 = por %p303, %p304
      %p306 = scmp.ne.s32.totalorder %s297, %s298
      %p307 = scmp.eq.s32.totalorder %s30, 0
      %p308 = por %p306, %p307
      %p309 = scmp.ne.s32.totalorder %s297, %s298
      %p310 = scmp.eq.s32.totalorder %s31, 1
      %p311 = por %p309, %p310
      %p313 = scmp.ne.s32.totalorder %s298, %s312
      %p314 = scmp.eq.s32.totalorder %s31, 0
      %p315 = por %p313, %p314
      %s317 = sadd.s32 %s316, 1
      %p320 = scmp.eq.s32.totalorder %s25, 1
      %p321 = scmp.ne.s32.totalorder %s316, %s318
      %p322 = scmp.eq.s32.totalorder %s25, 0
      %p323 = por %p321, %p322
      %p324 = scmp.ne.s32.totalorder %s316, %s318
      %p325 = scmp.eq.s32.totalorder %s30, 1
      %p326 = por %p324, %p325
      %p327 = scmp.ne.s32.totalorder %s318, %s319
      %p328 = scmp.eq.s32.totalorder %s30, 0
      %p329 = por %p327, %p328
      %p330 = scmp.ne.s32.totalorder %s318, %s319
      %p331 = scmp.eq.s32.totalorder %s31, 1
      %p332 = por %p330, %p331
      %p334 = scmp.ne.s32.totalorder %s319, %s333
      %p335 = scmp.eq.s32.totalorder %s31, 0
      %p336 = por %p334, %p335
      %s337 = ssub.s32 %s25, %s32
      %p338 = scmp.eq.s32.totalorder %s337, 0
      %s340 = sadd.s32 %s339, 1
      %s341 = scalar_select %p338, %s339, %s340
      %p344 = pneg %p338
      %p345 = scmp.eq.s32.totalorder %s25, 1
      %p346 = por %p344, %p345
      %p347 = scmp.ne.s32.totalorder %s339, %s342
      %p348 = scmp.eq.s32.totalorder %s25, 0
      %p349 = por %p347, %p348
      %p350 = scmp.ne.s32.totalorder %s339, %s342
      %p351 = scmp.eq.s32.totalorder %s30, 1
      %p352 = por %p350, %p351
      %p353 = scmp.ne.s32.totalorder %s342, %s343
      %p354 = scmp.eq.s32.totalorder %s30, 0
      %p355 = por %p353, %p354
      %p356 = scmp.ne.s32.totalorder %s342, %s343
      %p357 = scmp.eq.s32.totalorder %s31, 1
      %p358 = por %p356, %p357
      %p360 = scmp.ne.s32.totalorder %s343, %s359
      %p361 = scmp.eq.s32.totalorder %s31, 0
      %p362 = por %p360, %p361
      %s363 = ssub.s32 %s25, %s32
      %p364 = scmp.eq.s32.totalorder %s363, 0
      %s366 = sadd.s32 %s365, 1
      %s367 = scalar_select %p364, %s365, %s366
      %p370 = pneg %p364
      %p371 = scmp.eq.s32.totalorder %s25, 1
      %p372 = por %p370, %p371
      %p373 = scmp.ne.s32.totalorder %s365, %s368
      %p374 = scmp.eq.s32.totalorder %s25, 0
      %p375 = por %p373, %p374
      %p376 = scmp.ne.s32.totalorder %s365, %s368
      %p377 = scmp.eq.s32.totalorder %s30, 1
      %p378 = por %p376, %p377
      %p379 = scmp.ne.s32.totalorder %s368, %s369
      %p380 = scmp.eq.s32.totalorder %s30, 0
      %p381 = por %p379, %p380
      %p382 = scmp.ne.s32.totalorder %s368, %s369
      %p383 = scmp.eq.s32.totalorder %s31, 1
      %p384 = por %p382, %p383
      %p386 = scmp.ne.s32.totalorder %s369, %s385
      %p387 = scmp.eq.s32.totalorder %s31, 0
      %p388 = por %p386, %p387
      %p389 = scmp.le.s32.totalorder 1, %s25
      %p390 = scmp.lt.s32.totalorder %s25, 3
      %p391 = pnand %p389, %p390
      %p392 = pneg %p391
      // Predicated region
      $region9: #{vae_forward.1} parent=5 // pred_check
        _
      $region10: #{vae_forward.1} parent=5 // pred_check_branch
        %394 = sbr.rel (%p391) target = $region12
      $region11: #{vae_forward.1} parent=5 // pred_region
        %s395 = ssub.s32 %s25, 1
        // Predicated region
        $region13: #{vae_forward.1} parent=11 // pred_check
          %p396 = pneg %p98
        $region14: #{vae_forward.1} parent=11 // pred_check_branch
          %398 = sbr.rel (%p396) target = $region16
        $region15: #{vae_forward.1} parent=11 // pred_region
          _
        $region16: #{vae_forward.1} parent=11 // pred_fallthru
          _
        // Predicated region
        $region17: #{vae_forward.1} parent=11 // pred_check
          %p399 = pneg %p119
        $region18: #{vae_forward.1} parent=11 // pred_check_branch
          %401 = sbr.rel (%p399) target = $region20
        $region19: #{vae_forward.1} parent=11 // pred_region
          _
        $region20: #{vae_forward.1} parent=11 // pred_fallthru
          _
        // Predicated region
        $region21: #{vae_forward.1} parent=11 // pred_check
          %p402 = pneg %p140
        $region22: #{vae_forward.1} parent=11 // pred_check_branch
          %404 = sbr.rel (%p402) target = $region24
        $region23: #{vae_forward.1} parent=11 // pred_region
          _
        $region24: #{vae_forward.1} parent=11 // pred_fallthru
          _
        // Predicated region
        $region25: #{vae_forward.1} parent=11 // pred_check
          %p405 = pneg %p161
        $region26: #{vae_forward.1} parent=11 // pred_check_branch
          %407 = sbr.rel (%p405) target = $region28
        $region27: #{vae_forward.1} parent=11 // pred_region
          _
        $region28: #{vae_forward.1} parent=11 // pred_fallthru
          _
        // Predicated region
        $region29: #{vae_forward.1} parent=11 // pred_check
          %p408 = pneg %p182
        $region30: #{vae_forward.1} parent=11 // pred_check_branch
          %410 = sbr.rel (%p408) target = $region32
        $region31: #{vae_forward.1} parent=11 // pred_region
          _
        $region32: #{vae_forward.1} parent=11 // pred_fallthru
          _
        // Predicated region
        $region33: #{vae_forward.1} parent=11 // pred_check
          %p411 = pneg %p203
        $region34: #{vae_forward.1} parent=11 // pred_check_branch
          %413 = sbr.rel (%p411) target = $region36
        $region35: #{vae_forward.1} parent=11 // pred_region
          _
        $region36: #{vae_forward.1} parent=11 // pred_fallthru
          _
        // Predicated region
        $region37: #{vae_forward.1} parent=11 // pred_check
          %p414 = pneg %p224
        $region38: #{vae_forward.1} parent=11 // pred_check_branch
          %416 = sbr.rel (%p414) target = $region40
        $region39: #{vae_forward.1} parent=11 // pred_region
          _
        $region40: #{vae_forward.1} parent=11 // pred_fallthru
          _
        // Predicated region
        $region41: #{vae_forward.1} parent=11 // pred_check
          %p417 = pneg %p245
        $region42: #{vae_forward.1} parent=11 // pred_check_branch
          %419 = sbr.rel (%p417) target = $region44
        $region43: #{vae_forward.1} parent=11 // pred_region
          _
        $region44: #{vae_forward.1} parent=11 // pred_fallthru
          _
        // Predicated region
        $region45: #{vae_forward.1} parent=11 // pred_check
          %p420 = pneg %p266
        $region46: #{vae_forward.1} parent=11 // pred_check_branch
          %422 = sbr.rel (%p420) target = $region48
        $region47: #{vae_forward.1} parent=11 // pred_region
          _
        $region48: #{vae_forward.1} parent=11 // pred_fallthru
          _
        // Predicated region
        $region49: #{vae_forward.1} parent=11 // pred_check
          %p423 = pneg %p287
        $region50: #{vae_forward.1} parent=11 // pred_check_branch
          %425 = sbr.rel (%p423) target = $region52
        $region51: #{vae_forward.1} parent=11 // pred_region
          _
        $region52: #{vae_forward.1} parent=11 // pred_fallthru
          _
        // Predicated region
        $region53: #{vae_forward.1} parent=11 // pred_check
          %p426 = pneg %p308
        $region54: #{vae_forward.1} parent=11 // pred_check_branch
          %428 = sbr.rel (%p426) target = $region56
        $region55: #{vae_forward.1} parent=11 // pred_region
          _
        $region56: #{vae_forward.1} parent=11 // pred_fallthru
          _
        // Predicated region
        $region57: #{vae_forward.1} parent=11 // pred_check
          %p429 = pneg %p329
        $region58: #{vae_forward.1} parent=11 // pred_check_branch
          %431 = sbr.rel (%p429) target = $region60
        $region59: #{vae_forward.1} parent=11 // pred_region
          _
        $region60: #{vae_forward.1} parent=11 // pred_fallthru
          _
      $region12: #{vae_forward.1} parent=5 // pred_fallthru
        _
      %p432 = scmp.lt.s32.totalorder %s25, 2
      // Predicated region
      $region61: #{vae_forward.1} parent=5 // pred_check
        %p433 = pneg %p432
      $region62: #{vae_forward.1} parent=5 // pred_check_branch
        %435 = sbr.rel (%p433) target = $region64
      $region63: #{vae_forward.1} parent=5 // pred_region
        // Predicated region
        $region65: #{vae_forward.1} parent=63 // pred_check
          %p436 = pneg %p45
        $region66: #{vae_forward.1} parent=63 // pred_check_branch
          %438 = sbr.rel (%p436) target = $region68
        $region67: #{vae_forward.1} parent=63 // pred_region
          %p439 = scmp.lt.s32.totalorder %s25, 1
          %s440 = scalar_select %p439, %s25, 1
          %s441 = smul.addr %s440, 7
          %s442 = smul.addr %s441, 8
          %s443 = scalar_lea.vmem %s0, %s442
        $region68: #{vae_forward.1} parent=63 // pred_fallthru
          _
        // Predicated region
        $region69: #{vae_forward.1} parent=63 // pred_check
          %p444 = pneg %p71
        $region70: #{vae_forward.1} parent=63 // pred_check_branch
          %446 = sbr.rel (%p444) target = $region72
        $region71: #{vae_forward.1} parent=63 // pred_region
          %p447 = scmp.lt.s32.totalorder %s25, 1
          %s448 = scalar_select %p447, %s25, 1
          %s449 = smul.addr %s448, 8
          %s450 = scalar_lea.vmem %s1, %s449
        $region72: #{vae_forward.1} parent=63 // pred_fallthru
          _
      $region64: #{vae_forward.1} parent=5 // pred_fallthru
        _
      %p451 = scmp.le.s32.totalorder 1, %s25
      %p452 = scmp.lt.s32.totalorder %s25, 3
      %p453 = pnand %p451, %p452
      %p454 = pneg %p453
      // Predicated region
      $region73: #{vae_forward.1} parent=5 // pred_check
        _
      $region74: #{vae_forward.1} parent=5 // pred_check_branch
        %456 = sbr.rel (%p453) target = $region76
      $region75: #{vae_forward.1} parent=5 // pred_region
        %s457 = ssub.s32 %s25, 1
        %p458 = scmp.lt.s32.totalorder %s30, 1
        %s459 = scalar_select %p458, %s30, 1
        %s460 = smul.addr %s459, 7
        %s461 = smul.addr %s460, 8
        %s462 = scalar_lea.vmem %s0, %s461
        %p463 = pneg %p51
        %p464 = pneg %p48
        %p465 = scmp.lt.s32.totalorder %s30, 1
        %s466 = scalar_select %p465, %s30, 1
        %s467 = smul.addr %s466, 8
        %s468 = scalar_lea.vmem %s1, %s467
        %p469 = pneg %p77
        %p470 = pneg %p74
        %p471 = pneg %p98
        %p472 = pneg %p95
        %p473 = pneg %p119
        %p474 = pneg %p116
        %p475 = pneg %p140
        %p476 = pneg %p137
        %p477 = pneg %p161
        %p478 = pneg %p158
        %p479 = pneg %p182
        %p480 = pneg %p179
        %p481 = pneg %p203
        %p482 = pneg %p200
        %p483 = pneg %p224
        %p484 = pneg %p221
        %p485 = pneg %p245
        %p486 = pneg %p242
        %p487 = pneg %p266
        %p488 = pneg %p263
        %p489 = pneg %p287
        %p490 = pneg %p284
        %p491 = pneg %p308
        %p492 = pneg %p305
        %p493 = pneg %p329
        %p494 = pneg %p326
        %p495 = pneg %p355
        %p496 = pneg %p352
        %s497 = sand.u32 %s342, 1
        %s498 = scalar_lea.sflag [#allocation3], %s497
        %s499 = sand.u32 %s342, 1
        %s500 = smul.addr %s499, 56
        %s501 = scalar_lea.vmem [#allocation2], %s500
        %p502 = pneg %p381
        %p503 = pneg %p378
        %p504 = scmp.lt.s32.totalorder %s30, 1
        %s505 = scalar_select %p504, %s30, 1
        %s506 = smul.addr %s505, 8
        %s507 = scalar_lea.vmem %s15, %s506
        %p508 = scmp.lt.s32.totalorder %s30, 1
        %s509 = scalar_select %p508, %s30, 1
        %s510 = smul.addr %s509, 7
        %s511 = smul.addr %s510, 8
        %s512 = scalar_lea.vmem %s0, %s511
        %p513 = scmp.lt.s32.totalorder %s30, 1
        %s514 = scalar_select %p513, %s30, 1
        %s515 = smul.addr %s514, 8
        %s516 = scalar_lea.vmem %s1, %s515
        %p517 = scmp.lt.s32.totalorder %s30, 1
        %s518 = scalar_select %p517, %s30, 1
        %s519 = smul.addr %s518, 8
        %s520 = scalar_lea.vmem %s15, %s519
        %v521 = vld [vmem:[%s512] sm:$0xff]
        %v522 = vld [vmem:[%s512 + $0x8] sm:$0xff]
        %v523 = vld [vmem:[%s512 + $0x10] sm:$0xff]
        %v524 = vld [vmem:[%s512 + $0x18] sm:$0xff]
        %v525 = vld [vmem:[%s512 + $0x20] sm:$0xff]
        %v526 = vld [vmem:[%s512 + $0x28] sm:$0xff]
        %v527 = vld [vmem:[%s512 + $0x30] sm:$0xff]
        %v528 = vld [vmem:[%s2] sm:$0xff]
        %v529 = vld [vmem:[%s2 + $0x8] sm:$0xff]
        %v530 = vld [vmem:[%s2 + $0x10] sm:$0xff]
        %v531 = vld [vmem:[%s2 + $0x18] sm:$0xff]
        %v532 = vld [vmem:[%s2 + $0x20] sm:$0xff]
        %v533 = vld [vmem:[%s2 + $0x28] sm:$0xff]
        %v534 = vld [vmem:[%s2 + $0x30] sm:$0xff]
        %v535 = vld [vmem:[%s2 + $0x38] sm:$0xff]
        %v536 = vld [vmem:[%s2 + $0x40] sm:$0xff]
        %v537 = vld [vmem:[%s2 + $0x48] sm:$0xff]
        %v538 = vld [vmem:[%s2 + $0x50] sm:$0xff]
        %v539 = vld [vmem:[%s2 + $0x58] sm:$0xff]
        %v540 = vld [vmem:[%s2 + $0x60] sm:$0xff]
        %v541 = vld [vmem:[%s2 + $0x68] sm:$0xff]
        %v542 = vld [vmem:[%s2 + $0x70] sm:$0xff]
        %v543 = vld [vmem:[%s2 + $0x78] sm:$0xff]
        %v544 = vld [vmem:[%s2 + $0x80] sm:$0xff]
        %v545 = vld [vmem:[%s2 + $0x88] sm:$0xff]
        %v546 = vld [vmem:[%s2 + $0x90] sm:$0xff]
        %v547 = vld [vmem:[%s2 + $0x98] sm:$0xff]
        %v548 = vld [vmem:[%s2 + $0xa0] sm:$0xff]
        %v549 = vld [vmem:[%s2 + $0xa8] sm:$0xff]
        %v550 = vld [vmem:[%s2 + $0xb0] sm:$0xff]
        %v551 = vld [vmem:[%s2 + $0xb8] sm:$0xff]
        %v552 = vld [vmem:[%s2 + $0xc0] sm:$0xff]
        %v553 = vld [vmem:[%s2 + $0xc8] sm:$0xff]
        %v554 = vld [vmem:[%s2 + $0xd0] sm:$0xff]
        %v555 = vld [vmem:[%s2 + $0xd8] sm:$0xff]
        %v556 = vld [vmem:[%s2 + $0xe0] sm:$0xff]
        %v557 = vld [vmem:[%s2 + $0xe8] sm:$0xff]
        %v558 = vld [vmem:[%s2 + $0xf0] sm:$0xff]
        %v559 = vld [vmem:[%s2 + $0xf8] sm:$0xff]
        %v560 = vld [vmem:[%s2 + $0x100] sm:$0xff]
        %v561 = vld [vmem:[%s2 + $0x108] sm:$0xff]
        %v562 = vld [vmem:[%s2 + $0x110] sm:$0xff]
        %v563 = vld [vmem:[%s2 + $0x118] sm:$0xff]
        %v564 = vld [vmem:[%s2 + $0x120] sm:$0xff]
        %v565 = vld [vmem:[%s2 + $0x128] sm:$0xff]
        %v566 = vld [vmem:[%s2 + $0x130] sm:$0xff]
        %v567 = vld [vmem:[%s2 + $0x138] sm:$0xff]
        %v568 = vld [vmem:[%s2 + $0x140] sm:$0xff]
        %v569 = vld [vmem:[%s2 + $0x148] sm:$0xff]
        %v570 = vld [vmem:[%s2 + $0x150] sm:$0xff]
        %v571 = vld [vmem:[%s2 + $0x158] sm:$0xff]
        %v572 = vld [vmem:[%s2 + $0x160] sm:$0xff]
        %v573 = vld [vmem:[%s2 + $0x168] sm:$0xff]
        %v574 = vld [vmem:[%s2 + $0x170] sm:$0xff]
        %v575 = vld [vmem:[%s2 + $0x178] sm:$0xff]
        %v576 = vld [vmem:[%s2 + $0x180] sm:$0xff]
        %v577 = vld [vmem:[%s2 + $0x188] sm:$0xff]
        %v578 = vld [vmem:[%s2 + $0x190] sm:$0xff]
        %v579 = vld [vmem:[%s2 + $0x198] sm:$0xff]
        %v580 = vld [vmem:[%s2 + $0x1a0] sm:$0xff]
        %v581 = vld [vmem:[%s2 + $0x1a8] sm:$0xff]
        %v582 = vld [vmem:[%s2 + $0x1b0] sm:$0xff]
        %v583 = vld [vmem:[%s2 + $0x1b8] sm:$0xff]
        %v584 = vld [vmem:[%s2 + $0x1c0] sm:$0xff]
        %v585 = vld [vmem:[%s2 + $0x1c8] sm:$0xff]
        %v586 = vld [vmem:[%s2 + $0x1d0] sm:$0xff]
        %v587 = vld [vmem:[%s2 + $0x1d8] sm:$0xff]
        %v588 = vld [vmem:[%s2 + $0x1e0] sm:$0xff]
        %v589 = vld [vmem:[%s2 + $0x1e8] sm:$0xff]
        %v590 = vld [vmem:[%s2 + $0x1f0] sm:$0xff]
        %v591 = vld [vmem:[%s2 + $0x1f8] sm:$0xff]
        %v592 = vld [vmem:[%s2 + $0x200] sm:$0xff]
        %v593 = vld [vmem:[%s2 + $0x208] sm:$0xff]
        %v594 = vld [vmem:[%s2 + $0x210] sm:$0xff]
        %v595 = vld [vmem:[%s2 + $0x218] sm:$0xff]
        %v596 = vld [vmem:[%s2 + $0x220] sm:$0xff]
        %v597 = vld [vmem:[%s2 + $0x228] sm:$0xff]
        %v598 = vld [vmem:[%s2 + $0x230] sm:$0xff]
        %v599 = vld [vmem:[%s2 + $0x238] sm:$0xff]
        %v600 = vld [vmem:[%s2 + $0x240] sm:$0xff]
        %v601 = vld [vmem:[%s2 + $0x248] sm:$0xff]
        %v602 = vld [vmem:[%s2 + $0x250] sm:$0xff]
        %v603 = vld [vmem:[%s2 + $0x258] sm:$0xff]
        %v604 = vld [vmem:[%s2 + $0x260] sm:$0xff]
        %v605 = vld [vmem:[%s2 + $0x268] sm:$0xff]
        %v606 = vld [vmem:[%s2 + $0x270] sm:$0xff]
        %v607 = vld [vmem:[%s2 + $0x278] sm:$0xff]
        %v608 = vld [vmem:[%s2 + $0x280] sm:$0xff]
        %v609 = vld [vmem:[%s2 + $0x288] sm:$0xff]
        %v610 = vld [vmem:[%s2 + $0x290] sm:$0xff]
        %v611 = vld [vmem:[%s2 + $0x298] sm:$0xff]
        %v612 = vld [vmem:[%s2 + $0x2a0] sm:$0xff]
        %v613 = vld [vmem:[%s2 + $0x2a8] sm:$0xff]
        %v614 = vld [vmem:[%s2 + $0x2b0] sm:$0xff]
        %v615 = vld [vmem:[%s2 + $0x2b8] sm:$0xff]
        %v616 = vld [vmem:[%s2 + $0x2c0] sm:$0xff]
        %v617 = vld [vmem:[%s2 + $0x2c8] sm:$0xff]
        %v618 = vld [vmem:[%s2 + $0x2d0] sm:$0xff]
        %v619 = vld [vmem:[%s2 + $0x2d8] sm:$0xff]
        %v620 = vld [vmem:[%s2 + $0x2e0] sm:$0xff]
        %v621 = vld [vmem:[%s2 + $0x2e8] sm:$0xff]
        %v622 = vld [vmem:[%s2 + $0x2f0] sm:$0xff]
        %v623 = vld [vmem:[%s2 + $0x2f8] sm:$0xff]
        %v624 = vld [vmem:[%s2 + $0x300] sm:$0xff]
        %v625 = vld [vmem:[%s2 + $0x308] sm:$0xff]
        %v626 = vld [vmem:[%s2 + $0x310] sm:$0xff]
        %v627 = vld [vmem:[%s2 + $0x318] sm:$0xff]
        %v628 = vld [vmem:[%s2 + $0x320] sm:$0xff]
        %v629 = vld [vmem:[%s2 + $0x328] sm:$0xff]
        %v630 = vld [vmem:[%s2 + $0x330] sm:$0xff]
        %v631 = vld [vmem:[%s2 + $0x338] sm:$0xff]
        %v632 = vld [vmem:[%s2 + $0x340] sm:$0xff]
        %v633 = vld [vmem:[%s2 + $0x348] sm:$0xff]
        %v634 = vld [vmem:[%s2 + $0x350] sm:$0xff]
        %v635 = vld [vmem:[%s2 + $0x358] sm:$0xff]
        %v636 = vld [vmem:[%s2 + $0x360] sm:$0xff]
        %v637 = vld [vmem:[%s2 + $0x368] sm:$0xff]
        %v638 = vld [vmem:[%s2 + $0x370] sm:$0xff]
        %v639 = vld [vmem:[%s2 + $0x378] sm:$0xff]
        %v640 = vld [vmem:[%s2 + $0x380] sm:$0xff]
        %v641 = vld [vmem:[%s2 + $0x388] sm:$0xff]
        %v642 = vld [vmem:[%s2 + $0x390] sm:$0xff]
        %v643 = vld [vmem:[%s2 + $0x398] sm:$0xff]
        %v644 = vld [vmem:[%s2 + $0x3a0] sm:$0xff]
        %v645 = vld [vmem:[%s2 + $0x3a8] sm:$0xff]
        %v646 = vld [vmem:[%s2 + $0x3b0] sm:$0xff]
        %v647 = vld [vmem:[%s2 + $0x3b8] sm:$0xff]
        %v648 = vld [vmem:[%s2 + $0x3c0] sm:$0xff]
        %v649 = vld [vmem:[%s2 + $0x3c8] sm:$0xff]
        %v650 = vld [vmem:[%s2 + $0x3d0] sm:$0xff]
        %v651 = vld [vmem:[%s2 + $0x3d8] sm:$0xff]
        %v652 = vld [vmem:[%s2 + $0x3e0] sm:$0xff]
        %v653 = vld [vmem:[%s2 + $0x3e8] sm:$0xff]
        %v654 = vld [vmem:[%s2 + $0x3f0] sm:$0xff]
        %v655 = vld [vmem:[%s2 + $0x3f8] sm:$0xff]
        %v656 = vld [vmem:[%s2 + $0x400] sm:$0xff]
        %v657 = vld [vmem:[%s2 + $0x408] sm:$0xff]
        %v658 = vld [vmem:[%s2 + $0x410] sm:$0xff]
        %v659 = vld [vmem:[%s2 + $0x418] sm:$0xff]
        %v660 = vld [vmem:[%s2 + $0x420] sm:$0xff]
        %v661 = vld [vmem:[%s2 + $0x428] sm:$0xff]
        %v662 = vld [vmem:[%s2 + $0x430] sm:$0xff]
        %v663 = vld [vmem:[%s2 + $0x438] sm:$0xff]
        %v664 = vld [vmem:[%s2 + $0x440] sm:$0xff]
        %v665 = vld [vmem:[%s2 + $0x448] sm:$0xff]
        %v666 = vld [vmem:[%s2 + $0x450] sm:$0xff]
        %v667 = vld [vmem:[%s2 + $0x458] sm:$0xff]
        %v668 = vld [vmem:[%s2 + $0x460] sm:$0xff]
        %v669 = vld [vmem:[%s2 + $0x468] sm:$0xff]
        %v670 = vld [vmem:[%s2 + $0x470] sm:$0xff]
        %v671 = vld [vmem:[%s2 + $0x478] sm:$0xff]
        %v672 = vld [vmem:[%s2 + $0x480] sm:$0xff]
        %v673 = vld [vmem:[%s2 + $0x488] sm:$0xff]
        %v674 = vld [vmem:[%s2 + $0x490] sm:$0xff]
        %v675 = vld [vmem:[%s2 + $0x498] sm:$0xff]
        %v676 = vld [vmem:[%s2 + $0x4a0] sm:$0xff]
        %v677 = vld [vmem:[%s2 + $0x4a8] sm:$0xff]
        %v678 = vld [vmem:[%s2 + $0x4b0] sm:$0xff]
        %v679 = vld [vmem:[%s2 + $0x4b8] sm:$0xff]
        %v680 = vld [vmem:[%s2 + $0x4c0] sm:$0xff]
        %v681 = vld [vmem:[%s2 + $0x4c8] sm:$0xff]
        %v682 = vld [vmem:[%s2 + $0x4d0] sm:$0xff]
        %v683 = vld [vmem:[%s2 + $0x4d8] sm:$0xff]
        %v684 = vld [vmem:[%s2 + $0x4e0] sm:$0xff]
        %v685 = vld [vmem:[%s2 + $0x4e8] sm:$0xff]
        %v686 = vld [vmem:[%s2 + $0x4f0] sm:$0xff]
        %v687 = vld [vmem:[%s2 + $0x4f8] sm:$0xff]
        %v688 = vld [vmem:[%s2 + $0x500] sm:$0xff]
        %v689 = vld [vmem:[%s2 + $0x508] sm:$0xff]
        %v690 = vld [vmem:[%s2 + $0x510] sm:$0xff]
        %v691 = vld [vmem:[%s2 + $0x518] sm:$0xff]
        %v692 = vld [vmem:[%s2 + $0x520] sm:$0xff]
        %v693 = vld [vmem:[%s2 + $0x528] sm:$0xff]
        %v694 = vld [vmem:[%s2 + $0x530] sm:$0xff]
        %v695 = vld [vmem:[%s2 + $0x538] sm:$0xff]
        %v696 = vld [vmem:[%s2 + $0x540] sm:$0xff]
        %v697 = vld [vmem:[%s2 + $0x548] sm:$0xff]
        %v698 = vld [vmem:[%s2 + $0x550] sm:$0xff]
        %v699 = vld [vmem:[%s2 + $0x558] sm:$0xff]
        %v700 = vld [vmem:[%s2 + $0x560] sm:$0xff]
        %v701 = vld [vmem:[%s2 + $0x568] sm:$0xff]
        %v702 = vld [vmem:[%s2 + $0x570] sm:$0xff]
        %v703 = vld [vmem:[%s2 + $0x578] sm:$0xff]
        %v704 = vld [vmem:[%s2 + $0x580] sm:$0xff]
        %v705 = vld [vmem:[%s2 + $0x588] sm:$0xff]
        %v706 = vld [vmem:[%s2 + $0x590] sm:$0xff]
        %v707 = vld [vmem:[%s2 + $0x598] sm:$0xff]
        %v708 = vld [vmem:[%s2 + $0x5a0] sm:$0xff]
        %v709 = vld [vmem:[%s2 + $0x5a8] sm:$0xff]
        %v710 = vld [vmem:[%s2 + $0x5b0] sm:$0xff]
        %v711 = vld [vmem:[%s2 + $0x5b8] sm:$0xff]
        %v712 = vld [vmem:[%s2 + $0x5c0] sm:$0xff]
        %v713 = vld [vmem:[%s2 + $0x5c8] sm:$0xff]
        %v714 = vld [vmem:[%s2 + $0x5d0] sm:$0xff]
        %v715 = vld [vmem:[%s2 + $0x5d8] sm:$0xff]
        %v716 = vld [vmem:[%s2 + $0x5e0] sm:$0xff]
        %v717 = vld [vmem:[%s2 + $0x5e8] sm:$0xff]
        %v718 = vld [vmem:[%s2 + $0x5f0] sm:$0xff]
        %v719 = vld [vmem:[%s2 + $0x5f8] sm:$0xff]
        %v720 = vld [vmem:[%s2 + $0x600] sm:$0xff]
        %v721 = vld [vmem:[%s2 + $0x608] sm:$0xff]
        %v722 = vld [vmem:[%s2 + $0x610] sm:$0xff]
        %v723 = vld [vmem:[%s2 + $0x618] sm:$0xff]
        %v724 = vunpack.c.l.bf16 %v528
        %v725 = vunpack.c.h.bf16 %v528
        %v726 = vunpack.c.l.bf16 %v529
        %v727 = vunpack.c.h.bf16 %v529
        %v728 = vunpack.c.l.bf16 %v530
        %v729 = vunpack.c.h.bf16 %v530
        %v730 = vunpack.c.l.bf16 %v531
        %v731 = vunpack.c.h.bf16 %v531
        %v732 = vunpack.c.l.bf16 %v532
        %v733 = vunpack.c.h.bf16 %v532
        %v734 = vunpack.c.l.bf16 %v533
        %v735 = vunpack.c.h.bf16 %v533
        %v736 = vunpack.c.l.bf16 %v534
        %v737 = vunpack.c.h.bf16 %v534
        %v738 = vunpack.c.l.bf16 %v535
        %v739 = vunpack.c.h.bf16 %v535
        %v740 = vunpack.c.l.bf16 %v536
        %v741 = vunpack.c.h.bf16 %v536
        %v742 = vunpack.c.l.bf16 %v537
        %v743 = vunpack.c.h.bf16 %v537
        %v744 = vunpack.c.l.bf16 %v538
        %v745 = vunpack.c.h.bf16 %v538
        %v746 = vunpack.c.l.bf16 %v539
        %v747 = vunpack.c.h.bf16 %v539
        %v748 = vunpack.c.l.bf16 %v540
        %v749 = vunpack.c.h.bf16 %v540
        %v750 = vunpack.c.l.bf16 %v541
        %v751 = vunpack.c.h.bf16 %v541
        %v752 = vunpack.c.l.bf16 %v542
        %v753 = vunpack.c.h.bf16 %v542
        %v754 = vunpack.c.l.bf16 %v543
        %v755 = vunpack.c.h.bf16 %v543
        %v756 = vunpack.c.l.bf16 %v544
        %v757 = vunpack.c.h.bf16 %v544
        %v758 = vunpack.c.l.bf16 %v545
        %v759 = vunpack.c.h.bf16 %v545
        %v760 = vunpack.c.l.bf16 %v546
        %v761 = vunpack.c.h.bf16 %v546
        %v762 = vunpack.c.l.bf16 %v547
        %v763 = vunpack.c.h.bf16 %v547
        %v764 = vunpack.c.l.bf16 %v548
        %v765 = vunpack.c.h.bf16 %v548
        %v766 = vunpack.c.l.bf16 %v549
        %v767 = vunpack.c.h.bf16 %v549
        %v768 = vunpack.c.l.bf16 %v550
        %v769 = vunpack.c.h.bf16 %v550
        %v770 = vunpack.c.l.bf16 %v551
        %v771 = vunpack.c.h.bf16 %v551
        %v772 = vunpack.c.l.bf16 %v552
        %v773 = vunpack.c.h.bf16 %v552
        %v774 = vunpack.c.l.bf16 %v553
        %v775 = vunpack.c.h.bf16 %v553
        %v776 = vunpack.c.l.bf16 %v554
        %v777 = vunpack.c.h.bf16 %v554
        %v778 = vunpack.c.l.bf16 %v555
        %v779 = vunpack.c.h.bf16 %v555
        %v780 = vunpack.c.l.bf16 %v556
        %v781 = vunpack.c.h.bf16 %v556
        %v782 = vunpack.c.l.bf16 %v557
        %v783 = vunpack.c.h.bf16 %v557
        %v784 = vunpack.c.l.bf16 %v558
        %v785 = vunpack.c.h.bf16 %v558
        %v786 = vunpack.c.l.bf16 %v559
        %v787 = vunpack.c.h.bf16 %v559
        %v788 = vunpack.c.l.bf16 %v560
        %v789 = vunpack.c.h.bf16 %v560
        %v790 = vunpack.c.l.bf16 %v561
        %v791 = vunpack.c.h.bf16 %v561
        %v792 = vunpack.c.l.bf16 %v562
        %v793 = vunpack.c.h.bf16 %v562
        %v794 = vunpack.c.l.bf16 %v563
        %v795 = vunpack.c.h.bf16 %v563
        %v796 = vunpack.c.l.bf16 %v564
        %v797 = vunpack.c.h.bf16 %v564
        %v798 = vunpack.c.l.bf16 %v565
        %v799 = vunpack.c.h.bf16 %v565
        %v800 = vunpack.c.l.bf16 %v566
        %v801 = vunpack.c.h.bf16 %v566
        %v802 = vunpack.c.l.bf16 %v567
        %v803 = vunpack.c.h.bf16 %v567
        %v804 = vunpack.c.l.bf16 %v568
        %v805 = vunpack.c.h.bf16 %v568
        %v806 = vunpack.c.l.bf16 %v569
        %v807 = vunpack.c.h.bf16 %v569
        %v808 = vunpack.c.l.bf16 %v570
        %v809 = vunpack.c.h.bf16 %v570
        %v810 = vunpack.c.l.bf16 %v571
        %v811 = vunpack.c.h.bf16 %v571
        %v812 = vunpack.c.l.bf16 %v572
        %v813 = vunpack.c.h.bf16 %v572
        %v814 = vunpack.c.l.bf16 %v573
        %v815 = vunpack.c.h.bf16 %v573
        %v816 = vunpack.c.l.bf16 %v574
        %v817 = vunpack.c.h.bf16 %v574
        %v818 = vunpack.c.l.bf16 %v575
        %v819 = vunpack.c.h.bf16 %v575
        %v820 = vunpack.c.l.bf16 %v576
        %v821 = vunpack.c.h.bf16 %v576
        %v822 = vunpack.c.l.bf16 %v577
        %v823 = vunpack.c.h.bf16 %v577
        %v824 = vunpack.c.l.bf16 %v578
        %v825 = vunpack.c.h.bf16 %v578
        %v826 = vunpack.c.l.bf16 %v579
        %v827 = vunpack.c.h.bf16 %v579
        %v828 = vunpack.c.l.bf16 %v580
        %v829 = vunpack.c.h.bf16 %v580
        %v830 = vunpack.c.l.bf16 %v581
        %v831 = vunpack.c.h.bf16 %v581
        %v832 = vunpack.c.l.bf16 %v582
        %v833 = vunpack.c.h.bf16 %v582
        %v834 = vunpack.c.l.bf16 %v583
        %v835 = vunpack.c.h.bf16 %v583
        %v836 = vunpack.c.l.bf16 %v584
        %v837 = vunpack.c.h.bf16 %v584
        %v838 = vunpack.c.l.bf16 %v585
        %v839 = vunpack.c.h.bf16 %v585
        %v840 = vunpack.c.l.bf16 %v586
        %v841 = vunpack.c.h.bf16 %v586
        %v842 = vunpack.c.l.bf16 %v587
        %v843 = vunpack.c.h.bf16 %v587
        %v844 = vunpack.c.l.bf16 %v588
        %v845 = vunpack.c.h.bf16 %v588
        %v846 = vunpack.c.l.bf16 %v589
        %v847 = vunpack.c.h.bf16 %v589
        %v848 = vunpack.c.l.bf16 %v590
        %v849 = vunpack.c.h.bf16 %v590
        %v850 = vunpack.c.l.bf16 %v591
        %v851 = vunpack.c.h.bf16 %v591
        %v852 = vunpack.c.l.bf16 %v592
        %v853 = vunpack.c.h.bf16 %v592
        %v854 = vunpack.c.l.bf16 %v593
        %v855 = vunpack.c.h.bf16 %v593
        %v856 = vunpack.c.l.bf16 %v594
        %v857 = vunpack.c.h.bf16 %v594
        %v858 = vunpack.c.l.bf16 %v595
        %v859 = vunpack.c.h.bf16 %v595
        %v860 = vunpack.c.l.bf16 %v596
        %v861 = vunpack.c.h.bf16 %v596
        %v862 = vunpack.c.l.bf16 %v597
        %v863 = vunpack.c.h.bf16 %v597
        %v864 = vunpack.c.l.bf16 %v598
        %v865 = vunpack.c.h.bf16 %v598
        %v866 = vunpack.c.l.bf16 %v599
        %v867 = vunpack.c.h.bf16 %v599
        %v868 = vunpack.c.l.bf16 %v600
        %v869 = vunpack.c.h.bf16 %v600
        %v870 = vunpack.c.l.bf16 %v601
        %v871 = vunpack.c.h.bf16 %v601
        %v872 = vunpack.c.l.bf16 %v602
        %v873 = vunpack.c.h.bf16 %v602
        %v874 = vunpack.c.l.bf16 %v603
        %v875 = vunpack.c.h.bf16 %v603
        %v876 = vunpack.c.l.bf16 %v604
        %v877 = vunpack.c.h.bf16 %v604
        %v878 = vunpack.c.l.bf16 %v605
        %v879 = vunpack.c.h.bf16 %v605
        %v880 = vunpack.c.l.bf16 %v606
        %v881 = vunpack.c.h.bf16 %v606
        %v882 = vunpack.c.l.bf16 %v607
        %v883 = vunpack.c.h.bf16 %v607
        %v884 = vunpack.c.l.bf16 %v608
        %v885 = vunpack.c.h.bf16 %v608
        %v886 = vunpack.c.l.bf16 %v609
        %v887 = vunpack.c.h.bf16 %v609
        %v888 = vunpack.c.l.bf16 %v610
        %v889 = vunpack.c.h.bf16 %v610
        %v890 = vunpack.c.l.bf16 %v611
        %v891 = vunpack.c.h.bf16 %v611
        %v892 = vunpack.c.l.bf16 %v612
        %v893 = vunpack.c.h.bf16 %v612
        %v894 = vunpack.c.l.bf16 %v613
        %v895 = vunpack.c.h.bf16 %v613
        %v896 = vunpack.c.l.bf16 %v614
        %v897 = vunpack.c.h.bf16 %v614
        %v898 = vunpack.c.l.bf16 %v615
        %v899 = vunpack.c.h.bf16 %v615
        %v900 = vunpack.c.l.bf16 %v616
        %v901 = vunpack.c.h.bf16 %v616
        %v902 = vunpack.c.l.bf16 %v617
        %v903 = vunpack.c.h.bf16 %v617
        %v904 = vunpack.c.l.bf16 %v618
        %v905 = vunpack.c.h.bf16 %v618
        %v906 = vunpack.c.l.bf16 %v619
        %v907 = vunpack.c.h.bf16 %v619
        %v908 = vunpack.c.l.bf16 %v620
        %v909 = vunpack.c.h.bf16 %v620
        %v910 = vunpack.c.l.bf16 %v621
        %v911 = vunpack.c.h.bf16 %v621
        %v912 = vunpack.c.l.bf16 %v622
        %v913 = vunpack.c.h.bf16 %v622
        %v914 = vunpack.c.l.bf16 %v623
        %v915 = vunpack.c.h.bf16 %v623
        %v916 = vunpack.c.l.bf16 %v624
        %v917 = vunpack.c.h.bf16 %v624
        %v918 = vunpack.c.l.bf16 %v625
        %v919 = vunpack.c.h.bf16 %v625
        %v920 = vunpack.c.l.bf16 %v626
        %v921 = vunpack.c.h.bf16 %v626
        %v922 = vunpack.c.l.bf16 %v627
        %v923 = vunpack.c.h.bf16 %v627
        %v924 = vunpack.c.l.bf16 %v628
        %v925 = vunpack.c.h.bf16 %v628
        %v926 = vunpack.c.l.bf16 %v629
        %v927 = vunpack.c.h.bf16 %v629
        %v928 = vunpack.c.l.bf16 %v630
        %v929 = vunpack.c.h.bf16 %v630
        %v930 = vunpack.c.l.bf16 %v631
        %v931 = vunpack.c.h.bf16 %v631
        %v932 = vunpack.c.l.bf16 %v632
        %v933 = vunpack.c.h.bf16 %v632
        %v934 = vunpack.c.l.bf16 %v633
        %v935 = vunpack.c.h.bf16 %v633
        %v936 = vunpack.c.l.bf16 %v634
        %v937 = vunpack.c.h.bf16 %v634
        %v938 = vunpack.c.l.bf16 %v635
        %v939 = vunpack.c.h.bf16 %v635
        %v940 = vunpack.c.l.bf16 %v636
        %v941 = vunpack.c.h.bf16 %v636
        %v942 = vunpack.c.l.bf16 %v637
        %v943 = vunpack.c.h.bf16 %v637
        %v944 = vunpack.c.l.bf16 %v638
        %v945 = vunpack.c.h.bf16 %v638
        %v946 = vunpack.c.l.bf16 %v639
        %v947 = vunpack.c.h.bf16 %v639
        %v948 = vunpack.c.l.bf16 %v640
        %v949 = vunpack.c.h.bf16 %v640
        %v950 = vunpack.c.l.bf16 %v641
        %v951 = vunpack.c.h.bf16 %v641
        %v952 = vunpack.c.l.bf16 %v642
        %v953 = vunpack.c.h.bf16 %v642
        %v954 = vunpack.c.l.bf16 %v643
        %v955 = vunpack.c.h.bf16 %v643
        %v956 = vunpack.c.l.bf16 %v644
        %v957 = vunpack.c.h.bf16 %v644
        %v958 = vunpack.c.l.bf16 %v645
        %v959 = vunpack.c.h.bf16 %v645
        %v960 = vunpack.c.l.bf16 %v646
        %v961 = vunpack.c.h.bf16 %v646
        %v962 = vunpack.c.l.bf16 %v647
        %v963 = vunpack.c.h.bf16 %v647
        %v964 = vunpack.c.l.bf16 %v648
        %v965 = vunpack.c.h.bf16 %v648
        %v966 = vunpack.c.l.bf16 %v649
        %v967 = vunpack.c.h.bf16 %v649
        %v968 = vunpack.c.l.bf16 %v650
        %v969 = vunpack.c.h.bf16 %v650
        %v970 = vunpack.c.l.bf16 %v651
        %v971 = vunpack.c.h.bf16 %v651
        %v972 = vunpack.c.l.bf16 %v652
        %v973 = vunpack.c.h.bf16 %v652
        %v974 = vunpack.c.l.bf16 %v653
        %v975 = vunpack.c.h.bf16 %v653
        %v976 = vunpack.c.l.bf16 %v654
        %v977 = vunpack.c.h.bf16 %v654
        %v978 = vunpack.c.l.bf16 %v655
        %v979 = vunpack.c.h.bf16 %v655
        %v980 = vunpack.c.l.bf16 %v656
        %v981 = vunpack.c.h.bf16 %v656
        %v982 = vunpack.c.l.bf16 %v657
        %v983 = vunpack.c.h.bf16 %v657
        %v984 = vunpack.c.l.bf16 %v658
        %v985 = vunpack.c.h.bf16 %v658
        %v986 = vunpack.c.l.bf16 %v659
        %v987 = vunpack.c.h.bf16 %v659
        %v988 = vunpack.c.l.bf16 %v660
        %v989 = vunpack.c.h.bf16 %v660
        %v990 = vunpack.c.l.bf16 %v661
        %v991 = vunpack.c.h.bf16 %v661
        %v992 = vunpack.c.l.bf16 %v662
        %v993 = vunpack.c.h.bf16 %v662
        %v994 = vunpack.c.l.bf16 %v663
        %v995 = vunpack.c.h.bf16 %v663
        %v996 = vunpack.c.l.bf16 %v664
        %v997 = vunpack.c.h.bf16 %v664
        %v998 = vunpack.c.l.bf16 %v665
        %v999 = vunpack.c.h.bf16 %v665
        %v1000 = vunpack.c.l.bf16 %v666
        %v1001 = vunpack.c.h.bf16 %v666
        %v1002 = vunpack.c.l.bf16 %v667
        %v1003 = vunpack.c.h.bf16 %v667
        %v1004 = vunpack.c.l.bf16 %v668
        %v1005 = vunpack.c.h.bf16 %v668
        %v1006 = vunpack.c.l.bf16 %v669
        %v1007 = vunpack.c.h.bf16 %v669
        %v1008 = vunpack.c.l.bf16 %v670
        %v1009 = vunpack.c.h.bf16 %v670
        %v1010 = vunpack.c.l.bf16 %v671
        %v1011 = vunpack.c.h.bf16 %v671
        %v1012 = vunpack.c.l.bf16 %v672
        %v1013 = vunpack.c.h.bf16 %v672
        %v1014 = vunpack.c.l.bf16 %v673
        %v1015 = vunpack.c.h.bf16 %v673
        %v1016 = vunpack.c.l.bf16 %v674
        %v1017 = vunpack.c.h.bf16 %v674
        %v1018 = vunpack.c.l.bf16 %v675
        %v1019 = vunpack.c.h.bf16 %v675
        %v1020 = vunpack.c.l.bf16 %v676
        %v1021 = vunpack.c.h.bf16 %v676
        %v1022 = vunpack.c.l.bf16 %v677
        %v1023 = vunpack.c.h.bf16 %v677
        %v1024 = vunpack.c.l.bf16 %v678
        %v1025 = vunpack.c.h.bf16 %v678
        %v1026 = vunpack.c.l.bf16 %v679
        %v1027 = vunpack.c.h.bf16 %v679
        %v1028 = vunpack.c.l.bf16 %v680
        %v1029 = vunpack.c.h.bf16 %v680
        %v1030 = vunpack.c.l.bf16 %v681
        %v1031 = vunpack.c.h.bf16 %v681
        %v1032 = vunpack.c.l.bf16 %v682
        %v1033 = vunpack.c.h.bf16 %v682
        %v1034 = vunpack.c.l.bf16 %v683
        %v1035 = vunpack.c.h.bf16 %v683
        %v1036 = vunpack.c.l.bf16 %v684
        %v1037 = vunpack.c.h.bf16 %v684
        %v1038 = vunpack.c.l.bf16 %v685
        %v1039 = vunpack.c.h.bf16 %v685
        %v1040 = vunpack.c.l.bf16 %v686
        %v1041 = vunpack.c.h.bf16 %v686
        %v1042 = vunpack.c.l.bf16 %v687
        %v1043 = vunpack.c.h.bf16 %v687
        %v1044 = vunpack.c.l.bf16 %v688
        %v1045 = vunpack.c.h.bf16 %v688
        %v1046 = vunpack.c.l.bf16 %v689
        %v1047 = vunpack.c.h.bf16 %v689
        %v1048 = vunpack.c.l.bf16 %v690
        %v1049 = vunpack.c.h.bf16 %v690
        %v1050 = vunpack.c.l.bf16 %v691
        %v1051 = vunpack.c.h.bf16 %v691
        %v1052 = vunpack.c.l.bf16 %v692
        %v1053 = vunpack.c.h.bf16 %v692
        %v1054 = vunpack.c.l.bf16 %v693
        %v1055 = vunpack.c.h.bf16 %v693
        %v1056 = vunpack.c.l.bf16 %v694
        %v1057 = vunpack.c.h.bf16 %v694
        %v1058 = vunpack.c.l.bf16 %v695
        %v1059 = vunpack.c.h.bf16 %v695
        %v1060 = vunpack.c.l.bf16 %v696
        %v1061 = vunpack.c.h.bf16 %v696
        %v1062 = vunpack.c.l.bf16 %v697
        %v1063 = vunpack.c.h.bf16 %v697
        %v1064 = vunpack.c.l.bf16 %v698
        %v1065 = vunpack.c.h.bf16 %v698
        %v1066 = vunpack.c.l.bf16 %v699
        %v1067 = vunpack.c.h.bf16 %v699
        %v1068 = vunpack.c.l.bf16 %v700
        %v1069 = vunpack.c.h.bf16 %v700
        %v1070 = vunpack.c.l.bf16 %v701
        %v1071 = vunpack.c.h.bf16 %v701
        %v1072 = vunpack.c.l.bf16 %v702
        %v1073 = vunpack.c.h.bf16 %v702
        %v1074 = vunpack.c.l.bf16 %v703
        %v1075 = vunpack.c.h.bf16 %v703
        %v1076 = vunpack.c.l.bf16 %v704
        %v1077 = vunpack.c.h.bf16 %v704
        %v1078 = vunpack.c.l.bf16 %v705
        %v1079 = vunpack.c.h.bf16 %v705
        %v1080 = vunpack.c.l.bf16 %v706
        %v1081 = vunpack.c.h.bf16 %v706
        %v1082 = vunpack.c.l.bf16 %v707
        %v1083 = vunpack.c.h.bf16 %v707
        %v1084 = vunpack.c.l.bf16 %v708
        %v1085 = vunpack.c.h.bf16 %v708
        %v1086 = vunpack.c.l.bf16 %v709
        %v1087 = vunpack.c.h.bf16 %v709
        %v1088 = vunpack.c.l.bf16 %v710
        %v1089 = vunpack.c.h.bf16 %v710
        %v1090 = vunpack.c.l.bf16 %v711
        %v1091 = vunpack.c.h.bf16 %v711
        %v1092 = vunpack.c.l.bf16 %v712
        %v1093 = vunpack.c.h.bf16 %v712
        %v1094 = vunpack.c.l.bf16 %v713
        %v1095 = vunpack.c.h.bf16 %v713
        %v1096 = vunpack.c.l.bf16 %v714
        %v1097 = vunpack.c.h.bf16 %v714
        %v1098 = vunpack.c.l.bf16 %v715
        %v1099 = vunpack.c.h.bf16 %v715
        %v1100 = vunpack.c.l.bf16 %v716
        %v1101 = vunpack.c.h.bf16 %v716
        %v1102 = vunpack.c.l.bf16 %v717
        %v1103 = vunpack.c.h.bf16 %v717
        %v1104 = vunpack.c.l.bf16 %v718
        %v1105 = vunpack.c.h.bf16 %v718
        %v1106 = vunpack.c.l.bf16 %v719
        %v1107 = vunpack.c.h.bf16 %v719
        %v1108 = vunpack.c.l.bf16 %v720
        %v1109 = vunpack.c.h.bf16 %v720
        %v1110 = vunpack.c.l.bf16 %v721
        %v1111 = vunpack.c.h.bf16 %v721
        %v1112 = vunpack.c.l.bf16 %v722
        %v1113 = vunpack.c.h.bf16 %v722
        %v1114 = vunpack.c.l.bf16 %v723
        %v1115 = vunpack.c.h.bf16 %v723
        %v1116 = vld [vmem:[%s3] sm:$0xf]
        %v1118 = vlaneseq
        %v1119 = vshrl.u32 %v1118, 7
        %v1120 = vsub.s32 0, %v1119
        %v1121 = vrot.slane %v1116, %v1120
        %v1122 = vlaneseq
        %v1123 = vshrl.u32 %v1122, 7
        %v1124 = vsub.s32 1, %v1123
        %v1125 = vrot.slane %v1116, %v1124
        %v1126 = vlaneseq
        %v1127 = vshrl.u32 %v1126, 7
        %v1128 = vsub.s32 2, %v1127
        %v1129 = vrot.slane %v1116, %v1128
        %v1130 = vlaneseq
        %v1131 = vshrl.u32 %v1130, 7
        %v1132 = vsub.s32 3, %v1131
        %v1133 = vrot.slane %v1116, %v1132
        %vm1138 = vcmask 130048
        %v1140 = vsel %vm1138, %v527, 0
        %1142 = vmatprep.subr.mxu0 %v725
        %1143 = vmatpush1.msra.mxu0 %v724
        %1144 = vmatprep.subr.mxu0 %v729
        %1145 = vmatpush1.msra.mxu0 %v728
        %1146 = vmatprep.subr.mxu0 %v733
        %1147 = vmatpush1.msra.mxu0 %v732
        %1148 = vmatprep.subr.mxu0 %v737
        %1149 = vmatpush1.msra.mxu0 %v736
        %1150 = vmatprep.subr.mxu0 %v741
        %1151 = vmatpush1.msra.mxu0 %v740
        %1152 = vmatprep.subr.mxu0 %v745
        %1153 = vmatpush1.msra.mxu0 %v744
        %1154 = vmatprep.subr.mxu0 %v749
        %1155 = vmatpush1.msra.mxu0 %v748
        %1156 = vmatprep.subr.mxu0 %v753
        %1157 = vmatpush1.msra.mxu0 %v752
        %1158 = vmatprep.subr.mxu0 %v757
        %1159 = vmatpush1.msra.mxu0 %v756
        %1160 = vmatprep.subr.mxu0 %v761
        %1161 = vmatpush1.msra.mxu0 %v760
        %1162 = vmatprep.subr.mxu0 %v765
        %1163 = vmatpush1.msra.mxu0 %v764
        %1164 = vmatprep.subr.mxu0 %v769
        %1165 = vmatpush1.msra.mxu0 %v768
        %1166 = vmatprep.subr.mxu0 %v773
        %1167 = vmatpush1.msra.mxu0 %v772
        %1168 = vmatprep.subr.mxu0 %v777
        %1169 = vmatpush1.msra.mxu0 %v776
        %1170 = vmatprep.subr.mxu0 %v781
        %1171 = vmatpush1.msra.mxu0 %v780
        %1172 = vmatprep.subr.mxu0 %v785
        %1173 = vmatpush1.msra.mxu0 %v784
        %1174 = vmatprep.subr.mxu0 %v789
        %1175 = vmatpush1.msra.mxu0 %v788
        %1176 = vmatprep.subr.mxu0 %v793
        %1177 = vmatpush1.msra.mxu0 %v792
        %1178 = vmatprep.subr.mxu0 %v797
        %1179 = vmatpush1.msra.mxu0 %v796
        %1180 = vmatprep.subr.mxu0 %v801
        %1181 = vmatpush1.msra.mxu0 %v800
        %1182 = vmatprep.subr.mxu0 %v805
        %1183 = vmatpush1.msra.mxu0 %v804
        %1184 = vmatprep.subr.mxu0 %v809
        %1185 = vmatpush1.msra.mxu0 %v808
        %1186 = vmatprep.subr.mxu0 %v813
        %1187 = vmatpush1.msra.mxu0 %v812
        %1188 = vmatprep.subr.mxu0 %v817
        %1189 = vmatpush1.msra.mxu0 %v816
        %1190 = vmatprep.subr.mxu0 %v821
        %1191 = vmatpush1.msra.mxu0 %v820
        %1192 = vmatprep.subr.mxu0 %v825
        %1193 = vmatpush1.msra.mxu0 %v824
        %1194 = vmatprep.subr.mxu0 %v829
        %1195 = vmatpush1.msra.mxu0 %v828
        %1196 = vmatprep.subr.mxu0 %v833
        %1197 = vmatpush1.msra.mxu0 %v832
        %1198 = vmatprep.subr.mxu0 %v837
        %1199 = vmatpush1.msra.mxu0 %v836
        %1200 = vmatprep.subr.mxu0 %v841
        %1201 = vmatpush1.msra.mxu0 %v840
        %1202 = vmatprep.subr.mxu0 %v845
        %1203 = vmatpush1.msra.mxu0 %v844
        %1204 = vmatprep.subr.mxu0 %v849
        %1205 = vmatpush1.msra.mxu0 %v848
        %1206 = vmatprep.mubr.f32.mxu0 %v522
        %1207 = vmatmul.mubr.f32.gmra.mrb[0].mxu0 %v521
        %v1208 = vpop.f32.mrb[0].mxu0
        %v1209 = vadd.f32 %v1121, %v1208
        %v1210 = vpop.f32.mrb[0].mxu0
        %v1211 = vadd.f32 %v1125, %v1210
        %1212 = vdwg.mxu0
        %1213 = vmatprep.subr.mxu0 %v853
        %1214 = vmatpush1.msra.mxu0 %v852
        %1215 = vmatprep.subr.mxu0 %v857
        %1216 = vmatpush1.msra.mxu0 %v856
        %1217 = vmatprep.subr.mxu0 %v861
        %1218 = vmatpush1.msra.mxu0 %v860
        %1219 = vmatprep.subr.mxu0 %v865
        %1220 = vmatpush1.msra.mxu0 %v864
        %1221 = vmatprep.subr.mxu0 %v869
        %1222 = vmatpush1.msra.mxu0 %v868
        %1223 = vmatprep.subr.mxu0 %v873
        %1224 = vmatpush1.msra.mxu0 %v872
        %1225 = vmatprep.subr.mxu0 %v877
        %1226 = vmatpush1.msra.mxu0 %v876
        %1227 = vmatprep.subr.mxu0 %v881
        %1228 = vmatpush1.msra.mxu0 %v880
        %1229 = vmatprep.subr.mxu0 %v885
        %1230 = vmatpush1.msra.mxu0 %v884
        %1231 = vmatprep.subr.mxu0 %v889
        %1232 = vmatpush1.msra.mxu0 %v888
        %1233 = vmatprep.subr.mxu0 %v893
        %1234 = vmatpush1.msra.mxu0 %v892
        %1235 = vmatprep.subr.mxu0 %v897
        %1236 = vmatpush1.msra.mxu0 %v896
        %1237 = vmatprep.subr.mxu0 %v901
        %1238 = vmatpush1.msra.mxu0 %v900
        %1239 = vmatprep.subr.mxu0 %v905
        %1240 = vmatpush1.msra.mxu0 %v904
        %1241 = vmatprep.subr.mxu0 %v909
        %1242 = vmatpush1.msra.mxu0 %v908
        %1243 = vmatprep.subr.mxu0 %v913
        %1244 = vmatpush1.msra.mxu0 %v912
        %1245 = vmatprep.subr.mxu0 %v917
        %1246 = vmatpush1.msra.mxu0 %v916
        %1247 = vmatprep.subr.mxu0 %v921
        %1248 = vmatpush1.msra.mxu0 %v920
        %1249 = vmatprep.subr.mxu0 %v925
        %1250 = vmatpush1.msra.mxu0 %v924
        %1251 = vmatprep.subr.mxu0 %v929
        %1252 = vmatpush1.msra.mxu0 %v928
        %1253 = vmatprep.subr.mxu0 %v933
        %1254 = vmatpush1.msra.mxu0 %v932
        %1255 = vmatprep.subr.mxu0 %v937
        %1256 = vmatpush1.msra.mxu0 %v936
        %1257 = vmatprep.subr.mxu0 %v941
        %1258 = vmatpush1.msra.mxu0 %v940
        %1259 = vmatprep.subr.mxu0 %v945
        %1260 = vmatpush1.msra.mxu0 %v944
        %1261 = vmatprep.subr.mxu0 %v949
        %1262 = vmatpush1.msra.mxu0 %v948
        %1263 = vmatprep.subr.mxu0 %v953
        %1264 = vmatpush1.msra.mxu0 %v952
        %1265 = vmatprep.subr.mxu0 %v957
        %1266 = vmatpush1.msra.mxu0 %v956
        %1267 = vmatprep.subr.mxu0 %v961
        %1268 = vmatpush1.msra.mxu0 %v960
        %1269 = vmatprep.subr.mxu0 %v965
        %1270 = vmatpush1.msra.mxu0 %v964
        %1271 = vmatprep.subr.mxu0 %v969
        %1272 = vmatpush1.msra.mxu0 %v968
        %1273 = vmatprep.subr.mxu0 %v973
        %1274 = vmatpush1.msra.mxu0 %v972
        %1275 = vmatprep.subr.mxu0 %v977
        %1276 = vmatpush1.msra.mxu0 %v976
        %1277 = vmatprep.mubr.f32.mxu0 %v524
        %1278 = vmatmul.mubr.f32.gmra.mrb[0].mxu0 %v523
        %v1279 = vpop.f32.mrb[0].mxu0
        %v1280 = vadd.f32 %v1209, %v1279
        %v1281 = vpop.f32.mrb[0].mxu0
        %v1282 = vadd.f32 %v1211, %v1281
        %1283 = vdwg.mxu0
        %1284 = vmatprep.subr.mxu0 %v981
        %1285 = vmatpush1.msra.mxu0 %v980
        %1286 = vmatprep.subr.mxu0 %v985
        %1287 = vmatpush1.msra.mxu0 %v984
        %1288 = vmatprep.subr.mxu0 %v989
        %1289 = vmatpush1.msra.mxu0 %v988
        %1290 = vmatprep.subr.mxu0 %v993
        %1291 = vmatpush1.msra.mxu0 %v992
        %1292 = vmatprep.subr.mxu0 %v997
        %1293 = vmatpush1.msra.mxu0 %v996
        %1294 = vmatprep.subr.mxu0 %v1001
        %1295 = vmatpush1.msra.mxu0 %v1000
        %1296 = vmatprep.subr.mxu0 %v1005
        %1297 = vmatpush1.msra.mxu0 %v1004
        %1298 = vmatprep.subr.mxu0 %v1009
        %1299 = vmatpush1.msra.mxu0 %v1008
        %1300 = vmatprep.subr.mxu0 %v1013
        %1301 = vmatpush1.msra.mxu0 %v1012
        %1302 = vmatprep.subr.mxu0 %v1017
        %1303 = vmatpush1.msra.mxu0 %v1016
        %1304 = vmatprep.subr.mxu0 %v1021
        %1305 = vmatpush1.msra.mxu0 %v1020
        %1306 = vmatprep.subr.mxu0 %v1025
        %1307 = vmatpush1.msra.mxu0 %v1024
        %1308 = vmatprep.subr.mxu0 %v1029
        %1309 = vmatpush1.msra.mxu0 %v1028
        %1310 = vmatprep.subr.mxu0 %v1033
        %1311 = vmatpush1.msra.mxu0 %v1032
        %1312 = vmatprep.subr.mxu0 %v1037
        %1313 = vmatpush1.msra.mxu0 %v1036
        %1314 = vmatprep.subr.mxu0 %v1041
        %1315 = vmatpush1.msra.mxu0 %v1040
        %1316 = vmatprep.subr.mxu0 %v1045
        %1317 = vmatpush1.msra.mxu0 %v1044
        %1318 = vmatprep.subr.mxu0 %v1049
        %1319 = vmatpush1.msra.mxu0 %v1048
        %1320 = vmatprep.subr.mxu0 %v1053
        %1321 = vmatpush1.msra.mxu0 %v1052
        %1322 = vmatprep.subr.mxu0 %v1057
        %1323 = vmatpush1.msra.mxu0 %v1056
        %1324 = vmatprep.subr.mxu0 %v1061
        %1325 = vmatpush1.msra.mxu0 %v1060
        %1326 = vmatprep.subr.mxu0 %v1065
        %1327 = vmatpush1.msra.mxu0 %v1064
        %1328 = vmatprep.subr.mxu0 %v1069
        %1329 = vmatpush1.msra.mxu0 %v1068
        %1330 = vmatprep.subr.mxu0 %v1073
        %1331 = vmatpush1.msra.mxu0 %v1072
        %1332 = vmatprep.subr.mxu0 %v1077
        %1333 = vmatpush1.msra.mxu0 %v1076
        %1334 = vmatprep.subr.mxu0 %v1081
        %1335 = vmatpush1.msra.mxu0 %v1080
        %1336 = vmatprep.subr.mxu0 %v1085
        %1337 = vmatpush1.msra.mxu0 %v1084
        %1338 = vmatprep.subr.mxu0 %v1089
        %1339 = vmatpush1.msra.mxu0 %v1088
        %1340 = vmatprep.subr.mxu0 %v1093
        %1341 = vmatpush1.msra.mxu0 %v1092
        %1342 = vmatprep.subr.mxu0 %v1097
        %1343 = vmatpush1.msra.mxu0 %v1096
        %1344 = vmatprep.subr.mxu0 %v1101
        %1345 = vmatpush1.msra.mxu0 %v1100
        %1346 = vmatprep.subr.mxu0 %v1105
        %1347 = vmatpush1.msra.mxu0 %v1104
        %1348 = vmatprep.mubr.f32.mxu0 %v526
        %1349 = vmatmul.mubr.f32.gmra.mrb[0].mxu0 %v525
        %v1350 = vpop.f32.mrb[0].mxu0
        %v1351 = vadd.f32 %v1280, %v1350
        %v1352 = vpop.f32.mrb[0].mxu0
        %v1353 = vadd.f32 %v1282, %v1352
        %1354 = vdwg.mxu0
        %1355 = vmatprep.subr.mxu0 %v1109
        %1356 = vmatpush1.msra.mxu0 %v1108
        %1357 = vmatprep.subr.mxu0 %v1113
        %1358 = vmatpush1.msra.mxu0 %v1112
        %1359 = vmatprep.subr.mxu0 0.0
        %1360 = vmatpush1.msra.mxu0 0.0
        %1361 = vmatprep.subr.mxu0 0.0
        %1362 = vmatpush1.msra.mxu0 0.0
        %1363 = vmatprep.subr.mxu0 0.0
        %1364 = vmatpush1.msra.mxu0 0.0
        %1365 = vmatprep.subr.mxu0 0.0
        %1366 = vmatpush1.msra.mxu0 0.0
        %1367 = vmatprep.subr.mxu0 0.0
        %1368 = vmatpush1.msra.mxu0 0.0
        %1369 = vmatprep.subr.mxu0 0.0
        %1370 = vmatpush1.msra.mxu0 0.0
        %1371 = vmatprep.subr.mxu0 0.0
        %1372 = vmatpush1.msra.mxu0 0.0
        %1373 = vmatprep.subr.mxu0 0.0
        %1374 = vmatpush1.msra.mxu0 0.0
        %1375 = vmatprep.subr.mxu0 0.0
        %1376 = vmatpush1.msra.mxu0 0.0
        %1377 = vmatprep.subr.mxu0 0.0
        %1378 = vmatpush1.msra.mxu0 0.0
        %1379 = vmatprep.subr.mxu0 0.0
        %1380 = vmatpush1.msra.mxu0 0.0
        %1381 = vmatprep.subr.mxu0 0.0
        %1382 = vmatpush1.msra.mxu0 0.0
        %1383 = vmatprep.subr.mxu0 0.0
        %1384 = vmatpush1.msra.mxu0 0.0
        %1385 = vmatprep.subr.mxu0 0.0
        %1386 = vmatpush1.msra.mxu0 0.0
        %1387 = vmatprep.subr.mxu0 0.0
        %1388 = vmatpush1.msra.mxu0 0.0
        %1389 = vmatprep.subr.mxu0 0.0
        %1390 = vmatpush1.msra.mxu0 0.0
        %1391 = vmatprep.subr.mxu0 0.0
        %1392 = vmatpush1.msra.mxu0 0.0
        %1393 = vmatprep.subr.mxu0 0.0
        %1394 = vmatpush1.msra.mxu0 0.0
        %1395 = vmatprep.subr.mxu0 0.0
        %1396 = vmatpush1.msra.mxu0 0.0
        %1397 = vmatprep.subr.mxu0 0.0
        %1398 = vmatpush1.msra.mxu0 0.0
        %1399 = vmatprep.subr.mxu0 0.0
        %1400 = vmatpush1.msra.mxu0 0.0
        %1401 = vmatprep.subr.mxu0 0.0
        %1402 = vmatpush1.msra.mxu0 0.0
        %1403 = vmatprep.subr.mxu0 0.0
        %1404 = vmatpush1.msra.mxu0 0.0
        %1405 = vmatprep.subr.mxu0 0.0
        %1406 = vmatpush1.msra.mxu0 0.0
        %1407 = vmatprep.subr.mxu0 0.0
        %1408 = vmatpush1.msra.mxu0 0.0
        %1409 = vmatprep.subr.mxu0 0.0
        %1410 = vmatpush1.msra.mxu0 0.0
        %1411 = vmatprep.subr.mxu0 0.0
        %1412 = vmatpush1.msra.mxu0 0.0
        %1413 = vmatprep.subr.mxu0 0.0
        %1414 = vmatpush1.msra.mxu0 0.0
        %1415 = vmatprep.subr.mxu0 0.0
        %1416 = vmatpush1.msra.mxu0 0.0
        %1417 = vmatprep.subr.mxu0 0.0
        %1418 = vmatpush1.msra.mxu0 0.0
        %1419 = vmatprep.mubr.f32.mxu0 0.0
        %1420 = vmatmul.mubr.f32.gmra.mrb[0].mxu0 %v1140
        %v1421 = vpop.f32.mrb[0].mxu0
        %v1422 = vadd.f32 %v1351, %v1421
        %v1423 = vpop.f32.mrb[0].mxu0
        %v1424 = vadd.f32 %v1353, %v1423
        %1425 = vdwg.mxu0
        %1426 = vmatprep.subr.mxu0 %v727
        %1427 = vmatpush1.msra.mxu0 %v726
        %1428 = vmatprep.subr.mxu0 %v731
        %1429 = vmatpush1.msra.mxu0 %v730
        %1430 = vmatprep.subr.mxu0 %v735
        %1431 = vmatpush1.msra.mxu0 %v734
        %1432 = vmatprep.subr.mxu0 %v739
        %1433 = vmatpush1.msra.mxu0 %v738
        %1434 = vmatprep.subr.mxu0 %v743
        %1435 = vmatpush1.msra.mxu0 %v742
        %1436 = vmatprep.subr.mxu0 %v747
        %1437 = vmatpush1.msra.mxu0 %v746
        %1438 = vmatprep.subr.mxu0 %v751
        %1439 = vmatpush1.msra.mxu0 %v750
        %1440 = vmatprep.subr.mxu0 %v755
        %1441 = vmatpush1.msra.mxu0 %v754
        %1442 = vmatprep.subr.mxu0 %v759
        %1443 = vmatpush1.msra.mxu0 %v758
        %1444 = vmatprep.subr.mxu0 %v763
        %1445 = vmatpush1.msra.mxu0 %v762
        %1446 = vmatprep.subr.mxu0 %v767
        %1447 = vmatpush1.msra.mxu0 %v766
        %1448 = vmatprep.subr.mxu0 %v771
        %1449 = vmatpush1.msra.mxu0 %v770
        %1450 = vmatprep.subr.mxu0 %v775
        %1451 = vmatpush1.msra.mxu0 %v774
        %1452 = vmatprep.subr.mxu0 %v779
        %1453 = vmatpush1.msra.mxu0 %v778
        %1454 = vmatprep.subr.mxu0 %v783
        %1455 = vmatpush1.msra.mxu0 %v782
        %1456 = vmatprep.subr.mxu0 %v787
        %1457 = vmatpush1.msra.mxu0 %v786
        %1458 = vmatprep.subr.mxu0 %v791
        %1459 = vmatpush1.msra.mxu0 %v790
        %1460 = vmatprep.subr.mxu0 %v795
        %1461 = vmatpush1.msra.mxu0 %v794
        %1462 = vmatprep.subr.mxu0 %v799
        %1463 = vmatpush1.msra.mxu0 %v798
        %1464 = vmatprep.subr.mxu0 %v803
        %1465 = vmatpush1.msra.mxu0 %v802
        %1466 = vmatprep.subr.mxu0 %v807
        %1467 = vmatpush1.msra.mxu0 %v806
        %1468 = vmatprep.subr.mxu0 %v811
        %1469 = vmatpush1.msra.mxu0 %v810
        %1470 = vmatprep.subr.mxu0 %v815
        %1471 = vmatpush1.msra.mxu0 %v814
        %1472 = vmatprep.subr.mxu0 %v819
        %1473 = vmatpush1.msra.mxu0 %v818
        %1474 = vmatprep.subr.mxu0 %v823
        %1475 = vmatpush1.msra.mxu0 %v822
        %1476 = vmatprep.subr.mxu0 %v827
        %1477 = vmatpush1.msra.mxu0 %v826
        %1478 = vmatprep.subr.mxu0 %v831
        %1479 = vmatpush1.msra.mxu0 %v830
        %1480 = vmatprep.subr.mxu0 %v835
        %1481 = vmatpush1.msra.mxu0 %v834
        %1482 = vmatprep.subr.mxu0 %v839
        %1483 = vmatpush1.msra.mxu0 %v838
        %1484 = vmatprep.subr.mxu0 %v843
        %1485 = vmatpush1.msra.mxu0 %v842
        %1486 = vmatprep.subr.mxu0 %v847
        %1487 = vmatpush1.msra.mxu0 %v846
        %1488 = vmatprep.subr.mxu0 %v851
        %1489 = vmatpush1.msra.mxu0 %v850
        %1490 = vmatprep.mubr.f32.mxu0 %v522
        %1491 = vmatmul.mubr.f32.gmra.mrb[0].mxu0 %v521
        %v1492 = vpop.f32.mrb[0].mxu0
        %v1493 = vadd.f32 %v1129, %v1492
        %v1494 = vpop.f32.mrb[0].mxu0
        %v1495 = vadd.f32 %v1133, %v1494
        %1496 = vdwg.mxu0
        %1497 = vmatprep.subr.mxu0 %v855
        %1498 = vmatpush1.msra.mxu0 %v854
        %1499 = vmatprep.subr.mxu0 %v859
        %1500 = vmatpush1.msra.mxu0 %v858
        %1501 = vmatprep.subr.mxu0 %v863
        %1502 = vmatpush1.msra.mxu0 %v862
        %1503 = vmatprep.subr.mxu0 %v867
        %1504 = vmatpush1.msra.mxu0 %v866
        %1505 = vmatprep.subr.mxu0 %v871
        %1506 = vmatpush1.msra.mxu0 %v870
        %1507 = vmatprep.subr.mxu0 %v875
        %1508 = vmatpush1.msra.mxu0 %v874
        %1509 = vmatprep.subr.mxu0 %v879
        %1510 = vmatpush1.msra.mxu0 %v878
        %1511 = vmatprep.subr.mxu0 %v883
        %1512 = vmatpush1.msra.mxu0 %v882
        %1513 = vmatprep.subr.mxu0 %v887
        %1514 = vmatpush1.msra.mxu0 %v886
        %1515 = vmatprep.subr.mxu0 %v891
        %1516 = vmatpush1.msra.mxu0 %v890
        %1517 = vmatprep.subr.mxu0 %v895
        %1518 = vmatpush1.msra.mxu0 %v894
        %1519 = vmatprep.subr.mxu0 %v899
        %1520 = vmatpush1.msra.mxu0 %v898
        %1521 = vmatprep.subr.mxu0 %v903
        %1522 = vmatpush1.msra.mxu0 %v902
        %1523 = vmatprep.subr.mxu0 %v907
        %1524 = vmatpush1.msra.mxu0 %v906
        %1525 = vmatprep.subr.mxu0 %v911
        %1526 = vmatpush1.msra.mxu0 %v910
        %1527 = vmatprep.subr.mxu0 %v915
        %1528 = vmatpush1.msra.mxu0 %v914
        %1529 = vmatprep.subr.mxu0 %v919
        %1530 = vmatpush1.msra.mxu0 %v918
        %1531 = vmatprep.subr.mxu0 %v923
        %1532 = vmatpush1.msra.mxu0 %v922
        %1533 = vmatprep.subr.mxu0 %v927
        %1534 = vmatpush1.msra.mxu0 %v926
        %1535 = vmatprep.subr.mxu0 %v931
        %1536 = vmatpush1.msra.mxu0 %v930
        %1537 = vmatprep.subr.mxu0 %v935
        %1538 = vmatpush1.msra.mxu0 %v934
        %1539 = vmatprep.subr.mxu0 %v939
        %1540 = vmatpush1.msra.mxu0 %v938
        %1541 = vmatprep.subr.mxu0 %v943
        %1542 = vmatpush1.msra.mxu0 %v942
        %1543 = vmatprep.subr.mxu0 %v947
        %1544 = vmatpush1.msra.mxu0 %v946
        %1545 = vmatprep.subr.mxu0 %v951
        %1546 = vmatpush1.msra.mxu0 %v950
        %1547 = vmatprep.subr.mxu0 %v955
        %1548 = vmatpush1.msra.mxu0 %v954
        %1549 = vmatprep.subr.mxu0 %v959
        %1550 = vmatpush1.msra.mxu0 %v958
        %1551 = vmatprep.subr.mxu0 %v963
        %1552 = vmatpush1.msra.mxu0 %v962
        %1553 = vmatprep.subr.mxu0 %v967
        %1554 = vmatpush1.msra.mxu0 %v966
        %1555 = vmatprep.subr.mxu0 %v971
        %1556 = vmatpush1.msra.mxu0 %v970
        %1557 = vmatprep.subr.mxu0 %v975
        %1558 = vmatpush1.msra.mxu0 %v974
        %1559 = vmatprep.subr.mxu0 %v979
        %1560 = vmatpush1.msra.mxu0 %v978
        %1561 = vmatprep.mubr.f32.mxu0 %v524
        %1562 = vmatmul.mubr.f32.gmra.mrb[0].mxu0 %v523
        %v1563 = vpop.f32.mrb[0].mxu0
        %v1564 = vadd.f32 %v1493, %v1563
        %v1565 = vpop.f32.mrb[0].mxu0
        %v1566 = vadd.f32 %v1495, %v1565
        %1567 = vdwg.mxu0
        %1568 = vmatprep.subr.mxu0 %v983
        %1569 = vmatpush1.msra.mxu0 %v982
        %1570 = vmatprep.subr.mxu0 %v987
        %1571 = vmatpush1.msra.mxu0 %v986
        %1572 = vmatprep.subr.mxu0 %v991
        %1573 = vmatpush1.msra.mxu0 %v990
        %1574 = vmatprep.subr.mxu0 %v995
        %1575 = vmatpush1.msra.mxu0 %v994
        %1576 = vmatprep.subr.mxu0 %v999
        %1577 = vmatpush1.msra.mxu0 %v998
        %1578 = vmatprep.subr.mxu0 %v1003
        %1579 = vmatpush1.msra.mxu0 %v1002
        %1580 = vmatprep.subr.mxu0 %v1007
        %1581 = vmatpush1.msra.mxu0 %v1006
        %1582 = vmatprep.subr.mxu0 %v1011
        %1583 = vmatpush1.msra.mxu0 %v1010
        %1584 = vmatprep.subr.mxu0 %v1015
        %1585 = vmatpush1.msra.mxu0 %v1014
        %1586 = vmatprep.subr.mxu0 %v1019
        %1587 = vmatpush1.msra.mxu0 %v1018
        %1588 = vmatprep.subr.mxu0 %v1023
        %1589 = vmatpush1.msra.mxu0 %v1022
        %1590 = vmatprep.subr.mxu0 %v1027
        %1591 = vmatpush1.msra.mxu0 %v1026
        %1592 = vmatprep.subr.mxu0 %v1031
        %1593 = vmatpush1.msra.mxu0 %v1030
        %1594 = vmatprep.subr.mxu0 %v1035
        %1595 = vmatpush1.msra.mxu0 %v1034
        %1596 = vmatprep.subr.mxu0 %v1039
        %1597 = vmatpush1.msra.mxu0 %v1038
        %1598 = vmatprep.subr.mxu0 %v1043
        %1599 = vmatpush1.msra.mxu0 %v1042
        %1600 = vmatprep.subr.mxu0 %v1047
        %1601 = vmatpush1.msra.mxu0 %v1046
        %1602 = vmatprep.subr.mxu0 %v1051
        %1603 = vmatpush1.msra.mxu0 %v1050
        %1604 = vmatprep.subr.mxu0 %v1055
        %1605 = vmatpush1.msra.mxu0 %v1054
        %1606 = vmatprep.subr.mxu0 %v1059
        %1607 = vmatpush1.msra.mxu0 %v1058
        %1608 = vmatprep.subr.mxu0 %v1063
        %1609 = vmatpush1.msra.mxu0 %v1062
        %1610 = vmatprep.subr.mxu0 %v1067
        %1611 = vmatpush1.msra.mxu0 %v1066
        %1612 = vmatprep.subr.mxu0 %v1071
        %1613 = vmatpush1.msra.mxu0 %v1070
        %1614 = vmatprep.subr.mxu0 %v1075
        %1615 = vmatpush1.msra.mxu0 %v1074
        %1616 = vmatprep.subr.mxu0 %v1079
        %1617 = vmatpush1.msra.mxu0 %v1078
        %1618 = vmatprep.subr.mxu0 %v1083
        %1619 = vmatpush1.msra.mxu0 %v1082
        %1620 = vmatprep.subr.mxu0 %v1087
        %1621 = vmatpush1.msra.mxu0 %v1086
        %1622 = vmatprep.subr.mxu0 %v1091
        %1623 = vmatpush1.msra.mxu0 %v1090
        %1624 = vmatprep.subr.mxu0 %v1095
        %1625 = vmatpush1.msra.mxu0 %v1094
        %1626 = vmatprep.subr.mxu0 %v1099
        %1627 = vmatpush1.msra.mxu0 %v1098
        %1628 = vmatprep.subr.mxu0 %v1103
        %1629 = vmatpush1.msra.mxu0 %v1102
        %1630 = vmatprep.subr.mxu0 %v1107
        %1631 = vmatpush1.msra.mxu0 %v1106
        %1632 = vmatprep.mubr.f32.mxu0 %v526
        %1633 = vmatmul.mubr.f32.gmra.mrb[0].mxu0 %v525
        %v1634 = vpop.f32.mrb[0].mxu0
        %v1635 = vadd.f32 %v1564, %v1634
        %v1636 = vpop.f32.mrb[0].mxu0
        %v1637 = vadd.f32 %v1566, %v1636
        %1638 = vdwg.mxu0
        %1639 = vmatprep.subr.mxu0 %v1111
        %1640 = vmatpush1.msra.mxu0 %v1110
        %1641 = vmatprep.subr.mxu0 %v1115
        %1642 = vmatpush1.msra.mxu0 %v1114
        %1643 = vmatprep.subr.mxu0 0.0
        %1644 = vmatpush1.msra.mxu0 0.0
        %1645 = vmatprep.subr.mxu0 0.0
        %1646 = vmatpush1.msra.mxu0 0.0
        %1647 = vmatprep.subr.mxu0 0.0
        %1648 = vmatpush1.msra.mxu0 0.0
        %1649 = vmatprep.subr.mxu0 0.0
        %1650 = vmatpush1.msra.mxu0 0.0
        %1651 = vmatprep.subr.mxu0 0.0
        %1652 = vmatpush1.msra.mxu0 0.0
        %1653 = vmatprep.subr.mxu0 0.0
        %1654 = vmatpush1.msra.mxu0 0.0
        %1655 = vmatprep.subr.mxu0 0.0
        %1656 = vmatpush1.msra.mxu0 0.0
        %1657 = vmatprep.subr.mxu0 0.0
        %1658 = vmatpush1.msra.mxu0 0.0
        %1659 = vmatprep.subr.mxu0 0.0
        %1660 = vmatpush1.msra.mxu0 0.0
        %1661 = vmatprep.subr.mxu0 0.0
        %1662 = vmatpush1.msra.mxu0 0.0
        %1663 = vmatprep.subr.mxu0 0.0
        %1664 = vmatpush1.msra.mxu0 0.0
        %1665 = vmatprep.subr.mxu0 0.0
        %1666 = vmatpush1.msra.mxu0 0.0
        %1667 = vmatprep.subr.mxu0 0.0
        %1668 = vmatpush1.msra.mxu0 0.0
        %1669 = vmatprep.subr.mxu0 0.0
        %1670 = vmatpush1.msra.mxu0 0.0
        %1671 = vmatprep.subr.mxu0 0.0
        %1672 = vmatpush1.msra.mxu0 0.0
        %1673 = vmatprep.subr.mxu0 0.0
        %1674 = vmatpush1.msra.mxu0 0.0
        %1675 = vmatprep.subr.mxu0 0.0
        %1676 = vmatpush1.msra.mxu0 0.0
        %1677 = vmatprep.subr.mxu0 0.0
        %1678 = vmatpush1.msra.mxu0 0.0
        %1679 = vmatprep.subr.mxu0 0.0
        %1680 = vmatpush1.msra.mxu0 0.0
        %1681 = vmatprep.subr.mxu0 0.0
        %1682 = vmatpush1.msra.mxu0 0.0
        %1683 = vmatprep.subr.mxu0 0.0
        %1684 = vmatpush1.msra.mxu0 0.0
        %1685 = vmatprep.subr.mxu0 0.0
        %1686 = vmatpush1.msra.mxu0 0.0
        %1687 = vmatprep.subr.mxu0 0.0
        %1688 = vmatpush1.msra.mxu0 0.0
        %1689 = vmatprep.subr.mxu0 0.0
        %1690 = vmatpush1.msra.mxu0 0.0
        %1691 = vmatprep.subr.mxu0 0.0
        %1692 = vmatpush1.msra.mxu0 0.0
        %1693 = vmatprep.subr.mxu0 0.0
        %1694 = vmatpush1.msra.mxu0 0.0
        %1695 = vmatprep.subr.mxu0 0.0
        %1696 = vmatpush1.msra.mxu0 0.0
        %1697 = vmatprep.subr.mxu0 0.0
        %1698 = vmatpush1.msra.mxu0 0.0
        %1699 = vmatprep.subr.mxu0 0.0
        %1700 = vmatpush1.msra.mxu0 0.0
        %1701 = vmatprep.subr.mxu0 0.0
        %1702 = vmatpush1.msra.mxu0 0.0
        %1703 = vmatprep.mubr.f32.mxu0 0.0
        %1704 = vmatmul.mubr.f32.gmra.mrb[0].mxu0 %v1140
        %v1705 = vpop.f32.mrb[0].mxu0
        %v1706 = vadd.f32 %v1635, %v1705
        %v1707 = vpop.f32.mrb[0].mxu0
        %v1708 = vadd.f32 %v1637, %v1707
        %1709 = vdwg.mxu0
        %v1710 = vld [vmem:[%s4] sm:$0xf]
        %v1711 = vld [vmem:[%s5] sm:$0xf]
        %v1712 = vrot.slane %v1422, 4
        %v1713 = vadd.f32 %v1422, %v1712
        %v1714 = vrot.slane %v1713, 2
        %v1715 = vadd.f32 %v1713, %v1714
        %v1716 = vrot.slane %v1715, 1
        %v1717 = vadd.f32 %v1715, %v1716
        %v1718 = vrot.slane %v1424, 4
        %v1719 = vadd.f32 %v1424, %v1718
        %v1720 = vrot.slane %v1719, 2
        %v1721 = vadd.f32 %v1719, %v1720
        %v1722 = vrot.slane %v1721, 1
        %v1723 = vadd.f32 %v1721, %v1722
        %v1724 = vrot.slane %v1706, 4
        %v1725 = vadd.f32 %v1706, %v1724
        %v1726 = vrot.slane %v1725, 2
        %v1727 = vadd.f32 %v1725, %v1726
        %v1728 = vrot.slane %v1727, 1
        %v1729 = vadd.f32 %v1727, %v1728
        %v1730 = vrot.slane %v1708, 4
        %v1731 = vadd.f32 %v1708, %v1730
        %v1732 = vrot.slane %v1731, 2
        %v1733 = vadd.f32 %v1731, %v1732
        %v1734 = vrot.slane %v1733, 1
        %v1735 = vadd.f32 %v1733, %v1734
        %v1736 = vrcp.pop 8.0
        %v1737 = vmul.f32 %v1717, %v1736
        %v1738 = vmul.f32 %v1723, %v1736
        %v1739 = vmul.f32 %v1729, %v1736
        %v1740 = vmul.f32 %v1735, %v1736
        %v1741 = vsub.f32 %v1422, %v1737
        %v1742 = vsub.f32 %v1424, %v1738
        %v1743 = vsub.f32 %v1706, %v1739
        %v1744 = vsub.f32 %v1708, %v1740
        %v1745 = vmul.f32 %v1741, %v1741
        %v1746 = vmul.f32 %v1742, %v1742
        %v1747 = vmul.f32 %v1743, %v1743
        %v1748 = vmul.f32 %v1744, %v1744
        %v1749 = vrot.slane %v1745, 4
        %v1750 = vadd.f32 %v1745, %v1749
        %v1751 = vrot.slane %v1750, 2
        %v1752 = vadd.f32 %v1750, %v1751
        %v1753 = vrot.slane %v1752, 1
        %v1754 = vadd.f32 %v1752, %v1753
        %v1755 = vrot.slane %v1746, 4
        %v1756 = vadd.f32 %v1746, %v1755
        %v1757 = vrot.slane %v1756, 2
        %v1758 = vadd.f32 %v1756, %v1757
        %v1759 = vrot.slane %v1758, 1
        %v1760 = vadd.f32 %v1758, %v1759
        %v1761 = vrot.slane %v1747, 4
        %v1762 = vadd.f32 %v1747, %v1761
        %v1763 = vrot.slane %v1762, 2
        %v1764 = vadd.f32 %v1762, %v1763
        %v1765 = vrot.slane %v1764, 1
        %v1766 = vadd.f32 %v1764, %v1765
        %v1767 = vrot.slane %v1748, 4
        %v1768 = vadd.f32 %v1748, %v1767
        %v1769 = vrot.slane %v1768, 2
        %v1770 = vadd.f32 %v1768, %v1769
        %v1771 = vrot.slane %v1770, 1
        %v1772 = vadd.f32 %v1770, %v1771
        %v1773 = vmul.f32 %v1754, %v1736
        %v1774 = vmul.f32 %v1760, %v1736
        %v1775 = vmul.f32 %v1766, %v1736
        %v1776 = vmul.f32 %v1772, %v1736
        %v1777 = vadd.f32 %v1773, 1e-05
        %v1778 = vadd.f32 %v1774, 1e-05
        %v1779 = vadd.f32 %v1775, 1e-05
        %v1780 = vadd.f32 %v1776, 1e-05
        %v1781 = vrsqrt.pop %v1777
        %v1782 = vrsqrt.pop %v1778
        %v1783 = vrsqrt.pop %v1779
        %v1784 = vrsqrt.pop %v1780
        %v1789 = vcombine.low %v1781, %v1782
        %v1790 = vcombine.low %v1783, %v1784
        %v1792 = vunpack.c.l.s4 1966171168
        %v1793 = vunpack.c.0.s8 %v1792
        %v1794 = vlaneseq
        %v1795 = vshrl.u32 %v1794, 7
        %v1796 = vsub.s32 %v1793, %v1795
        %v1797 = vrot.slane %v1789, %v1796
        %v1799 = vunpack.c.l.s4 1966171168
        %v1800 = vunpack.c.0.s8 %v1799
        %v1801 = vlaneseq
        %v1802 = vshrl.u32 %v1801, 7
        %v1803 = vsub.s32 %v1800, %v1802
        %v1804 = vrot.slane %v1790, %v1803
        %v1805 = vcombine.low %v1797, %v1804
        %v1807 = vunpack.c.l.s4 1966171168
        %v1808 = vunpack.c.0.s8 %v1807
        %v1809 = vlaneseq
        %v1810 = vshrl.u32 %v1809, 7
        %v1811 = vsub.s32 %v1808, %v1810
        %v1812 = vrot.slane %v1805, %v1811
        %v1814 = vmul.f32 %v1710, %v1812
        %v1816 = vlaneseq
        %v1817 = vshrl.u32 %v1816, 7
        %v1818 = vsub.s32 0, %v1817
        %v1819 = vrot.slane %v1814, %v1818
        %v1820 = vlaneseq
        %v1821 = vshrl.u32 %v1820, 7
        %v1822 = vsub.s32 1, %v1821
        %v1823 = vrot.slane %v1814, %v1822
        %v1824 = vlaneseq
        %v1825 = vshrl.u32 %v1824, 7
        %v1826 = vsub.s32 2, %v1825
        %v1827 = vrot.slane %v1814, %v1826
        %v1828 = vlaneseq
        %v1829 = vshrl.u32 %v1828, 7
        %v1830 = vsub.s32 3, %v1829
        %v1831 = vrot.slane %v1814, %v1830
        %v1836 = vmul.f32 %v1737, %v1819
        %v1837 = vmul.f32 %v1738, %v1823
        %v1838 = vmul.f32 %v1739, %v1827
        %v1839 = vmul.f32 %v1740, %v1831
        %v1844 = vcombine.low %v1836, %v1837
        %v1845 = vcombine.low %v1838, %v1839
        %v1847 = vunpack.c.l.s4 1966171168
        %v1848 = vunpack.c.0.s8 %v1847
        %v1849 = vlaneseq
        %v1850 = vshrl.u32 %v1849, 7
        %v1851 = vsub.s32 %v1848, %v1850
        %v1852 = vrot.slane %v1844, %v1851
        %v1854 = vunpack.c.l.s4 1966171168
        %v1855 = vunpack.c.0.s8 %v1854
        %v1856 = vlaneseq
        %v1857 = vshrl.u32 %v1856, 7
        %v1858 = vsub.s32 %v1855, %v1857
        %v1859 = vrot.slane %v1845, %v1858
        %v1860 = vcombine.low %v1852, %v1859
        %v1862 = vunpack.c.l.s4 1966171168
        %v1863 = vunpack.c.0.s8 %v1862
        %v1864 = vlaneseq
        %v1865 = vshrl.u32 %v1864, 7
        %v1866 = vsub.s32 %v1863, %v1865
        %v1867 = vrot.slane %v1860, %v1866
        %v1869 = vsub.f32 %v1711, %v1867
        %v1870 = vmul.f32 %v1422, %v1819
        %v1871 = vmul.f32 %v1424, %v1823
        %v1872 = vmul.f32 %v1706, %v1827
        %v1873 = vmul.f32 %v1708, %v1831
        %v1875 = vlaneseq
        %v1876 = vshrl.u32 %v1875, 7
        %v1877 = vsub.s32 0, %v1876
        %v1878 = vrot.slane %v1869, %v1877
        %v1879 = vlaneseq
        %v1880 = vshrl.u32 %v1879, 7
        %v1881 = vsub.s32 1, %v1880
        %v1882 = vrot.slane %v1869, %v1881
        %v1883 = vlaneseq
        %v1884 = vshrl.u32 %v1883, 7
        %v1885 = vsub.s32 2, %v1884
        %v1886 = vrot.slane %v1869, %v1885
        %v1887 = vlaneseq
        %v1888 = vshrl.u32 %v1887, 7
        %v1889 = vsub.s32 3, %v1888
        %v1890 = vrot.slane %v1869, %v1889
        %v1895 = vadd.f32 %v1870, %v1878
        %v1896 = vadd.f32 %v1871, %v1882
        %v1897 = vadd.f32 %v1872, %v1886
        %v1898 = vadd.f32 %v1873, %v1890
        %v1899 = vmax.f32 %v1895, 0.0
        %v1900 = vmax.f32 %v1896, 0.0
        %v1901 = vmax.f32 %v1897, 0.0
        %v1902 = vmax.f32 %v1898, 0.0
        %v1903 = vld [vmem:[%s6] sm:$0xff]
        %v1904 = vld [vmem:[%s6 + $0x8] sm:$0xff]
        %v1905 = vld [vmem:[%s6 + $0x10] sm:$0xff]
        %v1906 = vld [vmem:[%s6 + $0x18] sm:$0xff]
        %v1907 = vld [vmem:[%s6 + $0x20] sm:$0xff]
        %v1908 = vld [vmem:[%s6 + $0x28] sm:$0xff]
        %v1909 = vld [vmem:[%s6 + $0x30] sm:$0xff]
        %v1910 = vld [vmem:[%s6 + $0x38] sm:$0xff]
        %v1911 = vld [vmem:[%s6 + $0x40] sm:$0xff]
        %v1912 = vld [vmem:[%s6 + $0x48] sm:$0xff]
        %v1913 = vld [vmem:[%s6 + $0x50] sm:$0xff]
        %v1914 = vld [vmem:[%s6 + $0x58] sm:$0xff]
        %v1915 = vld [vmem:[%s6 + $0x60] sm:$0xff]
        %v1916 = vld [vmem:[%s6 + $0x68] sm:$0xff]
        %v1917 = vld [vmem:[%s6 + $0x70] sm:$0xff]
        %v1918 = vld [vmem:[%s6 + $0x78] sm:$0xff]
        %v1919 = vld [vmem:[%s6 + $0x80] sm:$0xff]
        %v1920 = vld [vmem:[%s6 + $0x88] sm:$0xff]
        %v1921 = vld [vmem:[%s6 + $0x90] sm:$0xff]
        %v1922 = vld [vmem:[%s6 + $0x98] sm:$0xff]
        %v1923 = vld [vmem:[%s6 + $0xa0] sm:$0xff]
        %v1924 = vld [vmem:[%s6 + $0xa8] sm:$0xff]
        %v1925 = vld [vmem:[%s6 + $0xb0] sm:$0xff]
        %v1926 = vld [vmem:[%s6 + $0xb8] sm:$0xff]
        %v1927 = vld [vmem:[%s6 + $0xc0] sm:$0xff]
        %v1928 = vld [vmem:[%s6 + $0xc8] sm:$0xff]
        %v1929 = vld [vmem:[%s6 + $0xd0] sm:$0xff]
        %v1930 = vld [vmem:[%s6 + $0xd8] sm:$0xff]
        %v1931 = vld [vmem:[%s6 + $0xe0] sm:$0xff]
        %v1932 = vld [vmem:[%s6 + $0xe8] sm:$0xff]
        %v1933 = vld [vmem:[%s6 + $0xf0] sm:$0xff]
        %v1934 = vld [vmem:[%s6 + $0xf8] sm:$0xff]
        %v1935 = vld [vmem:[%s6 + $0x100] sm:$0xff]
        %v1936 = vld [vmem:[%s6 + $0x108] sm:$0xff]
        %v1937 = vld [vmem:[%s6 + $0x110] sm:$0xff]
        %v1938 = vld [vmem:[%s6 + $0x118] sm:$0xff]
        %v1939 = vld [vmem:[%s6 + $0x120] sm:$0xff]
        %v1940 = vld [vmem:[%s6 + $0x128] sm:$0xff]
        %v1941 = vld [vmem:[%s6 + $0x130] sm:$0xff]
        %v1942 = vld [vmem:[%s6 + $0x138] sm:$0xff]
        %v1943 = vld [vmem:[%s6 + $0x140] sm:$0xff]
        %v1944 = vld [vmem:[%s6 + $0x148] sm:$0xff]
        %v1945 = vld [vmem:[%s6 + $0x150] sm:$0xff]
        %v1946 = vld [vmem:[%s6 + $0x158] sm:$0xff]
        %v1947 = vld [vmem:[%s6 + $0x160] sm:$0xff]
        %v1948 = vld [vmem:[%s6 + $0x168] sm:$0xff]
        %v1949 = vld [vmem:[%s6 + $0x170] sm:$0xff]
        %v1950 = vld [vmem:[%s6 + $0x178] sm:$0xff]
        %v1951 = vld [vmem:[%s6 + $0x180] sm:$0xff]
        %v1952 = vld [vmem:[%s6 + $0x188] sm:$0xff]
        %v1953 = vld [vmem:[%s6 + $0x190] sm:$0xff]
        %v1954 = vld [vmem:[%s6 + $0x198] sm:$0xff]
        %v1955 = vld [vmem:[%s6 + $0x1a0] sm:$0xff]
        %v1956 = vld [vmem:[%s6 + $0x1a8] sm:$0xff]
        %v1957 = vld [vmem:[%s6 + $0x1b0] sm:$0xff]
        %v1958 = vld [vmem:[%s6 + $0x1b8] sm:$0xff]
        %v1959 = vld [vmem:[%s6 + $0x1c0] sm:$0xff]
        %v1960 = vld [vmem:[%s6 + $0x1c8] sm:$0xff]
        %v1961 = vld [vmem:[%s6 + $0x1d0] sm:$0xff]
        %v1962 = vld [vmem:[%s6 + $0x1d8] sm:$0xff]
        %v1963 = vld [vmem:[%s6 + $0x1e0] sm:$0xff]
        %v1964 = vld [vmem:[%s6 + $0x1e8] sm:$0xff]
        %v1965 = vld [vmem:[%s6 + $0x1f0] sm:$0xff]
        %v1966 = vld [vmem:[%s6 + $0x1f8] sm:$0xff]
        %v1967 = vld [vmem:[%s7] sm:$0x1]
        %v1969 = vlaneseq
        %v1970 = vshrl.u32 %v1969, 7
        %v1971 = vsub.s32 0, %v1970
        %v1972 = vrot.slane %v1967, %v1971
        %1974 = vmatprep.subr.mxu0 0.0
        %1975 = vmatpush1.msra.mxu0 %v1903
        %1976 = vmatprep.subr.mxu0 0.0
        %1977 = vmatpush1.msra.mxu0 %v1904
        %1978 = vmatprep.subr.mxu0 0.0
        %1979 = vmatpush1.msra.mxu0 %v1905
        %1980 = vmatprep.subr.mxu0 0.0
        %1981 = vmatpush1.msra.mxu0 %v1906
        %1982 = vmatprep.subr.mxu0 0.0
        %1983 = vmatpush1.msra.mxu0 %v1907
        %1984 = vmatprep.subr.mxu0 0.0
        %1985 = vmatpush1.msra.mxu0 %v1908
        %1986 = vmatprep.subr.mxu0 0.0
        %1987 = vmatpush1.msra.mxu0 %v1909
        %1988 = vmatprep.subr.mxu0 0.0
        %1989 = vmatpush1.msra.mxu0 %v1910
        %1990 = vmatprep.subr.mxu0 0.0
        %1991 = vmatpush1.msra.mxu0 %v1911
        %1992 = vmatprep.subr.mxu0 0.0
        %1993 = vmatpush1.msra.mxu0 %v1912
        %1994 = vmatprep.subr.mxu0 0.0
        %1995 = vmatpush1.msra.mxu0 %v1913
        %1996 = vmatprep.subr.mxu0 0.0
        %1997 = vmatpush1.msra.mxu0 %v1914
        %1998 = vmatprep.subr.mxu0 0.0
        %1999 = vmatpush1.msra.mxu0 %v1915
        %2000 = vmatprep.subr.mxu0 0.0
        %2001 = vmatpush1.msra.mxu0 %v1916
        %2002 = vmatprep.subr.mxu0 0.0
        %2003 = vmatpush1.msra.mxu0 %v1917
        %2004 = vmatprep.subr.mxu0 0.0
        %2005 = vmatpush1.msra.mxu0 %v1918
        %2006 = vmatprep.subr.mxu0 0.0
        %2007 = vmatpush1.msra.mxu0 %v1919
        %2008 = vmatprep.subr.mxu0 0.0
        %2009 = vmatpush1.msra.mxu0 %v1920
        %2010 = vmatprep.subr.mxu0 0.0
        %2011 = vmatpush1.msra.mxu0 %v1921
        %2012 = vmatprep.subr.mxu0 0.0
        %2013 = vmatpush1.msra.mxu0 %v1922
        %2014 = vmatprep.subr.mxu0 0.0
        %2015 = vmatpush1.msra.mxu0 %v1923
        %2016 = vmatprep.subr.mxu0 0.0
        %2017 = vmatpush1.msra.mxu0 %v1924
        %2018 = vmatprep.subr.mxu0 0.0
        %2019 = vmatpush1.msra.mxu0 %v1925
        %2020 = vmatprep.subr.mxu0 0.0
        %2021 = vmatpush1.msra.mxu0 %v1926
        %2022 = vmatprep.subr.mxu0 0.0
        %2023 = vmatpush1.msra.mxu0 %v1927
        %2024 = vmatprep.subr.mxu0 0.0
        %2025 = vmatpush1.msra.mxu0 %v1928
        %2026 = vmatprep.subr.mxu0 0.0
        %2027 = vmatpush1.msra.mxu0 %v1929
        %2028 = vmatprep.subr.mxu0 0.0
        %2029 = vmatpush1.msra.mxu0 %v1930
        %2030 = vmatprep.subr.mxu0 0.0
        %2031 = vmatpush1.msra.mxu0 %v1931
        %2032 = vmatprep.subr.mxu0 0.0
        %2033 = vmatpush1.msra.mxu0 %v1932
        %2034 = vmatprep.subr.mxu0 0.0
        %2035 = vmatpush1.msra.mxu0 %v1933
        %2036 = vmatprep.subr.mxu0 0.0
        %2037 = vmatpush1.msra.mxu0 %v1934
        %2038 = vmatprep.mubr.f32.mxu0 %v1900
        %2039 = vmatmul.mubr.f32.gmra.mrb[0].mxu0 %v1899
        %v2040 = vpop.f32.mrb[0].mxu0
        %v2041 = vadd.f32 %v1972, %v2040
        %v2042 = vpop.f32.mrb[0].mxu0
        %2043 = vdwg.mxu0
        %2044 = vmatprep.subr.mxu0 0.0
        %2045 = vmatpush1.msra.mxu0 %v1935
        %2046 = vmatprep.subr.mxu0 0.0
        %2047 = vmatpush1.msra.mxu0 %v1936
        %2048 = vmatprep.subr.mxu0 0.0
        %2049 = vmatpush1.msra.mxu0 %v1937
        %2050 = vmatprep.subr.mxu0 0.0
        %2051 = vmatpush1.msra.mxu0 %v1938
        %2052 = vmatprep.subr.mxu0 0.0
        %2053 = vmatpush1.msra.mxu0 %v1939
        %2054 = vmatprep.subr.mxu0 0.0
        %2055 = vmatpush1.msra.mxu0 %v1940
        %2056 = vmatprep.subr.mxu0 0.0
        %2057 = vmatpush1.msra.mxu0 %v1941
        %2058 = vmatprep.subr.mxu0 0.0
        %2059 = vmatpush1.msra.mxu0 %v1942
        %2060 = vmatprep.subr.mxu0 0.0
        %2061 = vmatpush1.msra.mxu0 %v1943
        %2062 = vmatprep.subr.mxu0 0.0
        %2063 = vmatpush1.msra.mxu0 %v1944
        %2064 = vmatprep.subr.mxu0 0.0
        %2065 = vmatpush1.msra.mxu0 %v1945
        %2066 = vmatprep.subr.mxu0 0.0
        %2067 = vmatpush1.msra.mxu0 %v1946
        %2068 = vmatprep.subr.mxu0 0.0
        %2069 = vmatpush1.msra.mxu0 %v1947
        %2070 = vmatprep.subr.mxu0 0.0
        %2071 = vmatpush1.msra.mxu0 %v1948
        %2072 = vmatprep.subr.mxu0 0.0
        %2073 = vmatpush1.msra.mxu0 %v1949
        %2074 = vmatprep.subr.mxu0 0.0
        %2075 = vmatpush1.msra.mxu0 %v1950
        %2076 = vmatprep.subr.mxu0 0.0
        %2077 = vmatpush1.msra.mxu0 %v1951
        %2078 = vmatprep.subr.mxu0 0.0
        %2079 = vmatpush1.msra.mxu0 %v1952
        %2080 = vmatprep.subr.mxu0 0.0
        %2081 = vmatpush1.msra.mxu0 %v1953
        %2082 = vmatprep.subr.mxu0 0.0
        %2083 = vmatpush1.msra.mxu0 %v1954
        %2084 = vmatprep.subr.mxu0 0.0
        %2085 = vmatpush1.msra.mxu0 %v1955
        %2086 = vmatprep.subr.mxu0 0.0
        %2087 = vmatpush1.msra.mxu0 %v1956
        %2088 = vmatprep.subr.mxu0 0.0
        %2089 = vmatpush1.msra.mxu0 %v1957
        %2090 = vmatprep.subr.mxu0 0.0
        %2091 = vmatpush1.msra.mxu0 %v1958
        %2092 = vmatprep.subr.mxu0 0.0
        %2093 = vmatpush1.msra.mxu0 %v1959
        %2094 = vmatprep.subr.mxu0 0.0
        %2095 = vmatpush1.msra.mxu0 %v1960
        %2096 = vmatprep.subr.mxu0 0.0
        %2097 = vmatpush1.msra.mxu0 %v1961
        %2098 = vmatprep.subr.mxu0 0.0
        %2099 = vmatpush1.msra.mxu0 %v1962
        %2100 = vmatprep.subr.mxu0 0.0
        %2101 = vmatpush1.msra.mxu0 %v1963
        %2102 = vmatprep.subr.mxu0 0.0
        %2103 = vmatpush1.msra.mxu0 %v1964
        %2104 = vmatprep.subr.mxu0 0.0
        %2105 = vmatpush1.msra.mxu0 %v1965
        %2106 = vmatprep.subr.mxu0 0.0
        %2107 = vmatpush1.msra.mxu0 %v1966
        %2108 = vmatprep.mubr.f32.mxu0 %v1902
        %2109 = vmatmul.mubr.f32.gmra.mrb[0].mxu0 %v1901
        %v2110 = vpop.f32.mrb[0].mxu0
        %v2111 = vadd.f32 %v2041, %v2110
        %v2112 = vpop.f32.mrb[0].mxu0
        %2113 = vdwg.mxu0
        %vm2114 = vcmask 31744
        %2115 = vst.msk [vmem:[%s520] sm:$0xff] %vm2114, %v2111
        %v2116 = vld [vmem:[%s516] sm:$0xff]
        %v2117 = vmul.f32 %v2111, 0.5
        %v2118 = vmul.f32 %v2117, 1.442695
        %v2119 = vpow.pop %v2118
        %2121 = vrot.lane.b32.xlu0 %v2119, 126
        %v2122 = vpop.permute.xlu0 %2121
        %v2124 = vmul.f32 %v2116, %v2122
        %v2125 = vadd.f32 %v2124, %v2111
        %v2126 = vld [vmem:[%s9] sm:$0xf]
        %v2127 = vld [vmem:[%s8] ss:$2 sm:$0xf]
        %2129 = vset.pattern.permute.xlu0 0
        %2130 = vperm.xlu0 %2129, %v2125
        %v2131 = vpop.permute.xlu0 %2130
        %v2134 = vlaneseq
        %v2135 = vshrl.u32 %v2134, 7
        %v2136 = vsub.s32 0, %v2135
        %v2137 = vrot.slane %v2127, %v2136
        %v2138 = vlaneseq
        %v2139 = vshrl.u32 %v2138, 7
        %v2140 = vsub.s32 1, %v2139
        %v2141 = vrot.slane %v2127, %v2140
        %v2142 = vlaneseq
        %v2143 = vshrl.u32 %v2142, 7
        %v2144 = vsub.s32 2, %v2143
        %v2145 = vrot.slane %v2127, %v2144
        %v2146 = vlaneseq
        %v2147 = vshrl.u32 %v2146, 7
        %v2148 = vsub.s32 3, %v2147
        %v2149 = vrot.slane %v2127, %v2148
        %v2154 = vmul.f32 %v2131, %v2137
        %v2155 = vmul.f32 %v2131, %v2141
        %v2156 = vmul.f32 %v2131, %v2145
        %v2157 = vmul.f32 %v2131, %v2149
        %v2159 = vlaneseq
        %v2160 = vshrl.u32 %v2159, 7
        %v2161 = vsub.s32 0, %v2160
        %v2162 = vrot.slane %v2126, %v2161
        %v2163 = vlaneseq
        %v2164 = vshrl.u32 %v2163, 7
        %v2165 = vsub.s32 1, %v2164
        %v2166 = vrot.slane %v2126, %v2165
        %v2167 = vlaneseq
        %v2168 = vshrl.u32 %v2167, 7
        %v2169 = vsub.s32 2, %v2168
        %v2170 = vrot.slane %v2126, %v2169
        %v2171 = vlaneseq
        %v2172 = vshrl.u32 %v2171, 7
        %v2173 = vsub.s32 3, %v2172
        %v2174 = vrot.slane %v2126, %v2173
        %v2179 = vadd.f32 %v2162, %v2154
        %v2180 = vadd.f32 %v2166, %v2155
        %v2181 = vadd.f32 %v2170, %v2156
        %v2182 = vadd.f32 %v2174, %v2157
        %s2183 = scalar_lea.vmem %s8, 1
        %v2184 = vld [vmem:[%s2183] ss:$2 sm:$0xf]
        %2185 = vset.pattern.permute.xlu0 1
        %2186 = vperm.xlu0 %2185, %v2125
        %v2187 = vpop.permute.xlu0 %2186
        %v2190 = vlaneseq
        %v2191 = vshrl.u32 %v2190, 7
        %v2192 = vsub.s32 0, %v2191
        %v2193 = vrot.slane %v2184, %v2192
        %v2194 = vlaneseq
        %v2195 = vshrl.u32 %v2194, 7
        %v2196 = vsub.s32 1, %v2195
        %v2197 = vrot.slane %v2184, %v2196
        %v2198 = vlaneseq
        %v2199 = vshrl.u32 %v2198, 7
        %v2200 = vsub.s32 2, %v2199
        %v2201 = vrot.slane %v2184, %v2200
        %v2202 = vlaneseq
        %v2203 = vshrl.u32 %v2202, 7
        %v2204 = vsub.s32 3, %v2203
        %v2205 = vrot.slane %v2184, %v2204
        %v2210 = vmul.f32 %v2187, %v2193
        %v2211 = vmul.f32 %v2187, %v2197
        %v2212 = vmul.f32 %v2187, %v2201
        %v2213 = vmul.f32 %v2187, %v2205
        %v2214 = vadd.f32 %v2179, %v2210
        %v2215 = vadd.f32 %v2180, %v2211
        %v2216 = vadd.f32 %v2181, %v2212
        %v2217 = vadd.f32 %v2182, %v2213
        %v2218 = vld [vmem:[%s10] sm:$0xf]
        %v2219 = vld [vmem:[%s11] sm:$0xf]
        %v2220 = vrot.slane %v2214, 4
        %v2221 = vadd.f32 %v2214, %v2220
        %v2222 = vrot.slane %v2221, 2
        %v2223 = vadd.f32 %v2221, %v2222
        %v2224 = vrot.slane %v2223, 1
        %v2225 = vadd.f32 %v2223, %v2224
        %v2226 = vrot.slane %v2215, 4
        %v2227 = vadd.f32 %v2215, %v2226
        %v2228 = vrot.slane %v2227, 2
        %v2229 = vadd.f32 %v2227, %v2228
        %v2230 = vrot.slane %v2229, 1
        %v2231 = vadd.f32 %v2229, %v2230
        %v2232 = vrot.slane %v2216, 4
        %v2233 = vadd.f32 %v2216, %v2232
        %v2234 = vrot.slane %v2233, 2
        %v2235 = vadd.f32 %v2233, %v2234
        %v2236 = vrot.slane %v2235, 1
        %v2237 = vadd.f32 %v2235, %v2236
        %v2238 = vrot.slane %v2217, 4
        %v2239 = vadd.f32 %v2217, %v2238
        %v2240 = vrot.slane %v2239, 2
        %v2241 = vadd.f32 %v2239, %v2240
        %v2242 = vrot.slane %v2241, 1
        %v2243 = vadd.f32 %v2241, %v2242
        %v2244 = vmul.f32 %v2225, %v1736
        %v2245 = vmul.f32 %v2231, %v1736
        %v2246 = vmul.f32 %v2237, %v1736
        %v2247 = vmul.f32 %v2243, %v1736
        %v2248 = vsub.f32 %v2214, %v2244
        %v2249 = vsub.f32 %v2215, %v2245
        %v2250 = vsub.f32 %v2216, %v2246
        %v2251 = vsub.f32 %v2217, %v2247
        %v2252 = vmul.f32 %v2248, %v2248
        %v2253 = vmul.f32 %v2249, %v2249
        %v2254 = vmul.f32 %v2250, %v2250
        %v2255 = vmul.f32 %v2251, %v2251
        %v2256 = vrot.slane %v2252, 4
        %v2257 = vadd.f32 %v2252, %v2256
        %v2258 = vrot.slane %v2257, 2
        %v2259 = vadd.f32 %v2257, %v2258
        %v2260 = vrot.slane %v2259, 1
        %v2261 = vadd.f32 %v2259, %v2260
        %v2262 = vrot.slane %v2253, 4
        %v2263 = vadd.f32 %v2253, %v2262
        %v2264 = vrot.slane %v2263, 2
        %v2265 = vadd.f32 %v2263, %v2264
        %v2266 = vrot.slane %v2265, 1
        %v2267 = vadd.f32 %v2265, %v2266
        %v2268 = vrot.slane %v2254, 4
        %v2269 = vadd.f32 %v2254, %v2268
        %v2270 = vrot.slane %v2269, 2
        %v2271 = vadd.f32 %v2269, %v2270
        %v2272 = vrot.slane %v2271, 1
        %v2273 = vadd.f32 %v2271, %v2272
        %v2274 = vrot.slane %v2255, 4
        %v2275 = vadd.f32 %v2255, %v2274
        %v2276 = vrot.slane %v2275, 2
        %v2277 = vadd.f32 %v2275, %v2276
        %v2278 = vrot.slane %v2277, 1
        %v2279 = vadd.f32 %v2277, %v2278
        %v2280 = vmul.f32 %v2261, %v1736
        %v2281 = vmul.f32 %v2267, %v1736
        %v2282 = vmul.f32 %v2273, %v1736
        %v2283 = vmul.f32 %v2279, %v1736
        %v2284 = vadd.f32 %v2280, 1e-05
        %v2285 = vadd.f32 %v2281, 1e-05
        %v2286 = vadd.f32 %v2282, 1e-05
        %v2287 = vadd.f32 %v2283, 1e-05
        %v2288 = vrsqrt.pop %v2284
        %v2289 = vrsqrt.pop %v2285
        %v2290 = vrsqrt.pop %v2286
        %v2291 = vrsqrt.pop %v2287
        %v2296 = vcombine.low %v2288, %v2289
        %v2297 = vcombine.low %v2290, %v2291
        %v2299 = vunpack.c.l.s4 1966171168
        %v2300 = vunpack.c.0.s8 %v2299
        %v2301 = vlaneseq
        %v2302 = vshrl.u32 %v2301, 7
        %v2303 = vsub.s32 %v2300, %v2302
        %v2304 = vrot.slane %v2296, %v2303
        %v2306 = vunpack.c.l.s4 1966171168
        %v2307 = vunpack.c.0.s8 %v2306
        %v2308 = vlaneseq
        %v2309 = vshrl.u32 %v2308, 7
        %v2310 = vsub.s32 %v2307, %v2309
        %v2311 = vrot.slane %v2297, %v2310
        %v2312 = vcombine.low %v2304, %v2311
        %v2314 = vunpack.c.l.s4 1966171168
        %v2315 = vunpack.c.0.s8 %v2314
        %v2316 = vlaneseq
        %v2317 = vshrl.u32 %v2316, 7
        %v2318 = vsub.s32 %v2315, %v2317
        %v2319 = vrot.slane %v2312, %v2318
        %v2321 = vmul.f32 %v2218, %v2319
        %v2323 = vlaneseq
        %v2324 = vshrl.u32 %v2323, 7
        %v2325 = vsub.s32 0, %v2324
        %v2326 = vrot.slane %v2321, %v2325
        %v2327 = vlaneseq
        %v2328 = vshrl.u32 %v2327, 7
        %v2329 = vsub.s32 1, %v2328
        %v2330 = vrot.slane %v2321, %v2329
        %v2331 = vlaneseq
        %v2332 = vshrl.u32 %v2331, 7
        %v2333 = vsub.s32 2, %v2332
        %v2334 = vrot.slane %v2321, %v2333
        %v2335 = vlaneseq
        %v2336 = vshrl.u32 %v2335, 7
        %v2337 = vsub.s32 3, %v2336
        %v2338 = vrot.slane %v2321, %v2337
        %v2343 = vmul.f32 %v2244, %v2326
        %v2344 = vmul.f32 %v2245, %v2330
        %v2345 = vmul.f32 %v2246, %v2334
        %v2346 = vmul.f32 %v2247, %v2338
        %v2351 = vcombine.low %v2343, %v2344
        %v2352 = vcombine.low %v2345, %v2346
        %v2354 = vunpack.c.l.s4 1966171168
        %v2355 = vunpack.c.0.s8 %v2354
        %v2356 = vlaneseq
        %v2357 = vshrl.u32 %v2356, 7
        %v2358 = vsub.s32 %v2355, %v2357
        %v2359 = vrot.slane %v2351, %v2358
        %v2361 = vunpack.c.l.s4 1966171168
        %v2362 = vunpack.c.0.s8 %v2361
        %v2363 = vlaneseq
        %v2364 = vshrl.u32 %v2363, 7
        %v2365 = vsub.s32 %v2362, %v2364
        %v2366 = vrot.slane %v2352, %v2365
        %v2367 = vcombine.low %v2359, %v2366
        %v2369 = vunpack.c.l.s4 1966171168
        %v2370 = vunpack.c.0.s8 %v2369
        %v2371 = vlaneseq
        %v2372 = vshrl.u32 %v2371, 7
        %v2373 = vsub.s32 %v2370, %v2372
        %v2374 = vrot.slane %v2367, %v2373
        %v2376 = vsub.f32 %v2219, %v2374
        %v2377 = vmul.f32 %v2214, %v2326
        %v2378 = vmul.f32 %v2215, %v2330
        %v2379 = vmul.f32 %v2216, %v2334
        %v2380 = vmul.f32 %v2217, %v2338
        %v2382 = vlaneseq
        %v2383 = vshrl.u32 %v2382, 7
        %v2384 = vsub.s32 0, %v2383
        %v2385 = vrot.slane %v2376, %v2384
        %v2386 = vlaneseq
        %v2387 = vshrl.u32 %v2386, 7
        %v2388 = vsub.s32 1, %v2387
        %v2389 = vrot.slane %v2376, %v2388
        %v2390 = vlaneseq
        %v2391 = vshrl.u32 %v2390, 7
        %v2392 = vsub.s32 2, %v2391
        %v2393 = vrot.slane %v2376, %v2392
        %v2394 = vlaneseq
        %v2395 = vshrl.u32 %v2394, 7
        %v2396 = vsub.s32 3, %v2395
        %v2397 = vrot.slane %v2376, %v2396
        %v2402 = vadd.f32 %v2377, %v2385
        %v2403 = vadd.f32 %v2378, %v2389
        %v2404 = vadd.f32 %v2379, %v2393
        %v2405 = vadd.f32 %v2380, %v2397
        %v2406 = vmax.f32 %v2402, 0.0
        %v2407 = vmax.f32 %v2403, 0.0
        %v2408 = vmax.f32 %v2404, 0.0
        %v2409 = vmax.f32 %v2405, 0.0
        %v2410 = vld [vmem:[%s12] sm:$0xff]
        %v2411 = vld [vmem:[%s12 + $0x8] sm:$0xff]
        %v2412 = vld [vmem:[%s12 + $0x10] sm:$0xff]
        %v2413 = vld [vmem:[%s12 + $0x18] sm:$0xf]
        %v2414 = vld [vmem:[%s12 + $0x1c] sm:$0xff]
        %v2415 = vld [vmem:[%s12 + $0x24] sm:$0xff]
        %v2416 = vld [vmem:[%s12 + $0x2c] sm:$0xff]
        %v2417 = vld [vmem:[%s12 + $0x34] sm:$0xf]
        %v2418 = vld [vmem:[%s12 + $0x38] sm:$0xff]
        %v2419 = vld [vmem:[%s12 + $0x40] sm:$0xff]
        %v2420 = vld [vmem:[%s12 + $0x48] sm:$0xff]
        %v2421 = vld [vmem:[%s12 + $0x50] sm:$0xf]
        %v2422 = vld [vmem:[%s12 + $0x54] sm:$0xff]
        %v2423 = vld [vmem:[%s12 + $0x5c] sm:$0xff]
        %v2424 = vld [vmem:[%s12 + $0x64] sm:$0xff]
        %v2425 = vld [vmem:[%s12 + $0x6c] sm:$0xf]
        %v2426 = vld [vmem:[%s12 + $0x70] sm:$0xff]
        %v2427 = vld [vmem:[%s12 + $0x78] sm:$0xff]
        %v2428 = vld [vmem:[%s12 + $0x80] sm:$0xff]
        %v2429 = vld [vmem:[%s12 + $0x88] sm:$0xf]
        %v2430 = vld [vmem:[%s12 + $0x8c] sm:$0xff]
        %v2431 = vld [vmem:[%s12 + $0x94] sm:$0xff]
        %v2432 = vld [vmem:[%s12 + $0x9c] sm:$0xff]
        %v2433 = vld [vmem:[%s12 + $0xa4] sm:$0xf]
        %v2434 = vld [vmem:[%s12 + $0xa8] sm:$0xff]
        %v2435 = vld [vmem:[%s12 + $0xb0] sm:$0xff]
        %v2436 = vld [vmem:[%s12 + $0xb8] sm:$0xff]
        %v2437 = vld [vmem:[%s12 + $0xc0] sm:$0xf]
        %v2438 = vld [vmem:[%s12 + $0xc4] sm:$0xff]
        %v2439 = vld [vmem:[%s12 + $0xcc] sm:$0xff]
        %v2440 = vld [vmem:[%s12 + $0xd4] sm:$0xff]
        %v2441 = vld [vmem:[%s12 + $0xdc] sm:$0xf]
        %v2442 = vld [vmem:[%s12 + $0xe0] sm:$0xff]
        %v2443 = vld [vmem:[%s12 + $0xe8] sm:$0xff]
        %v2444 = vld [vmem:[%s12 + $0xf0] sm:$0xff]
        %v2445 = vld [vmem:[%s12 + $0xf8] sm:$0xf]
        %v2446 = vld [vmem:[%s12 + $0xfc] sm:$0xff]
        %v2447 = vld [vmem:[%s12 + $0x104] sm:$0xff]
        %v2448 = vld [vmem:[%s12 + $0x10c] sm:$0xff]
        %v2449 = vld [vmem:[%s12 + $0x114] sm:$0xf]
        %v2450 = vld [vmem:[%s12 + $0x118] sm:$0xff]
        %v2451 = vld [vmem:[%s12 + $0x120] sm:$0xff]
        %v2452 = vld [vmem:[%s12 + $0x128] sm:$0xff]
        %v2453 = vld [vmem:[%s12 + $0x130] sm:$0xf]
        %v2454 = vld [vmem:[%s12 + $0x134] sm:$0xff]
        %v2455 = vld [vmem:[%s12 + $0x13c] sm:$0xff]
        %v2456 = vld [vmem:[%s12 + $0x144] sm:$0xff]
        %v2457 = vld [vmem:[%s12 + $0x14c] sm:$0xf]
        %v2458 = vld [vmem:[%s12 + $0x150] sm:$0xff]
        %v2459 = vld [vmem:[%s12 + $0x158] sm:$0xff]
        %v2460 = vld [vmem:[%s12 + $0x160] sm:$0xff]
        %v2461 = vld [vmem:[%s12 + $0x168] sm:$0xf]
        %v2462 = vld [vmem:[%s12 + $0x16c] sm:$0xff]
        %v2463 = vld [vmem:[%s12 + $0x174] sm:$0xff]
        %v2464 = vld [vmem:[%s12 + $0x17c] sm:$0xff]
        %v2465 = vld [vmem:[%s12 + $0x184] sm:$0xf]
        %v2466 = vld [vmem:[%s12 + $0x188] sm:$0xff]
        %v2467 = vld [vmem:[%s12 + $0x190] sm:$0xff]
        %v2468 = vld [vmem:[%s12 + $0x198] sm:$0xff]
        %v2469 = vld [vmem:[%s12 + $0x1a0] sm:$0xf]
        %v2470 = vld [vmem:[%s12 + $0x1a4] sm:$0xff]
        %v2471 = vld [vmem:[%s12 + $0x1ac] sm:$0xff]
        %v2472 = vld [vmem:[%s12 + $0x1b4] sm:$0xff]
        %v2473 = vld [vmem:[%s12 + $0x1bc] sm:$0xf]
        %v2474 = vld [vmem:[%s12 + $0x1c0] sm:$0xff]
        %v2475 = vld [vmem:[%s12 + $0x1c8] sm:$0xff]
        %v2476 = vld [vmem:[%s12 + $0x1d0] sm:$0xff]
        %v2477 = vld [vmem:[%s12 + $0x1d8] sm:$0xf]
        %v2478 = vld [vmem:[%s12 + $0x1dc] sm:$0xff]
        %v2479 = vld [vmem:[%s12 + $0x1e4] sm:$0xff]
        %v2480 = vld [vmem:[%s12 + $0x1ec] sm:$0xff]
        %v2481 = vld [vmem:[%s12 + $0x1f4] sm:$0xf]
        %v2482 = vld [vmem:[%s12 + $0x1f8] sm:$0xff]
        %v2483 = vld [vmem:[%s12 + $0x200] sm:$0xff]
        %v2484 = vld [vmem:[%s12 + $0x208] sm:$0xff]
        %v2485 = vld [vmem:[%s12 + $0x210] sm:$0xf]
        %v2486 = vld [vmem:[%s12 + $0x214] sm:$0xff]
        %v2487 = vld [vmem:[%s12 + $0x21c] sm:$0xff]
        %v2488 = vld [vmem:[%s12 + $0x224] sm:$0xff]
        %v2489 = vld [vmem:[%s12 + $0x22c] sm:$0xf]
        %v2490 = vld [vmem:[%s12 + $0x230] sm:$0xff]
        %v2491 = vld [vmem:[%s12 + $0x238] sm:$0xff]
        %v2492 = vld [vmem:[%s12 + $0x240] sm:$0xff]
        %v2493 = vld [vmem:[%s12 + $0x248] sm:$0xf]
        %v2494 = vld [vmem:[%s12 + $0x24c] sm:$0xff]
        %v2495 = vld [vmem:[%s12 + $0x254] sm:$0xff]
        %v2496 = vld [vmem:[%s12 + $0x25c] sm:$0xff]
        %v2497 = vld [vmem:[%s12 + $0x264] sm:$0xf]
        %v2498 = vld [vmem:[%s12 + $0x268] sm:$0xff]
        %v2499 = vld [vmem:[%s12 + $0x270] sm:$0xff]
        %v2500 = vld [vmem:[%s12 + $0x278] sm:$0xff]
        %v2501 = vld [vmem:[%s12 + $0x280] sm:$0xf]
        %v2502 = vld [vmem:[%s12 + $0x284] sm:$0xff]
        %v2503 = vld [vmem:[%s12 + $0x28c] sm:$0xff]
        %v2504 = vld [vmem:[%s12 + $0x294] sm:$0xff]
        %v2505 = vld [vmem:[%s12 + $0x29c] sm:$0xf]
        %v2506 = vld [vmem:[%s12 + $0x2a0] sm:$0xff]
        %v2507 = vld [vmem:[%s12 + $0x2a8] sm:$0xff]
        %v2508 = vld [vmem:[%s12 + $0x2b0] sm:$0xff]
        %v2509 = vld [vmem:[%s12 + $0x2b8] sm:$0xf]
        %v2510 = vld [vmem:[%s12 + $0x2bc] sm:$0xff]
        %v2511 = vld [vmem:[%s12 + $0x2c4] sm:$0xff]
        %v2512 = vld [vmem:[%s12 + $0x2cc] sm:$0xff]
        %v2513 = vld [vmem:[%s12 + $0x2d4] sm:$0xf]
        %v2514 = vld [vmem:[%s12 + $0x2d8] sm:$0xff]
        %v2515 = vld [vmem:[%s12 + $0x2e0] sm:$0xff]
        %v2516 = vld [vmem:[%s12 + $0x2e8] sm:$0xff]
        %v2517 = vld [vmem:[%s12 + $0x2f0] sm:$0xf]
        %v2518 = vld [vmem:[%s12 + $0x2f4] sm:$0xff]
        %v2519 = vld [vmem:[%s12 + $0x2fc] sm:$0xff]
        %v2520 = vld [vmem:[%s12 + $0x304] sm:$0xff]
        %v2521 = vld [vmem:[%s12 + $0x30c] sm:$0xf]
        %v2522 = vld [vmem:[%s12 + $0x310] sm:$0xff]
        %v2523 = vld [vmem:[%s12 + $0x318] sm:$0xff]
        %v2524 = vld [vmem:[%s12 + $0x320] sm:$0xff]
        %v2525 = vld [vmem:[%s12 + $0x328] sm:$0xf]
        %v2526 = vld [vmem:[%s12 + $0x32c] sm:$0xff]
        %v2527 = vld [vmem:[%s12 + $0x334] sm:$0xff]
        %v2528 = vld [vmem:[%s12 + $0x33c] sm:$0xff]
        %v2529 = vld [vmem:[%s12 + $0x344] sm:$0xf]
        %v2530 = vld [vmem:[%s12 + $0x348] sm:$0xff]
        %v2531 = vld [vmem:[%s12 + $0x350] sm:$0xff]
        %v2532 = vld [vmem:[%s12 + $0x358] sm:$0xff]
        %v2533 = vld [vmem:[%s12 + $0x360] sm:$0xf]
        %v2534 = vld [vmem:[%s12 + $0x364] sm:$0xff]
        %v2535 = vld [vmem:[%s12 + $0x36c] sm:$0xff]
        %v2536 = vld [vmem:[%s12 + $0x374] sm:$0xff]
        %v2537 = vld [vmem:[%s12 + $0x37c] sm:$0xf]
        %v2538 = vld [vmem:[%s12 + $0x380] sm:$0xff]
        %v2539 = vld [vmem:[%s12 + $0x388] sm:$0xff]
        %v2540 = vld [vmem:[%s12 + $0x390] sm:$0xff]
        %v2541 = vld [vmem:[%s12 + $0x398] sm:$0xf]
        %v2542 = vld [vmem:[%s12 + $0x39c] sm:$0xff]
        %v2543 = vld [vmem:[%s12 + $0x3a4] sm:$0xff]
        %v2544 = vld [vmem:[%s12 + $0x3ac] sm:$0xff]
        %v2545 = vld [vmem:[%s12 + $0x3b4] sm:$0xf]
        %v2546 = vld [vmem:[%s12 + $0x3b8] sm:$0xff]
        %v2547 = vld [vmem:[%s12 + $0x3c0] sm:$0xff]
        %v2548 = vld [vmem:[%s12 + $0x3c8] sm:$0xff]
        %v2549 = vld [vmem:[%s12 + $0x3d0] sm:$0xf]
        %v2550 = vld [vmem:[%s12 + $0x3d4] sm:$0xff]
        %v2551 = vld [vmem:[%s12 + $0x3dc] sm:$0xff]
        %v2552 = vld [vmem:[%s12 + $0x3e4] sm:$0xff]
        %v2553 = vld [vmem:[%s12 + $0x3ec] sm:$0xf]
        %v2554 = vld [vmem:[%s12 + $0x3f0] sm:$0xff]
        %v2555 = vld [vmem:[%s12 + $0x3f8] sm:$0xff]
        %v2556 = vld [vmem:[%s12 + $0x400] sm:$0xff]
        %v2557 = vld [vmem:[%s12 + $0x408] sm:$0xf]
        %v2558 = vld [vmem:[%s12 + $0x40c] sm:$0xff]
        %v2559 = vld [vmem:[%s12 + $0x414] sm:$0xff]
        %v2560 = vld [vmem:[%s12 + $0x41c] sm:$0xff]
        %v2561 = vld [vmem:[%s12 + $0x424] sm:$0xf]
        %v2562 = vld [vmem:[%s12 + $0x428] sm:$0xff]
        %v2563 = vld [vmem:[%s12 + $0x430] sm:$0xff]
        %v2564 = vld [vmem:[%s12 + $0x438] sm:$0xff]
        %v2565 = vld [vmem:[%s12 + $0x440] sm:$0xf]
        %v2566 = vld [vmem:[%s12 + $0x444] sm:$0xff]
        %v2567 = vld [vmem:[%s12 + $0x44c] sm:$0xff]
        %v2568 = vld [vmem:[%s12 + $0x454] sm:$0xff]
        %v2569 = vld [vmem:[%s12 + $0x45c] sm:$0xf]
        %v2570 = vld [vmem:[%s12 + $0x460] sm:$0xff]
        %v2571 = vld [vmem:[%s12 + $0x468] sm:$0xff]
        %v2572 = vld [vmem:[%s12 + $0x470] sm:$0xff]
        %v2573 = vld [vmem:[%s12 + $0x478] sm:$0xf]
        %v2574 = vld [vmem:[%s12 + $0x47c] sm:$0xff]
        %v2575 = vld [vmem:[%s12 + $0x484] sm:$0xff]
        %v2576 = vld [vmem:[%s12 + $0x48c] sm:$0xff]
        %v2577 = vld [vmem:[%s12 + $0x494] sm:$0xf]
        %v2578 = vld [vmem:[%s12 + $0x498] sm:$0xff]
        %v2579 = vld [vmem:[%s12 + $0x4a0] sm:$0xff]
        %v2580 = vld [vmem:[%s12 + $0x4a8] sm:$0xff]
        %v2581 = vld [vmem:[%s12 + $0x4b0] sm:$0xf]
        %v2582 = vld [vmem:[%s12 + $0x4b4] sm:$0xff]
        %v2583 = vld [vmem:[%s12 + $0x4bc] sm:$0xff]
        %v2584 = vld [vmem:[%s12 + $0x4c4] sm:$0xff]
        %v2585 = vld [vmem:[%s12 + $0x4cc] sm:$0xf]
        %v2586 = vld [vmem:[%s12 + $0x4d0] sm:$0xff]
        %v2587 = vld [vmem:[%s12 + $0x4d8] sm:$0xff]
        %v2588 = vld [vmem:[%s12 + $0x4e0] sm:$0xff]
        %v2589 = vld [vmem:[%s12 + $0x4e8] sm:$0xf]
        %v2590 = vld [vmem:[%s12 + $0x4ec] sm:$0xff]
        %v2591 = vld [vmem:[%s12 + $0x4f4] sm:$0xff]
        %v2592 = vld [vmem:[%s12 + $0x4fc] sm:$0xff]
        %v2593 = vld [vmem:[%s12 + $0x504] sm:$0xf]
        %v2594 = vld [vmem:[%s12 + $0x508] sm:$0xff]
        %v2595 = vld [vmem:[%s12 + $0x510] sm:$0xff]
        %v2596 = vld [vmem:[%s12 + $0x518] sm:$0xff]
        %v2597 = vld [vmem:[%s12 + $0x520] sm:$0xf]
        %v2598 = vld [vmem:[%s12 + $0x524] sm:$0xff]
        %v2599 = vld [vmem:[%s12 + $0x52c] sm:$0xff]
        %v2600 = vld [vmem:[%s12 + $0x534] sm:$0xff]
        %v2601 = vld [vmem:[%s12 + $0x53c] sm:$0xf]
        %v2602 = vld [vmem:[%s12 + $0x540] sm:$0xff]
        %v2603 = vld [vmem:[%s12 + $0x548] sm:$0xff]
        %v2604 = vld [vmem:[%s12 + $0x550] sm:$0xff]
        %v2605 = vld [vmem:[%s12 + $0x558] sm:$0xf]
        %v2606 = vld [vmem:[%s12 + $0x55c] sm:$0xff]
        %v2607 = vld [vmem:[%s12 + $0x564] sm:$0xff]
        %v2608 = vld [vmem:[%s12 + $0x56c] sm:$0xff]
        %v2609 = vld [vmem:[%s12 + $0x574] sm:$0xf]
        %v2610 = vld [vmem:[%s12 + $0x578] sm:$0xff]
        %v2611 = vld [vmem:[%s12 + $0x580] sm:$0xff]
        %v2612 = vld [vmem:[%s12 + $0x588] sm:$0xff]
        %v2613 = vld [vmem:[%s12 + $0x590] sm:$0xf]
        %v2614 = vld [vmem:[%s12 + $0x594] sm:$0xff]
        %v2615 = vld [vmem:[%s12 + $0x59c] sm:$0xff]
        %v2616 = vld [vmem:[%s12 + $0x5a4] sm:$0xff]
        %v2617 = vld [vmem:[%s12 + $0x5ac] sm:$0xf]
        %v2618 = vld [vmem:[%s12 + $0x5b0] sm:$0xff]
        %v2619 = vld [vmem:[%s12 + $0x5b8] sm:$0xff]
        %v2620 = vld [vmem:[%s12 + $0x5c0] sm:$0xff]
        %v2621 = vld [vmem:[%s12 + $0x5c8] sm:$0xf]
        %v2622 = vld [vmem:[%s12 + $0x5cc] sm:$0xff]
        %v2623 = vld [vmem:[%s12 + $0x5d4] sm:$0xff]
        %v2624 = vld [vmem:[%s12 + $0x5dc] sm:$0xff]
        %v2625 = vld [vmem:[%s12 + $0x5e4] sm:$0xf]
        %v2626 = vld [vmem:[%s12 + $0x5e8] sm:$0xff]
        %v2627 = vld [vmem:[%s12 + $0x5f0] sm:$0xff]
        %v2628 = vld [vmem:[%s12 + $0x5f8] sm:$0xff]
        %v2629 = vld [vmem:[%s12 + $0x600] sm:$0xf]
        %v2630 = vld [vmem:[%s12 + $0x604] sm:$0xff]
        %v2631 = vld [vmem:[%s12 + $0x60c] sm:$0xff]
        %v2632 = vld [vmem:[%s12 + $0x614] sm:$0xff]
        %v2633 = vld [vmem:[%s12 + $0x61c] sm:$0xf]
        %v2634 = vld [vmem:[%s12 + $0x620] sm:$0xff]
        %v2635 = vld [vmem:[%s12 + $0x628] sm:$0xff]
        %v2636 = vld [vmem:[%s12 + $0x630] sm:$0xff]
        %v2637 = vld [vmem:[%s12 + $0x638] sm:$0xf]
        %v2638 = vld [vmem:[%s12 + $0x63c] sm:$0xff]
        %v2639 = vld [vmem:[%s12 + $0x644] sm:$0xff]
        %v2640 = vld [vmem:[%s12 + $0x64c] sm:$0xff]
        %v2641 = vld [vmem:[%s12 + $0x654] sm:$0xf]
        %v2642 = vld [vmem:[%s12 + $0x658] sm:$0xff]
        %v2643 = vld [vmem:[%s12 + $0x660] sm:$0xff]
        %v2644 = vld [vmem:[%s12 + $0x668] sm:$0xff]
        %v2645 = vld [vmem:[%s12 + $0x670] sm:$0xf]
        %v2646 = vld [vmem:[%s12 + $0x674] sm:$0xff]
        %v2647 = vld [vmem:[%s12 + $0x67c] sm:$0xff]
        %v2648 = vld [vmem:[%s12 + $0x684] sm:$0xff]
        %v2649 = vld [vmem:[%s12 + $0x68c] sm:$0xf]
        %v2650 = vld [vmem:[%s12 + $0x690] sm:$0xff]
        %v2651 = vld [vmem:[%s12 + $0x698] sm:$0xff]
        %v2652 = vld [vmem:[%s12 + $0x6a0] sm:$0xff]
        %v2653 = vld [vmem:[%s12 + $0x6a8] sm:$0xf]
        %v2654 = vld [vmem:[%s12 + $0x6ac] sm:$0xff]
        %v2655 = vld [vmem:[%s12 + $0x6b4] sm:$0xff]
        %v2656 = vld [vmem:[%s12 + $0x6bc] sm:$0xff]
        %v2657 = vld [vmem:[%s12 + $0x6c4] sm:$0xf]
        %v2658 = vld [vmem:[%s12 + $0x6c8] sm:$0xff]
        %v2659 = vld [vmem:[%s12 + $0x6d0] sm:$0xff]
        %v2660 = vld [vmem:[%s12 + $0x6d8] sm:$0xff]
        %v2661 = vld [vmem:[%s12 + $0x6e0] sm:$0xf]
        %v2662 = vld [vmem:[%s12 + $0x6e4] sm:$0xff]
        %v2663 = vld [vmem:[%s12 + $0x6ec] sm:$0xff]
        %v2664 = vld [vmem:[%s12 + $0x6f4] sm:$0xff]
        %v2665 = vld [vmem:[%s12 + $0x6fc] sm:$0xf]
        %v2666 = vunpack.c.l.bf16 %v2410
        %v2667 = vunpack.c.h.bf16 %v2410
        %v2668 = vunpack.c.l.bf16 %v2411
        %v2669 = vunpack.c.h.bf16 %v2411
        %v2670 = vunpack.c.l.bf16 %v2412
        %v2671 = vunpack.c.h.bf16 %v2412
        %v2672 = vunpack.c.l.bf16 %v2413
        %v2673 = vunpack.c.l.bf16 %v2414
        %v2674 = vunpack.c.h.bf16 %v2414
        %v2675 = vunpack.c.l.bf16 %v2415
        %v2676 = vunpack.c.h.bf16 %v2415
        %v2677 = vunpack.c.l.bf16 %v2416
        %v2678 = vunpack.c.h.bf16 %v2416
        %v2679 = vunpack.c.l.bf16 %v2417
        %v2680 = vunpack.c.l.bf16 %v2418
        %v2681 = vunpack.c.h.bf16 %v2418
        %v2682 = vunpack.c.l.bf16 %v2419
        %v2683 = vunpack.c.h.bf16 %v2419
        %v2684 = vunpack.c.l.bf16 %v2420
        %v2685 = vunpack.c.h.bf16 %v2420
        %v2686 = vunpack.c.l.bf16 %v2421
        %v2687 = vunpack.c.l.bf16 %v2422
        %v2688 = vunpack.c.h.bf16 %v2422
        %v2689 = vunpack.c.l.bf16 %v2423
        %v2690 = vunpack.c.h.bf16 %v2423
        %v2691 = vunpack.c.l.bf16 %v2424
        %v2692 = vunpack.c.h.bf16 %v2424
        %v2693 = vunpack.c.l.bf16 %v2425
        %v2694 = vunpack.c.l.bf16 %v2426
        %v2695 = vunpack.c.h.bf16 %v2426
        %v2696 = vunpack.c.l.bf16 %v2427
        %v2697 = vunpack.c.h.bf16 %v2427
        %v2698 = vunpack.c.l.bf16 %v2428
        %v2699 = vunpack.c.h.bf16 %v2428
        %v2700 = vunpack.c.l.bf16 %v2429
        %v2701 = vunpack.c.l.bf16 %v2430
        %v2702 = vunpack.c.h.bf16 %v2430
        %v2703 = vunpack.c.l.bf16 %v2431
        %v2704 = vunpack.c.h.bf16 %v2431
        %v2705 = vunpack.c.l.bf16 %v2432
        %v2706 = vunpack.c.h.bf16 %v2432
        %v2707 = vunpack.c.l.bf16 %v2433
        %v2708 = vunpack.c.l.bf16 %v2434
        %v2709 = vunpack.c.h.bf16 %v2434
        %v2710 = vunpack.c.l.bf16 %v2435
        %v2711 = vunpack.c.h.bf16 %v2435
        %v2712 = vunpack.c.l.bf16 %v2436
        %v2713 = vunpack.c.h.bf16 %v2436
        %v2714 = vunpack.c.l.bf16 %v2437
        %v2715 = vunpack.c.l.bf16 %v2438
        %v2716 = vunpack.c.h.bf16 %v2438
        %v2717 = vunpack.c.l.bf16 %v2439
        %v2718 = vunpack.c.h.bf16 %v2439
        %v2719 = vunpack.c.l.bf16 %v2440
        %v2720 = vunpack.c.h.bf16 %v2440
        %v2721 = vunpack.c.l.bf16 %v2441
        %v2722 = vunpack.c.l.bf16 %v2442
        %v2723 = vunpack.c.h.bf16 %v2442
        %v2724 = vunpack.c.l.bf16 %v2443
        %v2725 = vunpack.c.h.bf16 %v2443
        %v2726 = vunpack.c.l.bf16 %v2444
        %v2727 = vunpack.c.h.bf16 %v2444
        %v2728 = vunpack.c.l.bf16 %v2445
        %v2729 = vunpack.c.l.bf16 %v2446
        %v2730 = vunpack.c.h.bf16 %v2446
        %v2731 = vunpack.c.l.bf16 %v2447
        %v2732 = vunpack.c.h.bf16 %v2447
        %v2733 = vunpack.c.l.bf16 %v2448
        %v2734 = vunpack.c.h.bf16 %v2448
        %v2735 = vunpack.c.l.bf16 %v2449
        %v2736 = vunpack.c.l.bf16 %v2450
        %v2737 = vunpack.c.h.bf16 %v2450
        %v2738 = vunpack.c.l.bf16 %v2451
        %v2739 = vunpack.c.h.bf16 %v2451
        %v2740 = vunpack.c.l.bf16 %v2452
        %v2741 = vunpack.c.h.bf16 %v2452
        %v2742 = vunpack.c.l.bf16 %v2453
        %v2743 = vunpack.c.l.bf16 %v2454
        %v2744 = vunpack.c.h.bf16 %v2454
        %v2745 = vunpack.c.l.bf16 %v2455
        %v2746 = vunpack.c.h.bf16 %v2455
        %v2747 = vunpack.c.l.bf16 %v2456
        %v2748 = vunpack.c.h.bf16 %v2456
        %v2749 = vunpack.c.l.bf16 %v2457
        %v2750 = vunpack.c.l.bf16 %v2458
        %v2751 = vunpack.c.h.bf16 %v2458
        %v2752 = vunpack.c.l.bf16 %v2459
        %v2753 = vunpack.c.h.bf16 %v2459
        %v2754 = vunpack.c.l.bf16 %v2460
        %v2755 = vunpack.c.h.bf16 %v2460
        %v2756 = vunpack.c.l.bf16 %v2461
        %v2757 = vunpack.c.l.bf16 %v2462
        %v2758 = vunpack.c.h.bf16 %v2462
        %v2759 = vunpack.c.l.bf16 %v2463
        %v2760 = vunpack.c.h.bf16 %v2463
        %v2761 = vunpack.c.l.bf16 %v2464
        %v2762 = vunpack.c.h.bf16 %v2464
        %v2763 = vunpack.c.l.bf16 %v2465
        %v2764 = vunpack.c.l.bf16 %v2466
        %v2765 = vunpack.c.h.bf16 %v2466
        %v2766 = vunpack.c.l.bf16 %v2467
        %v2767 = vunpack.c.h.bf16 %v2467
        %v2768 = vunpack.c.l.bf16 %v2468
        %v2769 = vunpack.c.h.bf16 %v2468
        %v2770 = vunpack.c.l.bf16 %v2469
        %v2771 = vunpack.c.l.bf16 %v2470
        %v2772 = vunpack.c.h.bf16 %v2470
        %v2773 = vunpack.c.l.bf16 %v2471
        %v2774 = vunpack.c.h.bf16 %v2471
        %v2775 = vunpack.c.l.bf16 %v2472
        %v2776 = vunpack.c.h.bf16 %v2472
        %v2777 = vunpack.c.l.bf16 %v2473
        %v2778 = vunpack.c.l.bf16 %v2474
        %v2779 = vunpack.c.h.bf16 %v2474
        %v2780 = vunpack.c.l.bf16 %v2475
        %v2781 = vunpack.c.h.bf16 %v2475
        %v2782 = vunpack.c.l.bf16 %v2476
        %v2783 = vunpack.c.h.bf16 %v2476
        %v2784 = vunpack.c.l.bf16 %v2477
        %v2785 = vunpack.c.l.bf16 %v2478
        %v2786 = vunpack.c.h.bf16 %v2478
        %v2787 = vunpack.c.l.bf16 %v2479
        %v2788 = vunpack.c.h.bf16 %v2479
        %v2789 = vunpack.c.l.bf16 %v2480
        %v2790 = vunpack.c.h.bf16 %v2480
        %v2791 = vunpack.c.l.bf16 %v2481
        %v2792 = vunpack.c.l.bf16 %v2482
        %v2793 = vunpack.c.h.bf16 %v2482
        %v2794 = vunpack.c.l.bf16 %v2483
        %v2795 = vunpack.c.h.bf16 %v2483
        %v2796 = vunpack.c.l.bf16 %v2484
        %v2797 = vunpack.c.h.bf16 %v2484
        %v2798 = vunpack.c.l.bf16 %v2485
        %v2799 = vunpack.c.l.bf16 %v2486
        %v2800 = vunpack.c.h.bf16 %v2486
        %v2801 = vunpack.c.l.bf16 %v2487
        %v2802 = vunpack.c.h.bf16 %v2487
        %v2803 = vunpack.c.l.bf16 %v2488
        %v2804 = vunpack.c.h.bf16 %v2488
        %v2805 = vunpack.c.l.bf16 %v2489
        %v2806 = vunpack.c.l.bf16 %v2490
        %v2807 = vunpack.c.h.bf16 %v2490
        %v2808 = vunpack.c.l.bf16 %v2491
        %v2809 = vunpack.c.h.bf16 %v2491
        %v2810 = vunpack.c.l.bf16 %v2492
        %v2811 = vunpack.c.h.bf16 %v2492
        %v2812 = vunpack.c.l.bf16 %v2493
        %v2813 = vunpack.c.l.bf16 %v2494
        %v2814 = vunpack.c.h.bf16 %v2494
        %v2815 = vunpack.c.l.bf16 %v2495
        %v2816 = vunpack.c.h.bf16 %v2495
        %v2817 = vunpack.c.l.bf16 %v2496
        %v2818 = vunpack.c.h.bf16 %v2496
        %v2819 = vunpack.c.l.bf16 %v2497
        %v2820 = vunpack.c.l.bf16 %v2498
        %v2821 = vunpack.c.h.bf16 %v2498
        %v2822 = vunpack.c.l.bf16 %v2499
        %v2823 = vunpack.c.h.bf16 %v2499
        %v2824 = vunpack.c.l.bf16 %v2500
        %v2825 = vunpack.c.h.bf16 %v2500
        %v2826 = vunpack.c.l.bf16 %v2501
        %v2827 = vunpack.c.l.bf16 %v2502
        %v2828 = vunpack.c.h.bf16 %v2502
        %v2829 = vunpack.c.l.bf16 %v2503
        %v2830 = vunpack.c.h.bf16 %v2503
        %v2831 = vunpack.c.l.bf16 %v2504
        %v2832 = vunpack.c.h.bf16 %v2504
        %v2833 = vunpack.c.l.bf16 %v2505
        %v2834 = vunpack.c.l.bf16 %v2506
        %v2835 = vunpack.c.h.bf16 %v2506
        %v2836 = vunpack.c.l.bf16 %v2507
        %v2837 = vunpack.c.h.bf16 %v2507
        %v2838 = vunpack.c.l.bf16 %v2508
        %v2839 = vunpack.c.h.bf16 %v2508
        %v2840 = vunpack.c.l.bf16 %v2509
        %v2841 = vunpack.c.l.bf16 %v2510
        %v2842 = vunpack.c.h.bf16 %v2510
        %v2843 = vunpack.c.l.bf16 %v2511
        %v2844 = vunpack.c.h.bf16 %v2511
        %v2845 = vunpack.c.l.bf16 %v2512
        %v2846 = vunpack.c.h.bf16 %v2512
        %v2847 = vunpack.c.l.bf16 %v2513
        %v2848 = vunpack.c.l.bf16 %v2514
        %v2849 = vunpack.c.h.bf16 %v2514
        %v2850 = vunpack.c.l.bf16 %v2515
        %v2851 = vunpack.c.h.bf16 %v2515
        %v2852 = vunpack.c.l.bf16 %v2516
        %v2853 = vunpack.c.h.bf16 %v2516
        %v2854 = vunpack.c.l.bf16 %v2517
        %v2855 = vunpack.c.l.bf16 %v2518
        %v2856 = vunpack.c.h.bf16 %v2518
        %v2857 = vunpack.c.l.bf16 %v2519
        %v2858 = vunpack.c.h.bf16 %v2519
        %v2859 = vunpack.c.l.bf16 %v2520
        %v2860 = vunpack.c.h.bf16 %v2520
        %v2861 = vunpack.c.l.bf16 %v2521
        %v2862 = vunpack.c.l.bf16 %v2522
        %v2863 = vunpack.c.h.bf16 %v2522
        %v2864 = vunpack.c.l.bf16 %v2523
        %v2865 = vunpack.c.h.bf16 %v2523
        %v2866 = vunpack.c.l.bf16 %v2524
        %v2867 = vunpack.c.h.bf16 %v2524
        %v2868 = vunpack.c.l.bf16 %v2525
        %v2869 = vunpack.c.l.bf16 %v2526
        %v2870 = vunpack.c.h.bf16 %v2526
        %v2871 = vunpack.c.l.bf16 %v2527
        %v2872 = vunpack.c.h.bf16 %v2527
        %v2873 = vunpack.c.l.bf16 %v2528
        %v2874 = vunpack.c.h.bf16 %v2528
        %v2875 = vunpack.c.l.bf16 %v2529
        %v2876 = vunpack.c.l.bf16 %v2530
        %v2877 = vunpack.c.h.bf16 %v2530
        %v2878 = vunpack.c.l.bf16 %v2531
        %v2879 = vunpack.c.h.bf16 %v2531
        %v2880 = vunpack.c.l.bf16 %v2532
        %v2881 = vunpack.c.h.bf16 %v2532
        %v2882 = vunpack.c.l.bf16 %v2533
        %v2883 = vunpack.c.l.bf16 %v2534
        %v2884 = vunpack.c.h.bf16 %v2534
        %v2885 = vunpack.c.l.bf16 %v2535
        %v2886 = vunpack.c.h.bf16 %v2535
        %v2887 = vunpack.c.l.bf16 %v2536
        %v2888 = vunpack.c.h.bf16 %v2536
        %v2889 = vunpack.c.l.bf16 %v2537
        %v2890 = vunpack.c.l.bf16 %v2538
        %v2891 = vunpack.c.h.bf16 %v2538
        %v2892 = vunpack.c.l.bf16 %v2539
        %v2893 = vunpack.c.h.bf16 %v2539
        %v2894 = vunpack.c.l.bf16 %v2540
        %v2895 = vunpack.c.h.bf16 %v2540
        %v2896 = vunpack.c.l.bf16 %v2541
        %v2897 = vunpack.c.l.bf16 %v2542
        %v2898 = vunpack.c.h.bf16 %v2542
        %v2899 = vunpack.c.l.bf16 %v2543
        %v2900 = vunpack.c.h.bf16 %v2543
        %v2901 = vunpack.c.l.bf16 %v2544
        %v2902 = vunpack.c.h.bf16 %v2544
        %v2903 = vunpack.c.l.bf16 %v2545
        %v2904 = vunpack.c.l.bf16 %v2546
        %v2905 = vunpack.c.h.bf16 %v2546
        %v2906 = vunpack.c.l.bf16 %v2547
        %v2907 = vunpack.c.h.bf16 %v2547
        %v2908 = vunpack.c.l.bf16 %v2548
        %v2909 = vunpack.c.h.bf16 %v2548
        %v2910 = vunpack.c.l.bf16 %v2549
        %v2911 = vunpack.c.l.bf16 %v2550
        %v2912 = vunpack.c.h.bf16 %v2550
        %v2913 = vunpack.c.l.bf16 %v2551
        %v2914 = vunpack.c.h.bf16 %v2551
        %v2915 = vunpack.c.l.bf16 %v2552
        %v2916 = vunpack.c.h.bf16 %v2552
        %v2917 = vunpack.c.l.bf16 %v2553
        %v2918 = vunpack.c.l.bf16 %v2554
        %v2919 = vunpack.c.h.bf16 %v2554
        %v2920 = vunpack.c.l.bf16 %v2555
        %v2921 = vunpack.c.h.bf16 %v2555
        %v2922 = vunpack.c.l.bf16 %v2556
        %v2923 = vunpack.c.h.bf16 %v2556
        %v2924 = vunpack.c.l.bf16 %v2557
        %v2925 = vunpack.c.l.bf16 %v2558
        %v2926 = vunpack.c.h.bf16 %v2558
        %v2927 = vunpack.c.l.bf16 %v2559
        %v2928 = vunpack.c.h.bf16 %v2559
        %v2929 = vunpack.c.l.bf16 %v2560
        %v2930 = vunpack.c.h.bf16 %v2560
        %v2931 = vunpack.c.l.bf16 %v2561
        %v2932 = vunpack.c.l.bf16 %v2562
        %v2933 = vunpack.c.h.bf16 %v2562
        %v2934 = vunpack.c.l.bf16 %v2563
        %v2935 = vunpack.c.h.bf16 %v2563
        %v2936 = vunpack.c.l.bf16 %v2564
        %v2937 = vunpack.c.h.bf16 %v2564
        %v2938 = vunpack.c.l.bf16 %v2565
        %v2939 = vunpack.c.l.bf16 %v2566
        %v2940 = vunpack.c.h.bf16 %v2566
        %v2941 = vunpack.c.l.bf16 %v2567
        %v2942 = vunpack.c.h.bf16 %v2567
        %v2943 = vunpack.c.l.bf16 %v2568
        %v2944 = vunpack.c.h.bf16 %v2568
        %v2945 = vunpack.c.l.bf16 %v2569
        %v2946 = vunpack.c.l.bf16 %v2570
        %v2947 = vunpack.c.h.bf16 %v2570
        %v2948 = vunpack.c.l.bf16 %v2571
        %v2949 = vunpack.c.h.bf16 %v2571
        %v2950 = vunpack.c.l.bf16 %v2572
        %v2951 = vunpack.c.h.bf16 %v2572
        %v2952 = vunpack.c.l.bf16 %v2573
        %v2953 = vunpack.c.l.bf16 %v2574
        %v2954 = vunpack.c.h.bf16 %v2574
        %v2955 = vunpack.c.l.bf16 %v2575
        %v2956 = vunpack.c.h.bf16 %v2575
        %v2957 = vunpack.c.l.bf16 %v2576
        %v2958 = vunpack.c.h.bf16 %v2576
        %v2959 = vunpack.c.l.bf16 %v2577
        %v2960 = vunpack.c.l.bf16 %v2578
        %v2961 = vunpack.c.h.bf16 %v2578
        %v2962 = vunpack.c.l.bf16 %v2579
        %v2963 = vunpack.c.h.bf16 %v2579
        %v2964 = vunpack.c.l.bf16 %v2580
        %v2965 = vunpack.c.h.bf16 %v2580
        %v2966 = vunpack.c.l.bf16 %v2581
        %v2967 = vunpack.c.l.bf16 %v2582
        %v2968 = vunpack.c.h.bf16 %v2582
        %v2969 = vunpack.c.l.bf16 %v2583
        %v2970 = vunpack.c.h.bf16 %v2583
        %v2971 = vunpack.c.l.bf16 %v2584
        %v2972 = vunpack.c.h.bf16 %v2584
        %v2973 = vunpack.c.l.bf16 %v2585
        %v2974 = vunpack.c.l.bf16 %v2586
        %v2975 = vunpack.c.h.bf16 %v2586
        %v2976 = vunpack.c.l.bf16 %v2587
        %v2977 = vunpack.c.h.bf16 %v2587
        %v2978 = vunpack.c.l.bf16 %v2588
        %v2979 = vunpack.c.h.bf16 %v2588
        %v2980 = vunpack.c.l.bf16 %v2589
        %v2981 = vunpack.c.l.bf16 %v2590
        %v2982 = vunpack.c.h.bf16 %v2590
        %v2983 = vunpack.c.l.bf16 %v2591
        %v2984 = vunpack.c.h.bf16 %v2591
        %v2985 = vunpack.c.l.bf16 %v2592
        %v2986 = vunpack.c.h.bf16 %v2592
        %v2987 = vunpack.c.l.bf16 %v2593
        %v2988 = vunpack.c.l.bf16 %v2594
        %v2989 = vunpack.c.h.bf16 %v2594
        %v2990 = vunpack.c.l.bf16 %v2595
        %v2991 = vunpack.c.h.bf16 %v2595
        %v2992 = vunpack.c.l.bf16 %v2596
        %v2993 = vunpack.c.h.bf16 %v2596
        %v2994 = vunpack.c.l.bf16 %v2597
        %v2995 = vunpack.c.l.bf16 %v2598
        %v2996 = vunpack.c.h.bf16 %v2598
        %v2997 = vunpack.c.l.bf16 %v2599
        %v2998 = vunpack.c.h.bf16 %v2599
        %v2999 = vunpack.c.l.bf16 %v2600
        %v3000 = vunpack.c.h.bf16 %v2600
        %v3001 = vunpack.c.l.bf16 %v2601
        %v3002 = vunpack.c.l.bf16 %v2602
        %v3003 = vunpack.c.h.bf16 %v2602
        %v3004 = vunpack.c.l.bf16 %v2603
        %v3005 = vunpack.c.h.bf16 %v2603
        %v3006 = vunpack.c.l.bf16 %v2604
        %v3007 = vunpack.c.h.bf16 %v2604
        %v3008 = vunpack.c.l.bf16 %v2605
        %v3009 = vunpack.c.l.bf16 %v2606
        %v3010 = vunpack.c.h.bf16 %v2606
        %v3011 = vunpack.c.l.bf16 %v2607
        %v3012 = vunpack.c.h.bf16 %v2607
        %v3013 = vunpack.c.l.bf16 %v2608
        %v3014 = vunpack.c.h.bf16 %v2608
        %v3015 = vunpack.c.l.bf16 %v2609
        %v3016 = vunpack.c.l.bf16 %v2610
        %v3017 = vunpack.c.h.bf16 %v2610
        %v3018 = vunpack.c.l.bf16 %v2611
        %v3019 = vunpack.c.h.bf16 %v2611
        %v3020 = vunpack.c.l.bf16 %v2612
        %v3021 = vunpack.c.h.bf16 %v2612
        %v3022 = vunpack.c.l.bf16 %v2613
        %v3023 = vunpack.c.l.bf16 %v2614
        %v3024 = vunpack.c.h.bf16 %v2614
        %v3025 = vunpack.c.l.bf16 %v2615
        %v3026 = vunpack.c.h.bf16 %v2615
        %v3027 = vunpack.c.l.bf16 %v2616
        %v3028 = vunpack.c.h.bf16 %v2616
        %v3029 = vunpack.c.l.bf16 %v2617
        %v3030 = vunpack.c.l.bf16 %v2618
        %v3031 = vunpack.c.h.bf16 %v2618
        %v3032 = vunpack.c.l.bf16 %v2619
        %v3033 = vunpack.c.h.bf16 %v2619
        %v3034 = vunpack.c.l.bf16 %v2620
        %v3035 = vunpack.c.h.bf16 %v2620
        %v3036 = vunpack.c.l.bf16 %v2621
        %v3037 = vunpack.c.l.bf16 %v2622
        %v3038 = vunpack.c.h.bf16 %v2622
        %v3039 = vunpack.c.l.bf16 %v2623
        %v3040 = vunpack.c.h.bf16 %v2623
        %v3041 = vunpack.c.l.bf16 %v2624
        %v3042 = vunpack.c.h.bf16 %v2624
        %v3043 = vunpack.c.l.bf16 %v2625
        %v3044 = vunpack.c.l.bf16 %v2626
        %v3045 = vunpack.c.h.bf16 %v2626
        %v3046 = vunpack.c.l.bf16 %v2627
        %v3047 = vunpack.c.h.bf16 %v2627
        %v3048 = vunpack.c.l.bf16 %v2628
        %v3049 = vunpack.c.h.bf16 %v2628
        %v3050 = vunpack.c.l.bf16 %v2629
        %v3051 = vunpack.c.l.bf16 %v2630
        %v3052 = vunpack.c.h.bf16 %v2630
        %v3053 = vunpack.c.l.bf16 %v2631
        %v3054 = vunpack.c.h.bf16 %v2631
        %v3055 = vunpack.c.l.bf16 %v2632
        %v3056 = vunpack.c.h.bf16 %v2632
        %v3057 = vunpack.c.l.bf16 %v2633
        %v3058 = vunpack.c.l.bf16 %v2634
        %v3059 = vunpack.c.h.bf16 %v2634
        %v3060 = vunpack.c.l.bf16 %v2635
        %v3061 = vunpack.c.h.bf16 %v2635
        %v3062 = vunpack.c.l.bf16 %v2636
        %v3063 = vunpack.c.h.bf16 %v2636
        %v3064 = vunpack.c.l.bf16 %v2637
        %v3065 = vunpack.c.l.bf16 %v2638
        %v3066 = vunpack.c.h.bf16 %v2638
        %v3067 = vunpack.c.l.bf16 %v2639
        %v3068 = vunpack.c.h.bf16 %v2639
        %v3069 = vunpack.c.l.bf16 %v2640
        %v3070 = vunpack.c.h.bf16 %v2640
        %v3071 = vunpack.c.l.bf16 %v2641
        %v3072 = vunpack.c.l.bf16 %v2642
        %v3073 = vunpack.c.h.bf16 %v2642
        %v3074 = vunpack.c.l.bf16 %v2643
        %v3075 = vunpack.c.h.bf16 %v2643
        %v3076 = vunpack.c.l.bf16 %v2644
        %v3077 = vunpack.c.h.bf16 %v2644
        %v3078 = vunpack.c.l.bf16 %v2645
        %v3079 = vunpack.c.l.bf16 %v2646
        %v3080 = vunpack.c.h.bf16 %v2646
        %v3081 = vunpack.c.l.bf16 %v2647
        %v3082 = vunpack.c.h.bf16 %v2647
        %v3083 = vunpack.c.l.bf16 %v2648
        %v3084 = vunpack.c.h.bf16 %v2648
        %v3085 = vunpack.c.l.bf16 %v2649
        %v3086 = vunpack.c.l.bf16 %v2650
        %v3087 = vunpack.c.h.bf16 %v2650
        %v3088 = vunpack.c.l.bf16 %v2651
        %v3089 = vunpack.c.h.bf16 %v2651
        %v3090 = vunpack.c.l.bf16 %v2652
        %v3091 = vunpack.c.h.bf16 %v2652
        %v3092 = vunpack.c.l.bf16 %v2653
        %v3093 = vunpack.c.l.bf16 %v2654
        %v3094 = vunpack.c.h.bf16 %v2654
        %v3095 = vunpack.c.l.bf16 %v2655
        %v3096 = vunpack.c.h.bf16 %v2655
        %v3097 = vunpack.c.l.bf16 %v2656
        %v3098 = vunpack.c.h.bf16 %v2656
        %v3099 = vunpack.c.l.bf16 %v2657
        %v3100 = vunpack.c.l.bf16 %v2658
        %v3101 = vunpack.c.h.bf16 %v2658
        %v3102 = vunpack.c.l.bf16 %v2659
        %v3103 = vunpack.c.h.bf16 %v2659
        %v3104 = vunpack.c.l.bf16 %v2660
        %v3105 = vunpack.c.h.bf16 %v2660
        %v3106 = vunpack.c.l.bf16 %v2661
        %v3107 = vunpack.c.l.bf16 %v2662
        %v3108 = vunpack.c.h.bf16 %v2662
        %v3109 = vunpack.c.l.bf16 %v2663
        %v3110 = vunpack.c.h.bf16 %v2663
        %v3111 = vunpack.c.l.bf16 %v2664
        %v3112 = vunpack.c.h.bf16 %v2664
        %v3113 = vunpack.c.l.bf16 %v2665
        %v3114 = vld [vmem:[%s13] sm:$0x7f]
        %v3116 = vlaneseq
        %v3117 = vshrl.u32 %v3116, 7
        %v3118 = vsub.s32 0, %v3117
        %v3119 = vrot.slane %v3114, %v3118
        %v3120 = vlaneseq
        %v3121 = vshrl.u32 %v3120, 7
        %v3122 = vsub.s32 1, %v3121
        %v3123 = vrot.slane %v3114, %v3122
        %v3124 = vlaneseq
        %v3125 = vshrl.u32 %v3124, 7
        %v3126 = vsub.s32 2, %v3125
        %v3127 = vrot.slane %v3114, %v3126
        %v3128 = vlaneseq
        %v3129 = vshrl.u32 %v3128, 7
        %v3130 = vsub.s32 3, %v3129
        %v3131 = vrot.slane %v3114, %v3130
        %v3132 = vlaneseq
        %v3133 = vshrl.u32 %v3132, 7
        %v3134 = vsub.s32 4, %v3133
        %v3135 = vrot.slane %v3114, %v3134
        %v3136 = vlaneseq
        %v3137 = vshrl.u32 %v3136, 7
        %v3138 = vsub.s32 5, %v3137
        %v3139 = vrot.slane %v3114, %v3138
        %v3140 = vlaneseq
        %v3141 = vshrl.u32 %v3140, 7
        %v3142 = vsub.s32 6, %v3141
        %v3143 = vrot.slane %v3114, %v3142
        %3151 = vmatprep.subr.mxu0 %v2667
        %3152 = vmatpush1.msra.mxu0 %v2666
        %3153 = vmatprep.subr.mxu0 %v2674
        %3154 = vmatpush1.msra.mxu0 %v2673
        %3155 = vmatprep.subr.mxu0 %v2681
        %3156 = vmatpush1.msra.mxu0 %v2680
        %3157 = vmatprep.subr.mxu0 %v2688
        %3158 = vmatpush1.msra.mxu0 %v2687
        %3159 = vmatprep.subr.mxu0 %v2695
        %3160 = vmatpush1.msra.mxu0 %v2694
        %3161 = vmatprep.subr.mxu0 %v2702
        %3162 = vmatpush1.msra.mxu0 %v2701
        %3163 = vmatprep.subr.mxu0 %v2709
        %3164 = vmatpush1.msra.mxu0 %v2708
        %3165 = vmatprep.subr.mxu0 %v2716
        %3166 = vmatpush1.msra.mxu0 %v2715
        %3167 = vmatprep.subr.mxu0 %v2723
        %3168 = vmatpush1.msra.mxu0 %v2722
        %3169 = vmatprep.subr.mxu0 %v2730
        %3170 = vmatpush1.msra.mxu0 %v2729
        %3171 = vmatprep.subr.mxu0 %v2737
        %3172 = vmatpush1.msra.mxu0 %v2736
        %3173 = vmatprep.subr.mxu0 %v2744
        %3174 = vmatpush1.msra.mxu0 %v2743
        %3175 = vmatprep.subr.mxu0 %v2751
        %3176 = vmatpush1.msra.mxu0 %v2750
        %3177 = vmatprep.subr.mxu0 %v2758
        %3178 = vmatpush1.msra.mxu0 %v2757
        %3179 = vmatprep.subr.mxu0 %v2765
        %3180 = vmatpush1.msra.mxu0 %v2764
        %3181 = vmatprep.subr.mxu0 %v2772
        %3182 = vmatpush1.msra.mxu0 %v2771
        %3183 = vmatprep.subr.mxu0 %v2779
        %3184 = vmatpush1.msra.mxu0 %v2778
        %3185 = vmatprep.subr.mxu0 %v2786
        %3186 = vmatpush1.msra.mxu0 %v2785
        %3187 = vmatprep.subr.mxu0 %v2793
        %3188 = vmatpush1.msra.mxu0 %v2792
        %3189 = vmatprep.subr.mxu0 %v2800
        %3190 = vmatpush1.msra.mxu0 %v2799
        %3191 = vmatprep.subr.mxu0 %v2807
        %3192 = vmatpush1.msra.mxu0 %v2806
        %3193 = vmatprep.subr.mxu0 %v2814
        %3194 = vmatpush1.msra.mxu0 %v2813
        %3195 = vmatprep.subr.mxu0 %v2821
        %3196 = vmatpush1.msra.mxu0 %v2820
        %3197 = vmatprep.subr.mxu0 %v2828
        %3198 = vmatpush1.msra.mxu0 %v2827
        %3199 = vmatprep.subr.mxu0 %v2835
        %3200 = vmatpush1.msra.mxu0 %v2834
        %3201 = vmatprep.subr.mxu0 %v2842
        %3202 = vmatpush1.msra.mxu0 %v2841
        %3203 = vmatprep.subr.mxu0 %v2849
        %3204 = vmatpush1.msra.mxu0 %v2848
        %3205 = vmatprep.subr.mxu0 %v2856
        %3206 = vmatpush1.msra.mxu0 %v2855
        %3207 = vmatprep.subr.mxu0 %v2863
        %3208 = vmatpush1.msra.mxu0 %v2862
        %3209 = vmatprep.subr.mxu0 %v2870
        %3210 = vmatpush1.msra.mxu0 %v2869
        %3211 = vmatprep.subr.mxu0 %v2877
        %3212 = vmatpush1.msra.mxu0 %v2876
        %3213 = vmatprep.subr.mxu0 %v2884
        %3214 = vmatpush1.msra.mxu0 %v2883
        %3215 = vmatprep.mubr.f32.mxu0 %v2407
        %3216 = vmatmul.mubr.f32.gmra.mrb[0].mxu0 %v2406
        %v3217 = vpop.f32.mrb[0].mxu0
        %v3218 = vadd.f32 %v3119, %v3217
        %v3219 = vpop.f32.mrb[0].mxu0
        %v3220 = vadd.f32 %v3123, %v3219
        %3221 = vdwg.mxu0
        %3222 = vmatprep.subr.mxu0 %v2891
        %3223 = vmatpush1.msra.mxu0 %v2890
        %3224 = vmatprep.subr.mxu0 %v2898
        %3225 = vmatpush1.msra.mxu0 %v2897
        %3226 = vmatprep.subr.mxu0 %v2905
        %3227 = vmatpush1.msra.mxu0 %v2904
        %3228 = vmatprep.subr.mxu0 %v2912
        %3229 = vmatpush1.msra.mxu0 %v2911
        %3230 = vmatprep.subr.mxu0 %v2919
        %3231 = vmatpush1.msra.mxu0 %v2918
        %3232 = vmatprep.subr.mxu0 %v2926
        %3233 = vmatpush1.msra.mxu0 %v2925
        %3234 = vmatprep.subr.mxu0 %v2933
        %3235 = vmatpush1.msra.mxu0 %v2932
        %3236 = vmatprep.subr.mxu0 %v2940
        %3237 = vmatpush1.msra.mxu0 %v2939
        %3238 = vmatprep.subr.mxu0 %v2947
        %3239 = vmatpush1.msra.mxu0 %v2946
        %3240 = vmatprep.subr.mxu0 %v2954
        %3241 = vmatpush1.msra.mxu0 %v2953
        %3242 = vmatprep.subr.mxu0 %v2961
        %3243 = vmatpush1.msra.mxu0 %v2960
        %3244 = vmatprep.subr.mxu0 %v2968
        %3245 = vmatpush1.msra.mxu0 %v2967
        %3246 = vmatprep.subr.mxu0 %v2975
        %3247 = vmatpush1.msra.mxu0 %v2974
        %3248 = vmatprep.subr.mxu0 %v2982
        %3249 = vmatpush1.msra.mxu0 %v2981
        %3250 = vmatprep.subr.mxu0 %v2989
        %3251 = vmatpush1.msra.mxu0 %v2988
        %3252 = vmatprep.subr.mxu0 %v2996
        %3253 = vmatpush1.msra.mxu0 %v2995
        %3254 = vmatprep.subr.mxu0 %v3003
        %3255 = vmatpush1.msra.mxu0 %v3002
        %3256 = vmatprep.subr.mxu0 %v3010
        %3257 = vmatpush1.msra.mxu0 %v3009
        %3258 = vmatprep.subr.mxu0 %v3017
        %3259 = vmatpush1.msra.mxu0 %v3016
        %3260 = vmatprep.subr.mxu0 %v3024
        %3261 = vmatpush1.msra.mxu0 %v3023
        %3262 = vmatprep.subr.mxu0 %v3031
        %3263 = vmatpush1.msra.mxu0 %v3030
        %3264 = vmatprep.subr.mxu0 %v3038
        %3265 = vmatpush1.msra.mxu0 %v3037
        %3266 = vmatprep.subr.mxu0 %v3045
        %3267 = vmatpush1.msra.mxu0 %v3044
        %3268 = vmatprep.subr.mxu0 %v3052
        %3269 = vmatpush1.msra.mxu0 %v3051
        %3270 = vmatprep.subr.mxu0 %v3059
        %3271 = vmatpush1.msra.mxu0 %v3058
        %3272 = vmatprep.subr.mxu0 %v3066
        %3273 = vmatpush1.msra.mxu0 %v3065
        %3274 = vmatprep.subr.mxu0 %v3073
        %3275 = vmatpush1.msra.mxu0 %v3072
        %3276 = vmatprep.subr.mxu0 %v3080
        %3277 = vmatpush1.msra.mxu0 %v3079
        %3278 = vmatprep.subr.mxu0 %v3087
        %3279 = vmatpush1.msra.mxu0 %v3086
        %3280 = vmatprep.subr.mxu0 %v3094
        %3281 = vmatpush1.msra.mxu0 %v3093
        %3282 = vmatprep.subr.mxu0 %v3101
        %3283 = vmatpush1.msra.mxu0 %v3100
        %3284 = vmatprep.subr.mxu0 %v3108
        %3285 = vmatpush1.msra.mxu0 %v3107
        %3286 = vmatprep.mubr.f32.mxu0 %v2409
        %3287 = vmatmul.mubr.f32.gmra.mrb[0].mxu0 %v2408
        %v3288 = vpop.f32.mrb[0].mxu0
        %v3289 = vadd.f32 %v3218, %v3288
        %v3290 = vpop.f32.mrb[0].mxu0
        %v3291 = vadd.f32 %v3220, %v3290
        %3292 = vdwg.mxu0
        %3293 = vmatprep.subr.mxu0 %v2669
        %3294 = vmatpush1.msra.mxu0 %v2668
        %3295 = vmatprep.subr.mxu0 %v2676
        %3296 = vmatpush1.msra.mxu0 %v2675
        %3297 = vmatprep.subr.mxu0 %v2683
        %3298 = vmatpush1.msra.mxu0 %v2682
        %3299 = vmatprep.subr.mxu0 %v2690
        %3300 = vmatpush1.msra.mxu0 %v2689
        %3301 = vmatprep.subr.mxu0 %v2697
        %3302 = vmatpush1.msra.mxu0 %v2696
        %3303 = vmatprep.subr.mxu0 %v2704
        %3304 = vmatpush1.msra.mxu0 %v2703
        %3305 = vmatprep.subr.mxu0 %v2711
        %3306 = vmatpush1.msra.mxu0 %v2710
        %3307 = vmatprep.subr.mxu0 %v2718
        %3308 = vmatpush1.msra.mxu0 %v2717
        %3309 = vmatprep.subr.mxu0 %v2725
        %3310 = vmatpush1.msra.mxu0 %v2724
        %3311 = vmatprep.subr.mxu0 %v2732
        %3312 = vmatpush1.msra.mxu0 %v2731
        %3313 = vmatprep.subr.mxu0 %v2739
        %3314 = vmatpush1.msra.mxu0 %v2738
        %3315 = vmatprep.subr.mxu0 %v2746
        %3316 = vmatpush1.msra.mxu0 %v2745
        %3317 = vmatprep.subr.mxu0 %v2753
        %3318 = vmatpush1.msra.mxu0 %v2752
        %3319 = vmatprep.subr.mxu0 %v2760
        %3320 = vmatpush1.msra.mxu0 %v2759
        %3321 = vmatprep.subr.mxu0 %v2767
        %3322 = vmatpush1.msra.mxu0 %v2766
        %3323 = vmatprep.subr.mxu0 %v2774
        %3324 = vmatpush1.msra.mxu0 %v2773
        %3325 = vmatprep.subr.mxu0 %v2781
        %3326 = vmatpush1.msra.mxu0 %v2780
        %3327 = vmatprep.subr.mxu0 %v2788
        %3328 = vmatpush1.msra.mxu0 %v2787
        %3329 = vmatprep.subr.mxu0 %v2795
        %3330 = vmatpush1.msra.mxu0 %v2794
        %3331 = vmatprep.subr.mxu0 %v2802
        %3332 = vmatpush1.msra.mxu0 %v2801
        %3333 = vmatprep.subr.mxu0 %v2809
        %3334 = vmatpush1.msra.mxu0 %v2808
        %3335 = vmatprep.subr.mxu0 %v2816
        %3336 = vmatpush1.msra.mxu0 %v2815
        %3337 = vmatprep.subr.mxu0 %v2823
        %3338 = vmatpush1.msra.mxu0 %v2822
        %3339 = vmatprep.subr.mxu0 %v2830
        %3340 = vmatpush1.msra.mxu0 %v2829
        %3341 = vmatprep.subr.mxu0 %v2837
        %3342 = vmatpush1.msra.mxu0 %v2836
        %3343 = vmatprep.subr.mxu0 %v2844
        %3344 = vmatpush1.msra.mxu0 %v2843
        %3345 = vmatprep.subr.mxu0 %v2851
        %3346 = vmatpush1.msra.mxu0 %v2850
        %3347 = vmatprep.subr.mxu0 %v2858
        %3348 = vmatpush1.msra.mxu0 %v2857
        %3349 = vmatprep.subr.mxu0 %v2865
        %3350 = vmatpush1.msra.mxu0 %v2864
        %3351 = vmatprep.subr.mxu0 %v2872
        %3352 = vmatpush1.msra.mxu0 %v2871
        %3353 = vmatprep.subr.mxu0 %v2879
        %3354 = vmatpush1.msra.mxu0 %v2878
        %3355 = vmatprep.subr.mxu0 %v2886
        %3356 = vmatpush1.msra.mxu0 %v2885
        %3357 = vmatprep.mubr.f32.mxu0 %v2407
        %3358 = vmatmul.mubr.f32.gmra.mrb[0].mxu0 %v2406
        %v3359 = vpop.f32.mrb[0].mxu0
        %v3360 = vadd.f32 %v3127, %v3359
        %v3361 = vpop.f32.mrb[0].mxu0
        %v3362 = vadd.f32 %v3131, %v3361
        %3363 = vdwg.mxu0
        %3364 = vmatprep.subr.mxu0 %v2893
        %3365 = vmatpush1.msra.mxu0 %v2892
        %3366 = vmatprep.subr.mxu0 %v2900
        %3367 = vmatpush1.msra.mxu0 %v2899
        %3368 = vmatprep.subr.mxu0 %v2907
        %3369 = vmatpush1.msra.mxu0 %v2906
        %3370 = vmatprep.subr.mxu0 %v2914
        %3371 = vmatpush1.msra.mxu0 %v2913
        %3372 = vmatprep.subr.mxu0 %v2921
        %3373 = vmatpush1.msra.mxu0 %v2920
        %3374 = vmatprep.subr.mxu0 %v2928
        %3375 = vmatpush1.msra.mxu0 %v2927
        %3376 = vmatprep.subr.mxu0 %v2935
        %3377 = vmatpush1.msra.mxu0 %v2934
        %3378 = vmatprep.subr.mxu0 %v2942
        %3379 = vmatpush1.msra.mxu0 %v2941
        %3380 = vmatprep.subr.mxu0 %v2949
        %3381 = vmatpush1.msra.mxu0 %v2948
        %3382 = vmatprep.subr.mxu0 %v2956
        %3383 = vmatpush1.msra.mxu0 %v2955
        %3384 = vmatprep.subr.mxu0 %v2963
        %3385 = vmatpush1.msra.mxu0 %v2962
        %3386 = vmatprep.subr.mxu0 %v2970
        %3387 = vmatpush1.msra.mxu0 %v2969
        %3388 = vmatprep.subr.mxu0 %v2977
        %3389 = vmatpush1.msra.mxu0 %v2976
        %3390 = vmatprep.subr.mxu0 %v2984
        %3391 = vmatpush1.msra.mxu0 %v2983
        %3392 = vmatprep.subr.mxu0 %v2991
        %3393 = vmatpush1.msra.mxu0 %v2990
        %3394 = vmatprep.subr.mxu0 %v2998
        %3395 = vmatpush1.msra.mxu0 %v2997
        %3396 = vmatprep.subr.mxu0 %v3005
        %3397 = vmatpush1.msra.mxu0 %v3004
        %3398 = vmatprep.subr.mxu0 %v3012
        %3399 = vmatpush1.msra.mxu0 %v3011
        %3400 = vmatprep.subr.mxu0 %v3019
        %3401 = vmatpush1.msra.mxu0 %v3018
        %3402 = vmatprep.subr.mxu0 %v3026
        %3403 = vmatpush1.msra.mxu0 %v3025
        %3404 = vmatprep.subr.mxu0 %v3033
        %3405 = vmatpush1.msra.mxu0 %v3032
        %3406 = vmatprep.subr.mxu0 %v3040
        %3407 = vmatpush1.msra.mxu0 %v3039
        %3408 = vmatprep.subr.mxu0 %v3047
        %3409 = vmatpush1.msra.mxu0 %v3046
        %3410 = vmatprep.subr.mxu0 %v3054
        %3411 = vmatpush1.msra.mxu0 %v3053
        %3412 = vmatprep.subr.mxu0 %v3061
        %3413 = vmatpush1.msra.mxu0 %v3060
        %3414 = vmatprep.subr.mxu0 %v3068
        %3415 = vmatpush1.msra.mxu0 %v3067
        %3416 = vmatprep.subr.mxu0 %v3075
        %3417 = vmatpush1.msra.mxu0 %v3074
        %3418 = vmatprep.subr.mxu0 %v3082
        %3419 = vmatpush1.msra.mxu0 %v3081
        %3420 = vmatprep.subr.mxu0 %v3089
        %3421 = vmatpush1.msra.mxu0 %v3088
        %3422 = vmatprep.subr.mxu0 %v3096
        %3423 = vmatpush1.msra.mxu0 %v3095
        %3424 = vmatprep.subr.mxu0 %v3103
        %3425 = vmatpush1.msra.mxu0 %v3102
        %3426 = vmatprep.subr.mxu0 %v3110
        %3427 = vmatpush1.msra.mxu0 %v3109
        %3428 = vmatprep.mubr.f32.mxu0 %v2409
        %3429 = vmatmul.mubr.f32.gmra.mrb[0].mxu0 %v2408
        %v3430 = vpop.f32.mrb[0].mxu0
        %v3431 = vadd.f32 %v3360, %v3430
        %v3432 = vpop.f32.mrb[0].mxu0
        %v3433 = vadd.f32 %v3362, %v3432
        %3434 = vdwg.mxu0
        %3435 = vmatprep.subr.mxu0 %v2671
        %3436 = vmatpush1.msra.mxu0 %v2670
        %3437 = vmatprep.subr.mxu0 %v2678
        %3438 = vmatpush1.msra.mxu0 %v2677
        %3439 = vmatprep.subr.mxu0 %v2685
        %3440 = vmatpush1.msra.mxu0 %v2684
        %3441 = vmatprep.subr.mxu0 %v2692
        %3442 = vmatpush1.msra.mxu0 %v2691
        %3443 = vmatprep.subr.mxu0 %v2699
        %3444 = vmatpush1.msra.mxu0 %v2698
        %3445 = vmatprep.subr.mxu0 %v2706
        %3446 = vmatpush1.msra.mxu0 %v2705
        %3447 = vmatprep.subr.mxu0 %v2713
        %3448 = vmatpush1.msra.mxu0 %v2712
        %3449 = vmatprep.subr.mxu0 %v2720
        %3450 = vmatpush1.msra.mxu0 %v2719
        %3451 = vmatprep.subr.mxu0 %v2727
        %3452 = vmatpush1.msra.mxu0 %v2726
        %3453 = vmatprep.subr.mxu0 %v2734
        %3454 = vmatpush1.msra.mxu0 %v2733
        %3455 = vmatprep.subr.mxu0 %v2741
        %3456 = vmatpush1.msra.mxu0 %v2740
        %3457 = vmatprep.subr.mxu0 %v2748
        %3458 = vmatpush1.msra.mxu0 %v2747
        %3459 = vmatprep.subr.mxu0 %v2755
        %3460 = vmatpush1.msra.mxu0 %v2754
        %3461 = vmatprep.subr.mxu0 %v2762
        %3462 = vmatpush1.msra.mxu0 %v2761
        %3463 = vmatprep.subr.mxu0 %v2769
        %3464 = vmatpush1.msra.mxu0 %v2768
        %3465 = vmatprep.subr.mxu0 %v2776
        %3466 = vmatpush1.msra.mxu0 %v2775
        %3467 = vmatprep.subr.mxu0 %v2783
        %3468 = vmatpush1.msra.mxu0 %v2782
        %3469 = vmatprep.subr.mxu0 %v2790
        %3470 = vmatpush1.msra.mxu0 %v2789
        %3471 = vmatprep.subr.mxu0 %v2797
        %3472 = vmatpush1.msra.mxu0 %v2796
        %3473 = vmatprep.subr.mxu0 %v2804
        %3474 = vmatpush1.msra.mxu0 %v2803
        %3475 = vmatprep.subr.mxu0 %v2811
        %3476 = vmatpush1.msra.mxu0 %v2810
        %3477 = vmatprep.subr.mxu0 %v2818
        %3478 = vmatpush1.msra.mxu0 %v2817
        %3479 = vmatprep.subr.mxu0 %v2825
        %3480 = vmatpush1.msra.mxu0 %v2824
        %3481 = vmatprep.subr.mxu0 %v2832
        %3482 = vmatpush1.msra.mxu0 %v2831
        %3483 = vmatprep.subr.mxu0 %v2839
        %3484 = vmatpush1.msra.mxu0 %v2838
        %3485 = vmatprep.subr.mxu0 %v2846
        %3486 = vmatpush1.msra.mxu0 %v2845
        %3487 = vmatprep.subr.mxu0 %v2853
        %3488 = vmatpush1.msra.mxu0 %v2852
        %3489 = vmatprep.subr.mxu0 %v2860
        %3490 = vmatpush1.msra.mxu0 %v2859
        %3491 = vmatprep.subr.mxu0 %v2867
        %3492 = vmatpush1.msra.mxu0 %v2866
        %3493 = vmatprep.subr.mxu0 %v2874
        %3494 = vmatpush1.msra.mxu0 %v2873
        %3495 = vmatprep.subr.mxu0 %v2881
        %3496 = vmatpush1.msra.mxu0 %v2880
        %3497 = vmatprep.subr.mxu0 %v2888
        %3498 = vmatpush1.msra.mxu0 %v2887
        %3499 = vmatprep.mubr.f32.mxu0 %v2407
        %3500 = vmatmul.mubr.f32.gmra.mrb[0].mxu0 %v2406
        %v3501 = vpop.f32.mrb[0].mxu0
        %v3502 = vadd.f32 %v3135, %v3501
        %v3503 = vpop.f32.mrb[0].mxu0
        %v3504 = vadd.f32 %v3139, %v3503
        %3505 = vdwg.mxu0
        %3506 = vmatprep.subr.mxu0 %v2895
        %3507 = vmatpush1.msra.mxu0 %v2894
        %3508 = vmatprep.subr.mxu0 %v2902
        %3509 = vmatpush1.msra.mxu0 %v2901
        %3510 = vmatprep.subr.mxu0 %v2909
        %3511 = vmatpush1.msra.mxu0 %v2908
        %3512 = vmatprep.subr.mxu0 %v2916
        %3513 = vmatpush1.msra.mxu0 %v2915
        %3514 = vmatprep.subr.mxu0 %v2923
        %3515 = vmatpush1.msra.mxu0 %v2922
        %3516 = vmatprep.subr.mxu0 %v2930
        %3517 = vmatpush1.msra.mxu0 %v2929
        %3518 = vmatprep.subr.mxu0 %v2937
        %3519 = vmatpush1.msra.mxu0 %v2936
        %3520 = vmatprep.subr.mxu0 %v2944
        %3521 = vmatpush1.msra.mxu0 %v2943
        %3522 = vmatprep.subr.mxu0 %v2951
        %3523 = vmatpush1.msra.mxu0 %v2950
        %3524 = vmatprep.subr.mxu0 %v2958
        %3525 = vmatpush1.msra.mxu0 %v2957
        %3526 = vmatprep.subr.mxu0 %v2965
        %3527 = vmatpush1.msra.mxu0 %v2964
        %3528 = vmatprep.subr.mxu0 %v2972
        %3529 = vmatpush1.msra.mxu0 %v2971
        %3530 = vmatprep.subr.mxu0 %v2979
        %3531 = vmatpush1.msra.mxu0 %v2978
        %3532 = vmatprep.subr.mxu0 %v2986
        %3533 = vmatpush1.msra.mxu0 %v2985
        %3534 = vmatprep.subr.mxu0 %v2993
        %3535 = vmatpush1.msra.mxu0 %v2992
        %3536 = vmatprep.subr.mxu0 %v3000
        %3537 = vmatpush1.msra.mxu0 %v2999
        %3538 = vmatprep.subr.mxu0 %v3007
        %3539 = vmatpush1.msra.mxu0 %v3006
        %3540 = vmatprep.subr.mxu0 %v3014
        %3541 = vmatpush1.msra.mxu0 %v3013
        %3542 = vmatprep.subr.mxu0 %v3021
        %3543 = vmatpush1.msra.mxu0 %v3020
        %3544 = vmatprep.subr.mxu0 %v3028
        %3545 = vmatpush1.msra.mxu0 %v3027
        %3546 = vmatprep.subr.mxu0 %v3035
        %3547 = vmatpush1.msra.mxu0 %v3034
        %3548 = vmatprep.subr.mxu0 %v3042
        %3549 = vmatpush1.msra.mxu0 %v3041
        %3550 = vmatprep.subr.mxu0 %v3049
        %3551 = vmatpush1.msra.mxu0 %v3048
        %3552 = vmatprep.subr.mxu0 %v3056
        %3553 = vmatpush1.msra.mxu0 %v3055
        %3554 = vmatprep.subr.mxu0 %v3063
        %3555 = vmatpush1.msra.mxu0 %v3062
        %3556 = vmatprep.subr.mxu0 %v3070
        %3557 = vmatpush1.msra.mxu0 %v3069
        %3558 = vmatprep.subr.mxu0 %v3077
        %3559 = vmatpush1.msra.mxu0 %v3076
        %3560 = vmatprep.subr.mxu0 %v3084
        %3561 = vmatpush1.msra.mxu0 %v3083
        %3562 = vmatprep.subr.mxu0 %v3091
        %3563 = vmatpush1.msra.mxu0 %v3090
        %3564 = vmatprep.subr.mxu0 %v3098
        %3565 = vmatpush1.msra.mxu0 %v3097
        %3566 = vmatprep.subr.mxu0 %v3105
        %3567 = vmatpush1.msra.mxu0 %v3104
        %3568 = vmatprep.subr.mxu0 %v3112
        %3569 = vmatpush1.msra.mxu0 %v3111
        %3570 = vmatprep.mubr.f32.mxu0 %v2409
        %3571 = vmatmul.mubr.f32.gmra.mrb[0].mxu0 %v2408
        %v3572 = vpop.f32.mrb[0].mxu0
        %v3573 = vadd.f32 %v3502, %v3572
        %v3574 = vpop.f32.mrb[0].mxu0
        %v3575 = vadd.f32 %v3504, %v3574
        %3576 = vdwg.mxu0
        %3577 = vmatprep.subr.mxu0 0.0
        %3578 = vmatpush1.msra.mxu0 %v2672
        %3579 = vmatprep.subr.mxu0 0.0
        %3580 = vmatpush1.msra.mxu0 %v2679
        %3581 = vmatprep.subr.mxu0 0.0
        %3582 = vmatpush1.msra.mxu0 %v2686
        %3583 = vmatprep.subr.mxu0 0.0
        %3584 = vmatpush1.msra.mxu0 %v2693
        %3585 = vmatprep.subr.mxu0 0.0
        %3586 = vmatpush1.msra.mxu0 %v2700
        %3587 = vmatprep.subr.mxu0 0.0
        %3588 = vmatpush1.msra.mxu0 %v2707
        %3589 = vmatprep.subr.mxu0 0.0
        %3590 = vmatpush1.msra.mxu0 %v2714
        %3591 = vmatprep.subr.mxu0 0.0
        %3592 = vmatpush1.msra.mxu0 %v2721
        %3593 = vmatprep.subr.mxu0 0.0
        %3594 = vmatpush1.msra.mxu0 %v2728
        %3595 = vmatprep.subr.mxu0 0.0
        %3596 = vmatpush1.msra.mxu0 %v2735
        %3597 = vmatprep.subr.mxu0 0.0
        %3598 = vmatpush1.msra.mxu0 %v2742
        %3599 = vmatprep.subr.mxu0 0.0
        %3600 = vmatpush1.msra.mxu0 %v2749
        %3601 = vmatprep.subr.mxu0 0.0
        %3602 = vmatpush1.msra.mxu0 %v2756
        %3603 = vmatprep.subr.mxu0 0.0
        %3604 = vmatpush1.msra.mxu0 %v2763
        %3605 = vmatprep.subr.mxu0 0.0
        %3606 = vmatpush1.msra.mxu0 %v2770
        %3607 = vmatprep.subr.mxu0 0.0
        %3608 = vmatpush1.msra.mxu0 %v2777
        %3609 = vmatprep.subr.mxu0 0.0
        %3610 = vmatpush1.msra.mxu0 %v2784
        %3611 = vmatprep.subr.mxu0 0.0
        %3612 = vmatpush1.msra.mxu0 %v2791
        %3613 = vmatprep.subr.mxu0 0.0
        %3614 = vmatpush1.msra.mxu0 %v2798
        %3615 = vmatprep.subr.mxu0 0.0
        %3616 = vmatpush1.msra.mxu0 %v2805
        %3617 = vmatprep.subr.mxu0 0.0
        %3618 = vmatpush1.msra.mxu0 %v2812
        %3619 = vmatprep.subr.mxu0 0.0
        %3620 = vmatpush1.msra.mxu0 %v2819
        %3621 = vmatprep.subr.mxu0 0.0
        %3622 = vmatpush1.msra.mxu0 %v2826
        %3623 = vmatprep.subr.mxu0 0.0
        %3624 = vmatpush1.msra.mxu0 %v2833
        %3625 = vmatprep.subr.mxu0 0.0
        %3626 = vmatpush1.msra.mxu0 %v2840
        %3627 = vmatprep.subr.mxu0 0.0
        %3628 = vmatpush1.msra.mxu0 %v2847
        %3629 = vmatprep.subr.mxu0 0.0
        %3630 = vmatpush1.msra.mxu0 %v2854
        %3631 = vmatprep.subr.mxu0 0.0
        %3632 = vmatpush1.msra.mxu0 %v2861
        %3633 = vmatprep.subr.mxu0 0.0
        %3634 = vmatpush1.msra.mxu0 %v2868
        %3635 = vmatprep.subr.mxu0 0.0
        %3636 = vmatpush1.msra.mxu0 %v2875
        %3637 = vmatprep.subr.mxu0 0.0
        %3638 = vmatpush1.msra.mxu0 %v2882
        %3639 = vmatprep.subr.mxu0 0.0
        %3640 = vmatpush1.msra.mxu0 %v2889
        %3641 = vmatprep.mubr.f32.mxu0 %v2407
        %3642 = vmatmul.mubr.f32.gmra.mrb[0].mxu0 %v2406
        %v3643 = vpop.f32.mrb[0].mxu0
        %v3644 = vadd.f32 %v3143, %v3643
        %v3645 = vpop.f32.mrb[0].mxu0
        %3646 = vdwg.mxu0
        %3647 = vmatprep.subr.mxu0 0.0
        %3648 = vmatpush1.msra.mxu0 %v2896
        %3649 = vmatprep.subr.mxu0 0.0
        %3650 = vmatpush1.msra.mxu0 %v2903
        %3651 = vmatprep.subr.mxu0 0.0
        %3652 = vmatpush1.msra.mxu0 %v2910
        %3653 = vmatprep.subr.mxu0 0.0
        %3654 = vmatpush1.msra.mxu0 %v2917
        %3655 = vmatprep.subr.mxu0 0.0
        %3656 = vmatpush1.msra.mxu0 %v2924
        %3657 = vmatprep.subr.mxu0 0.0
        %3658 = vmatpush1.msra.mxu0 %v2931
        %3659 = vmatprep.subr.mxu0 0.0
        %3660 = vmatpush1.msra.mxu0 %v2938
        %3661 = vmatprep.subr.mxu0 0.0
        %3662 = vmatpush1.msra.mxu0 %v2945
        %3663 = vmatprep.subr.mxu0 0.0
        %3664 = vmatpush1.msra.mxu0 %v2952
        %3665 = vmatprep.subr.mxu0 0.0
        %3666 = vmatpush1.msra.mxu0 %v2959
        %3667 = vmatprep.subr.mxu0 0.0
        %3668 = vmatpush1.msra.mxu0 %v2966
        %3669 = vmatprep.subr.mxu0 0.0
        %3670 = vmatpush1.msra.mxu0 %v2973
        %3671 = vmatprep.subr.mxu0 0.0
        %3672 = vmatpush1.msra.mxu0 %v2980
        %3673 = vmatprep.subr.mxu0 0.0
        %3674 = vmatpush1.msra.mxu0 %v2987
        %3675 = vmatprep.subr.mxu0 0.0
        %3676 = vmatpush1.msra.mxu0 %v2994
        %3677 = vmatprep.subr.mxu0 0.0
        %3678 = vmatpush1.msra.mxu0 %v3001
        %3679 = vmatprep.subr.mxu0 0.0
        %3680 = vmatpush1.msra.mxu0 %v3008
        %3681 = vmatprep.subr.mxu0 0.0
        %3682 = vmatpush1.msra.mxu0 %v3015
        %3683 = vmatprep.subr.mxu0 0.0
        %3684 = vmatpush1.msra.mxu0 %v3022
        %3685 = vmatprep.subr.mxu0 0.0
        %3686 = vmatpush1.msra.mxu0 %v3029
        %3687 = vmatprep.subr.mxu0 0.0
        %3688 = vmatpush1.msra.mxu0 %v3036
        %3689 = vmatprep.subr.mxu0 0.0
        %3690 = vmatpush1.msra.mxu0 %v3043
        %3691 = vmatprep.subr.mxu0 0.0
        %3692 = vmatpush1.msra.mxu0 %v3050
        %3693 = vmatprep.subr.mxu0 0.0
        %3694 = vmatpush1.msra.mxu0 %v3057
        %3695 = vmatprep.subr.mxu0 0.0
        %3696 = vmatpush1.msra.mxu0 %v3064
        %3697 = vmatprep.subr.mxu0 0.0
        %3698 = vmatpush1.msra.mxu0 %v3071
        %3699 = vmatprep.subr.mxu0 0.0
        %3700 = vmatpush1.msra.mxu0 %v3078
        %3701 = vmatprep.subr.mxu0 0.0
        %3702 = vmatpush1.msra.mxu0 %v3085
        %3703 = vmatprep.subr.mxu0 0.0
        %3704 = vmatpush1.msra.mxu0 %v3092
        %3705 = vmatprep.subr.mxu0 0.0
        %3706 = vmatpush1.msra.mxu0 %v3099
        %3707 = vmatprep.subr.mxu0 0.0
        %3708 = vmatpush1.msra.mxu0 %v3106
        %3709 = vmatprep.subr.mxu0 0.0
        %3710 = vmatpush1.msra.mxu0 %v3113
        %3711 = vmatprep.mubr.f32.mxu0 %v2409
        %3712 = vmatmul.mubr.f32.gmra.mrb[0].mxu0 %v2408
        %v3713 = vpop.f32.mrb[0].mxu0
        %v3714 = vadd.f32 %v3644, %v3713
        %v3715 = vpop.f32.mrb[0].mxu0
        %3716 = vdwg.mxu0
        %v3717 = vxor.u32 %v3289, 2147483648
        %v3718 = vxor.u32 %v3291, 2147483648
        %v3719 = vxor.u32 %v3431, 2147483648
        %v3720 = vxor.u32 %v3433, 2147483648
        %v3721 = vxor.u32 %v3573, 2147483648
        %v3722 = vxor.u32 %v3575, 2147483648
        %v3723 = vxor.u32 %v3714, 2147483648
        %v3724 = vmul.f32 %v3717, 1.442695
        %v3725 = vpow.pop %v3724
        %v3726 = vmul.f32 %v3718, 1.442695
        %v3727 = vpow.pop %v3726
        %v3728 = vmul.f32 %v3719, 1.442695
        %v3729 = vpow.pop %v3728
        %v3730 = vmul.f32 %v3720, 1.442695
        %v3731 = vpow.pop %v3730
        %v3732 = vmul.f32 %v3721, 1.442695
        %v3733 = vpow.pop %v3732
        %v3734 = vmul.f32 %v3722, 1.442695
        %v3735 = vpow.pop %v3734
        %v3736 = vmul.f32 %v3723, 1.442695
        %v3737 = vpow.pop %v3736
        %v3738 = vadd.f32 %v3725, 1.0
        %v3739 = vadd.f32 %v3727, 1.0
        %v3740 = vadd.f32 %v3729, 1.0
        %v3741 = vadd.f32 %v3731, 1.0
        %v3742 = vadd.f32 %v3733, 1.0
        %v3743 = vadd.f32 %v3735, 1.0
        %v3744 = vadd.f32 %v3737, 1.0
        %v3745 = vrcp.pop %v3738
        %v3746 = vmul.f32 1.0, %v3745
        %v3747 = vrcp.pop %v3739
        %v3748 = vmul.f32 1.0, %v3747
        %v3749 = vrcp.pop %v3740
        %v3750 = vmul.f32 1.0, %v3749
        %v3751 = vrcp.pop %v3741
        %v3752 = vmul.f32 1.0, %v3751
        %v3753 = vrcp.pop %v3742
        %v3754 = vmul.f32 1.0, %v3753
        %v3755 = vrcp.pop %v3743
        %v3756 = vmul.f32 1.0, %v3755
        %v3757 = vrcp.pop %v3744
        %v3758 = vmul.f32 1.0, %v3757
        %3759 = vst [vmem:[%s501] sm:$0xff] %v3746
        %3760 = vst [vmem:[%s501 + $0x8] sm:$0xff] %v3748
        %3761 = vst [vmem:[%s501 + $0x10] sm:$0xff] %v3750
        %3762 = vst [vmem:[%s501 + $0x18] sm:$0xff] %v3752
        %3763 = vst [vmem:[%s501 + $0x20] sm:$0xff] %v3754
        %3764 = vst [vmem:[%s501 + $0x28] sm:$0xff] %v3756
        %3765 = vst.msk [vmem:[%s501 + $0x30] sm:$0xff] %vm1138, %v3758
        %s3766 = sand.u32 %s342, 1
        %s3767 = scalar_lea.sflag [#allocation3], %s3766
        %s3768 = sand.u32 %s342, 1
        %s3769 = smul.addr %s3768, 56
        %s3770 = scalar_lea.vmem [#allocation2], %s3769
        %p3771 = scmp.lt.s32.totalorder %s30, 1
        %s3772 = scalar_select %p3771, %s30, 1
        %s3773 = smul.addr %s3772, 8
        %s3774 = scalar_lea.vmem %s15, %s3773
        // Predicated region
        $region77: #{vae_forward.1} parent=75 // pred_check
          %p3775 = pneg %p352
        $region78: #{vae_forward.1} parent=75 // pred_check_branch
          %3777 = sbr.rel (%p3775) target = $region80
        $region79: #{vae_forward.1} parent=75 // pred_region
          %s3779 = ssub.s32 896, 896
          %3780 = vsyncadd %s3767, %s3779
          %s3781 = smul.addr %s30, 7
          %s3782 = smul.addr %s3781, 128
          %s3783 = scalar_lea.hbm %s14, %s3782
          %s3785 = sshll.u32 %s3770, 4
          %s3786 = int_to_ptr.vmem [resolvable:$true] %s3785
          %3788 = dma.vmem_to_hbm [thread:$0]  %s3786, 896, %s3783, %s3767
        $region80: #{vae_forward.1} parent=75 // pred_fallthru
          _
        // Predicated region
        $region81: #{vae_forward.1} parent=75 // pred_check
          %p3789 = pneg %p378
        $region82: #{vae_forward.1} parent=75 // pred_check_branch
          %3791 = sbr.rel (%p3789) target = $region84
        $region83: #{vae_forward.1} parent=75 // pred_region
          _
        $region84: #{vae_forward.1} parent=75 // pred_fallthru
          _
      $region76: #{vae_forward.1} parent=5 // pred_fallthru
        _
      %p3792 = scmp.le.s32.totalorder 2, %s25
      // Predicated region
      $region85: #{vae_forward.1} parent=5 // pred_check
        %p3793 = pneg %p3792
      $region86: #{vae_forward.1} parent=5 // pred_check_branch
        %3795 = sbr.rel (%p3793) target = $region88
      $region87: #{vae_forward.1} parent=5 // pred_region
        %s3796 = ssub.s32 %s25, 2
        // Predicated region
        $region89: #{vae_forward.1} parent=87 // pred_check
          %p3797 = pneg %p358
        $region90: #{vae_forward.1} parent=87 // pred_check_branch
          %3799 = sbr.rel (%p3797) target = $region92
        $region91: #{vae_forward.1} parent=87 // pred_region
          %s3800 = sand.u32 %s343, 1
          %s3801 = scalar_lea.sflag [#allocation3], %s3800
          %s3802 = sand.u32 %s343, 1
          %s3803 = smul.addr %s3802, 56
          %s3804 = scalar_lea.vmem [#allocation2], %s3803
          %3805 = dma.done %s3801, 896
        $region92: #{vae_forward.1} parent=87 // pred_fallthru
          _
        // Predicated region
        $region93: #{vae_forward.1} parent=87 // pred_check
          %p3806 = pneg %p384
        $region94: #{vae_forward.1} parent=87 // pred_check_branch
          %3808 = sbr.rel (%p3806) target = $region96
        $region95: #{vae_forward.1} parent=87 // pred_region
          %p3809 = scmp.lt.s32.totalorder %s31, 1
          %s3810 = scalar_select %p3809, %s31, 1
          %s3811 = smul.addr %s3810, 8
          %s3812 = scalar_lea.vmem %s15, %s3811
        $region96: #{vae_forward.1} parent=87 // pred_fallthru
          _
      $region88: #{vae_forward.1} parent=5 // pred_fallthru
        _
    $region6: #{vae_forward.1} parent=1 // loop_footer
      %s29 = sadd.s32 1, %s25
    $region7: #{vae_forward.1} parent=1 // loop_footer_branch
      %24 = sbr.rel target = $region3
    $region8: #{vae_forward.1} parent=1 // loop_exit
      _
    %3813 = vsyncpa [#allocation3], 1
    %s3814 = scalar_lea.sflag [#allocation3], 1
    %3815 = vsyncpa %s3814, 1

</llo_original>
